<compile_context>
chip_gen: v7x
topology: tpu7x:2x2x1
jax: 0.10.0
libtpu: 0.0.40
codegen_flags: <defaults>
</compile_context>

<pallas_src>
import math
from types import SimpleNamespace

import jax
import jax.numpy as jnp
from jax.experimental import pallas as pl
from jax.experimental.pallas import tpu as pltpu

_LN_EPS = 1e-5


def _round_up(x, m):
    return ((x + m - 1) // m) * m


def _cdiv(a, b):
    return -(-a // b)


def _layer_norm(h, gamma, beta, eps=_LN_EPS):
    # One-pass variance: E[h^2] - E[h]^2  (one reduction pass fewer on the XLU).
    mean = jnp.mean(h, axis=-1, keepdims=True)
    mean2 = jnp.mean(h * h, axis=-1, keepdims=True)
    var = jnp.maximum(mean2 - mean * mean, 0.0)
    return (h - mean) * jax.lax.rsqrt(var + eps) * gamma + beta


def _expert_kernel(x_ref, w1_ref, w2_ref, w3_ref, w4_ref, vd_ref, vh_ref, o_ref):
    # x_ref: (tm, D) input tokens.
    # w*_ref: bf16 weights, pre-transposed to (in, out).
    # vd_ref: (8, D)  f32 slab, rows = [b1, g1, be1, b3, g3, be3, b4, 0]
    # vh_ref: (8, D/2) f32 slab, rows = [b2, g2, be2, 0, ...]
    vd = vd_ref[...]
    vh = vh_ref[...]
    b1, g1, be1 = vd[0:1, :], vd[1:2, :], vd[2:3, :]
    b3, g3, be3 = vd[3:4, :], vd[4:5, :], vd[5:6, :]
    b4 = vd[6:7, :]
    b2, g2, be2 = vh[0:1, :], vh[1:2, :], vh[2:3, :]

    w1 = w1_ref[...]
    w2 = w2_ref[...]
    w3 = w3_ref[...]
    w4 = w4_ref[...]

    tm = x_ref.shape[0]
    n_sub = 2 if (tm >= 16 and tm % 16 == 0) else 1
    rs = tm // n_sub

    # Static unrolled loop over independent row sub-tiles: lets the LLO scheduler
    # overlap one sub-tile's MXU work with the other's LayerNorm/ReLU VPU/XLU work.
    for s in range(n_sub):
        xs = x_ref[s * rs:(s + 1) * rs, :].astype(jnp.bfloat16)

        # ---- encode: Linear(D->D) + LN(D) + ReLU (+ Dropout = id) ----
        h = jnp.dot(xs, w1, preferred_element_type=jnp.float32) + b1
        h = jnp.maximum(_layer_norm(h, g1, be1), 0.0)

        # ---- encode: Linear(D->D/2) + LN(D/2) + ReLU (+ Dropout = id) ----
        h = jnp.dot(h.astype(jnp.bfloat16), w2, preferred_element_type=jnp.float32) + b2
        h = jnp.maximum(_layer_norm(h, g2, be2), 0.0)

        # ---- AdaptiveAvgPool1d(1) over last dim, expanded and added ----
        h = h + jnp.mean(h, axis=-1, keepdims=True)

        # ---- decode: Linear(D/2->D) + LN(D) + ReLU (+ Dropout = id) ----
        h = jnp.dot(h.astype(jnp.bfloat16), w3, preferred_element_type=jnp.float32) + b3
        h = jnp.maximum(_layer_norm(h, g3, be3), 0.0)

        # ---- decode: Linear(D->D) ----
        out = jnp.dot(h.astype(jnp.bfloat16), w4, preferred_element_type=jnp.float32) + b4
        o_ref[s * rs:(s + 1) * rs, :] = out.astype(o_ref.dtype)


def feature_complement_expert_forward(feature, params, ctx, *, tm=512):
    """feature: (..., model_dim); params: output of pack_params()."""
    if ctx.sharded_count > 1:
        raise Exception(
            "`sharded_count > 1` is not implemented within this expert, "
            "Model parallel is disabled."
        )

    w1t, w2t, w3t, w4t, vecs_d, vecs_h = params
    d = w1t.shape[0]
    d_half = w2t.shape[1]
    assert feature.shape[-1] == d, "last dim of FeatureToken must be model_dim"

    orig_shape = feature.shape
    x = feature.reshape(-1, d)
    m = x.shape[0]

    # Balanced token tiling: <8 rows of padding per tile; >=2 grid steps when possible
    # so both v7x TensorCores are used (harmless extra step on v5e/v6e).
    n_tiles = max(1, _cdiv(m, tm))
    if m >= 16:
        n_tiles = max(n_tiles, 2)
    tm_eff = _round_up(_cdiv(m, n_tiles), 8)
    n_tiles = _cdiv(m, tm_eff)
    m_pad = n_tiles * tm_eff
    if m_pad != m:
        x = jnp.pad(x, ((0, m_pad - m), (0, 0)))

    grid = (n_tiles,)
    const = lambda i: (0, 0)

    param_specs = [
        pl.BlockSpec((d, d), const),        # w1t (bf16)
        pl.BlockSpec((d, d_half), const),   # w2t (bf16)
        pl.BlockSpec((d_half, d), const),   # w3t (bf16)
        pl.BlockSpec((d, d), const),        # w4t (bf16)
        pl.BlockSpec((8, d), const),        # vecs_d (f32)
        pl.BlockSpec((8, d_half), const),   # vecs_h (f32)
    ]

    itemsize = x.dtype.itemsize
    flops = 2 * m_pad * (d * d + d * d_half + d_half * d + d * d)
    param_bytes = sum(int(p.size) * p.dtype.itemsize
                      for p in (w1t, w2t, w3t, w4t, vecs_d, vecs_h))
    bytes_accessed = (int(x.size) + m_pad * d) * itemsize + param_bytes

    out = pl.pallas_call(
        _expert_kernel,
        out_shape=jax.ShapeDtypeStruct((m_pad, d), feature.dtype),
        grid_spec=pltpu.PrefetchScalarGridSpec(
            num_scalar_prefetch=0,
            grid=grid,
            in_specs=[pl.BlockSpec((tm_eff, d), lambda i: (i, 0))] + param_specs,
            out_specs=pl.BlockSpec((tm_eff, d), lambda i: (i, 0)),
        ),
        compiler_params=pltpu.CompilerParams(
            dimension_semantics=("parallel",),
            vmem_limit_bytes=32 * 1024 * 1024,
        ),
        cost_estimate=pl.CostEstimate(
            flops=flops,
            transcendentals=3 * m_pad,           # one rsqrt per row per LayerNorm
            bytes_accessed=bytes_accessed,
        ),
    )(x, w1t, w2t, w3t, w4t, vecs_d, vecs_h)

    if m_pad != m:
        out = out[:m]
    return out.reshape(orig_shape)


def init_params(key, model_dim):
    """Deterministic init matching the PyTorch module's defaults
    (nn.Linear: U(-1/sqrt(fan_in), 1/sqrt(fan_in)); nn.LayerNorm: ones/zeros).
    Returned in PyTorch layout (W: (out, in)) for the reference."""
    d, dh = model_dim, model_dim // 2
    keys = jax.random.split(key, 8)

    def linear(kw, kb, fan_in, fan_out):
        bound = 1.0 / math.sqrt(fan_in)
        w = jax.random.uniform(kw, (fan_out, fan_in), jnp.float32, -bound, bound)
        b = jax.random.uniform(kb, (fan_out,), jnp.float32, -bound, bound)
        return w, b

    w1, b1 = linear(keys[0], keys[1], d, d)
    w2, b2 = linear(keys[2], keys[3], d, dh)
    w3, b3 = linear(keys[4], keys[5], dh, d)
    w4, b4 = linear(keys[6], keys[7], d, d)
    return dict(
        w1=w1, b1=b1, g1=jnp.ones((d,), jnp.float32), be1=jnp.zeros((d,), jnp.float32),
        w2=w2, b2=b2, g2=jnp.ones((dh,), jnp.float32), be2=jnp.zeros((dh,), jnp.float32),
        w3=w3, b3=b3, g3=jnp.ones((d,), jnp.float32), be3=jnp.zeros((d,), jnp.float32),
        w4=w4, b4=b4,
    )


def pack_params(pt):
    """ONE-TIME packing for the kernel:
      - weights pre-transposed to (in, out) and cast to bf16 (MXU path),
      - the 12 bias/gamma/beta vectors stacked into two f32 slabs (2 DMAs, not 12)."""
    f32 = jnp.float32
    d = pt["w1"].shape[0]
    dh = pt["w2"].shape[0]
    vecs_d = jnp.stack(
        [pt["b1"], pt["g1"], pt["be1"], pt["b3"], pt["g3"], pt["be3"], pt["b4"],
         jnp.zeros((d,), f32)], axis=0).astype(f32)                     # (8, d)
    vecs_h = jnp.concatenate(
        [jnp.stack([pt["b2"], pt["g2"], pt["be2"]], axis=0),
         jnp.zeros((5, dh), f32)], axis=0).astype(f32)                  # (8, d/2)
    return (
        pt["w1"].T.astype(jnp.bfloat16),
        pt["w2"].T.astype(jnp.bfloat16),
        pt["w3"].T.astype(jnp.bfloat16),
        pt["w4"].T.astype(jnp.bfloat16),
        vecs_d,
        vecs_h,
    )


def reference_forward(x, pt, mm_dtype=jnp.float32):
    """Plain-JAX emulation of the PyTorch eval-mode forward. mm_dtype=bf16 reproduces
    the kernel's mixed-precision matmul path (f32 accumulation)."""
    def ln(h, g, b, eps=_LN_EPS):
        mu = jnp.mean(h, -1, keepdims=True)
        var = jnp.mean(jnp.square(h - mu), -1, keepdims=True)
        return (h - mu) / jnp.sqrt(var + eps) * g + b

    def mm(a, w):
        return jnp.dot(a.astype(mm_dtype), w.T.astype(mm_dtype),
                       preferred_element_type=jnp.float32)

    h = mm(x, pt["w1"]) + pt["b1"]
    h = jnp.maximum(ln(h, pt["g1"], pt["be1"]), 0.0)
    h = mm(h, pt["w2"]) + pt["b2"]
    h = jnp.maximum(ln(h, pt["g2"], pt["be2"]), 0.0)
    h = h + jnp.mean(h, -1, keepdims=True)           # AdaptiveAvgPool1d(1) + expand + add
    h = mm(h, pt["w3"]) + pt["b3"]
    h = jnp.maximum(ln(h, pt["g3"], pt["be3"]), 0.0)
    return mm(h, pt["w4"]) + pt["b4"]


if __name__ == "__main__":
    # Small shapes consistent with the module: batch=2, seq=8, model_dim=512 (default).
    model_dim = 512
    batch, seq = 2, 8

    key = jax.random.PRNGKey(0)
    k_x, k_p = jax.random.split(key)
    feature = jax.random.normal(k_x, (batch, seq, model_dim), jnp.float32)

    pt_params = init_params(k_p, model_dim)
    params = pack_params(pt_params)          # one-time layout + bf16 packing
    ctx = SimpleNamespace(sharded_count=1)

    out = feature_complement_expert_forward(feature, params, ctx, tm=512)
    out = jax.block_until_ready(out)
    assert out.shape == feature.shape

    x2d = feature.reshape(-1, model_dim)
    # Tight check against a reference that uses the same bf16-matmul / f32-accumulate path.
    ref_bf16 = reference_forward(x2d, pt_params, jnp.bfloat16).reshape(feature.shape)
    err_bf16 = float(jnp.max(jnp.abs(out - ref_bf16)))
    assert jnp.allclose(out, ref_bf16, atol=3e-2, rtol=3e-2), f"bf16-ref max abs err {err_bf16}"
    # Looser sanity check against the full-f32 PyTorch-equivalent reference
    # (bf16 matmul inputs -> ~1e-2 scale deviations are expected).
    ref_f32 = reference_forward(x2d, pt_params, jnp.float32).reshape(feature.shape)
    err_f32 = float(jnp.max(jnp.abs(out - ref_f32)))
    assert jnp.allclose(out, ref_f32, atol=2e-1, rtol=1e-1), f"f32-ref max abs err {err_f32}"

    print("KERNEL_OK")
</pallas_src>

<mosaic_0001>
module attributes {stable_mosaic.version = 11 : i64} {
  func.func @_expert_kernel(%arg0: i32, %arg1: memref<8x512xf32, #tpu.memory_space<vmem>>, %arg2: memref<512x512xbf16, #tpu.memory_space<vmem>>, %arg3: memref<512x256xbf16, #tpu.memory_space<vmem>>, %arg4: memref<256x512xbf16, #tpu.memory_space<vmem>>, %arg5: memref<512x512xbf16, #tpu.memory_space<vmem>>, %arg6: memref<8x512xf32, #tpu.memory_space<vmem>>, %arg7: memref<8x256xf32, #tpu.memory_space<vmem>>, %arg8: memref<8x512xf32, #tpu.memory_space<vmem>>) attributes {dimension_semantics = [#tpu.dimension_semantics<parallel>], iteration_bounds = array<i64: 2>, scalar_prefetch = 0 : i64, scratch_operands = 0 : i64, tpu.core_type = #tpu.core_type<tc>, window_params = [{transform_indices = @transform_0, window_bounds = array<i64: 8, 512>}, {pipeline_mode = #tpu.pipeline_mode<synchronous>, transform_indices = @transform_1, window_bounds = array<i64: 512, 512>}, {pipeline_mode = #tpu.pipeline_mode<synchronous>, transform_indices = @transform_2, window_bounds = array<i64: 512, 256>}, {pipeline_mode = #tpu.pipeline_mode<synchronous>, transform_indices = @transform_3, window_bounds = array<i64: 256, 512>}, {pipeline_mode = #tpu.pipeline_mode<synchronous>, transform_indices = @transform_4, window_bounds = array<i64: 512, 512>}, {pipeline_mode = #tpu.pipeline_mode<synchronous>, transform_indices = @transform_5, window_bounds = array<i64: 8, 512>}, {pipeline_mode = #tpu.pipeline_mode<synchronous>, transform_indices = @transform_6, window_bounds = array<i64: 8, 256>}, {transform_indices = @transform_7, window_bounds = array<i64: 8, 512>}]} {
    %c0 = arith.constant 0 : index
    %c0_0 = arith.constant 0 : index
    %0 = vector.load %arg6[%c0, %c0_0] : memref<8x512xf32, #tpu.memory_space<vmem>>, vector<8x512xf32>
    %c0_1 = arith.constant 0 : index
    %c0_2 = arith.constant 0 : index
    %1 = vector.load %arg7[%c0_1, %c0_2] : memref<8x256xf32, #tpu.memory_space<vmem>>, vector<8x256xf32>
    %2 = vector.extract_strided_slice %0 {offsets = [0, 0], sizes = [1, 512], strides = [1, 1]} : vector<8x512xf32> to vector<1x512xf32>
    %3 = vector.extract_strided_slice %0 {offsets = [1, 0], sizes = [1, 512], strides = [1, 1]} : vector<8x512xf32> to vector<1x512xf32>
    %4 = vector.extract_strided_slice %0 {offsets = [2, 0], sizes = [1, 512], strides = [1, 1]} : vector<8x512xf32> to vector<1x512xf32>
    %5 = vector.extract_strided_slice %0 {offsets = [3, 0], sizes = [1, 512], strides = [1, 1]} : vector<8x512xf32> to vector<1x512xf32>
    %6 = vector.extract_strided_slice %0 {offsets = [4, 0], sizes = [1, 512], strides = [1, 1]} : vector<8x512xf32> to vector<1x512xf32>
    %7 = vector.extract_strided_slice %0 {offsets = [5, 0], sizes = [1, 512], strides = [1, 1]} : vector<8x512xf32> to vector<1x512xf32>
    %8 = vector.extract_strided_slice %0 {offsets = [6, 0], sizes = [1, 512], strides = [1, 1]} : vector<8x512xf32> to vector<1x512xf32>
    %9 = vector.extract_strided_slice %1 {offsets = [0, 0], sizes = [1, 256], strides = [1, 1]} : vector<8x256xf32> to vector<1x256xf32>
    %10 = vector.extract_strided_slice %1 {offsets = [1, 0], sizes = [1, 256], strides = [1, 1]} : vector<8x256xf32> to vector<1x256xf32>
    %11 = vector.extract_strided_slice %1 {offsets = [2, 0], sizes = [1, 256], strides = [1, 1]} : vector<8x256xf32> to vector<1x256xf32>
    %c0_3 = arith.constant 0 : index
    %c0_4 = arith.constant 0 : index
    %12 = vector.load %arg2[%c0_3, %c0_4] : memref<512x512xbf16, #tpu.memory_space<vmem>>, vector<512x512xbf16>
    %c0_5 = arith.constant 0 : index
    %c0_6 = arith.constant 0 : index
    %13 = vector.load %arg3[%c0_5, %c0_6] : memref<512x256xbf16, #tpu.memory_space<vmem>>, vector<512x256xbf16>
    %c0_7 = arith.constant 0 : index
    %c0_8 = arith.constant 0 : index
    %14 = vector.load %arg4[%c0_7, %c0_8] : memref<256x512xbf16, #tpu.memory_space<vmem>>, vector<256x512xbf16>
    %c0_9 = arith.constant 0 : index
    %c0_10 = arith.constant 0 : index
    %15 = vector.load %arg5[%c0_9, %c0_10] : memref<512x512xbf16, #tpu.memory_space<vmem>>, vector<512x512xbf16>
    %c0_11 = arith.constant 0 : index
    %c0_12 = arith.constant 0 : index
    %16 = vector.load %arg1[%c0_11, %c0_12] : memref<8x512xf32, #tpu.memory_space<vmem>>, vector<8x512xf32>
    %17 = arith.truncf %16 : vector<8x512xf32> to vector<8x512xbf16>
    %cst = arith.constant dense<0.000000e+00> : vector<8x512xf32>
    %18 = tpu.matmul %17, %12, %cst {dimension_numbers = #tpu.dot_dimension_numbers<[1], [0], [0], [1], [0, 0, 1, 1], [], []>} : vector<8x512xbf16>, vector<512x512xbf16>, vector<8x512xf32> -> vector<8x512xf32>
    %19 = vector.broadcast %2 : vector<1x512xf32> to vector<8x512xf32>
    %20 = arith.addf %18, %19 : vector<8x512xf32>
    %cst_13 = arith.constant dense<0.000000e+00> : vector<8xf32>
    %21 = vector.multi_reduction <add>, %20, %cst_13 [1] : vector<8x512xf32> to vector<8xf32>
    %22 = vector.shape_cast %21 : vector<8xf32> to vector<8x1xf32>
    %cst_14 = arith.constant 5.120000e+02 : f32
    %23 = vector.broadcast %cst_14 : f32 to vector<8x1xf32>
    %24 = arith.divf %22, %23 : vector<8x1xf32>
    %25 = arith.mulf %20, %20 : vector<8x512xf32>
    %cst_15 = arith.constant dense<0.000000e+00> : vector<8xf32>
    %26 = vector.multi_reduction <add>, %25, %cst_15 [1] : vector<8x512xf32> to vector<8xf32>
    %27 = vector.shape_cast %26 : vector<8xf32> to vector<8x1xf32>
    %cst_16 = arith.constant 5.120000e+02 : f32
    %28 = vector.broadcast %cst_16 : f32 to vector<8x1xf32>
    %29 = arith.divf %27, %28 : vector<8x1xf32>
    %30 = arith.mulf %24, %24 : vector<8x1xf32>
    %31 = arith.subf %29, %30 : vector<8x1xf32>
    %cst_17 = arith.constant 0.000000e+00 : f32
    %32 = vector.broadcast %cst_17 : f32 to vector<8x1xf32>
    %33 = arith.maximumf %31, %32 : vector<8x1xf32>
    %34 = vector.broadcast %24 : vector<8x1xf32> to vector<8x512xf32>
    %35 = arith.subf %20, %34 : vector<8x512xf32>
    %cst_18 = arith.constant 9.99999974E-6 : f32
    %36 = vector.broadcast %cst_18 : f32 to vector<8x1xf32>
    %37 = arith.addf %33, %36 : vector<8x1xf32>
    %38 = math.rsqrt %37 : vector<8x1xf32>
    %39 = vector.broadcast %38 : vector<8x1xf32> to vector<8x512xf32>
    %40 = arith.mulf %35, %39 : vector<8x512xf32>
    %41 = vector.broadcast %3 : vector<1x512xf32> to vector<8x512xf32>
    %42 = arith.mulf %40, %41 : vector<8x512xf32>
    %43 = vector.broadcast %4 : vector<1x512xf32> to vector<8x512xf32>
    %44 = arith.addf %42, %43 : vector<8x512xf32>
    %cst_19 = arith.constant 0.000000e+00 : f32
    %45 = vector.broadcast %cst_19 : f32 to vector<8x512xf32>
    %46 = arith.maximumf %44, %45 : vector<8x512xf32>
    %47 = arith.truncf %46 : vector<8x512xf32> to vector<8x512xbf16>
    %cst_20 = arith.constant dense<0.000000e+00> : vector<8x256xf32>
    %48 = tpu.matmul %47, %13, %cst_20 {dimension_numbers = #tpu.dot_dimension_numbers<[1], [0], [0], [1], [0, 0, 1, 1], [], []>} : vector<8x512xbf16>, vector<512x256xbf16>, vector<8x256xf32> -> vector<8x256xf32>
    %49 = vector.broadcast %9 : vector<1x256xf32> to vector<8x256xf32>
    %50 = arith.addf %48, %49 : vector<8x256xf32>
    %cst_21 = arith.constant dense<0.000000e+00> : vector<8xf32>
    %51 = vector.multi_reduction <add>, %50, %cst_21 [1] : vector<8x256xf32> to vector<8xf32>
    %52 = vector.shape_cast %51 : vector<8xf32> to vector<8x1xf32>
    %cst_22 = arith.constant 2.560000e+02 : f32
    %53 = vector.broadcast %cst_22 : f32 to vector<8x1xf32>
    %54 = arith.divf %52, %53 : vector<8x1xf32>
    %55 = arith.mulf %50, %50 : vector<8x256xf32>
    %cst_23 = arith.constant dense<0.000000e+00> : vector<8xf32>
    %56 = vector.multi_reduction <add>, %55, %cst_23 [1] : vector<8x256xf32> to vector<8xf32>
    %57 = vector.shape_cast %56 : vector<8xf32> to vector<8x1xf32>
    %cst_24 = arith.constant 2.560000e+02 : f32
    %58 = vector.broadcast %cst_24 : f32 to vector<8x1xf32>
    %59 = arith.divf %57, %58 : vector<8x1xf32>
    %60 = arith.mulf %54, %54 : vector<8x1xf32>
    %61 = arith.subf %59, %60 : vector<8x1xf32>
    %cst_25 = arith.constant 0.000000e+00 : f32
    %62 = vector.broadcast %cst_25 : f32 to vector<8x1xf32>
    %63 = arith.maximumf %61, %62 : vector<8x1xf32>
    %64 = vector.broadcast %54 : vector<8x1xf32> to vector<8x256xf32>
    %65 = arith.subf %50, %64 : vector<8x256xf32>
    %cst_26 = arith.constant 9.99999974E-6 : f32
    %66 = vector.broadcast %cst_26 : f32 to vector<8x1xf32>
    %67 = arith.addf %63, %66 : vector<8x1xf32>
    %68 = math.rsqrt %67 : vector<8x1xf32>
    %69 = vector.broadcast %68 : vector<8x1xf32> to vector<8x256xf32>
    %70 = arith.mulf %65, %69 : vector<8x256xf32>
    %71 = vector.broadcast %10 : vector<1x256xf32> to vector<8x256xf32>
    %72 = arith.mulf %70, %71 : vector<8x256xf32>
    %73 = vector.broadcast %11 : vector<1x256xf32> to vector<8x256xf32>
    %74 = arith.addf %72, %73 : vector<8x256xf32>
    %cst_27 = arith.constant 0.000000e+00 : f32
    %75 = vector.broadcast %cst_27 : f32 to vector<8x256xf32>
    %76 = arith.maximumf %74, %75 : vector<8x256xf32>
    %cst_28 = arith.constant dense<0.000000e+00> : vector<8xf32>
    %77 = vector.multi_reduction <add>, %76, %cst_28 [1] : vector<8x256xf32> to vector<8xf32>
    %78 = vector.shape_cast %77 : vector<8xf32> to vector<8x1xf32>
    %cst_29 = arith.constant 2.560000e+02 : f32
    %79 = vector.broadcast %cst_29 : f32 to vector<8x1xf32>
    %80 = arith.divf %78, %79 : vector<8x1xf32>
    %81 = vector.broadcast %80 : vector<8x1xf32> to vector<8x256xf32>
    %82 = arith.addf %76, %81 : vector<8x256xf32>
    %83 = arith.truncf %82 : vector<8x256xf32> to vector<8x256xbf16>
    %cst_30 = arith.constant dense<0.000000e+00> : vector<8x512xf32>
    %84 = tpu.matmul %83, %14, %cst_30 {dimension_numbers = #tpu.dot_dimension_numbers<[1], [0], [0], [1], [0, 0, 1, 1], [], []>} : vector<8x256xbf16>, vector<256x512xbf16>, vector<8x512xf32> -> vector<8x512xf32>
    %85 = vector.broadcast %5 : vector<1x512xf32> to vector<8x512xf32>
    %86 = arith.addf %84, %85 : vector<8x512xf32>
    %cst_31 = arith.constant dense<0.000000e+00> : vector<8xf32>
    %87 = vector.multi_reduction <add>, %86, %cst_31 [1] : vector<8x512xf32> to vector<8xf32>
    %88 = vector.shape_cast %87 : vector<8xf32> to vector<8x1xf32>
    %cst_32 = arith.constant 5.120000e+02 : f32
    %89 = vector.broadcast %cst_32 : f32 to vector<8x1xf32>
    %90 = arith.divf %88, %89 : vector<8x1xf32>
    %91 = arith.mulf %86, %86 : vector<8x512xf32>
    %cst_33 = arith.constant dense<0.000000e+00> : vector<8xf32>
    %92 = vector.multi_reduction <add>, %91, %cst_33 [1] : vector<8x512xf32> to vector<8xf32>
    %93 = vector.shape_cast %92 : vector<8xf32> to vector<8x1xf32>
    %cst_34 = arith.constant 5.120000e+02 : f32
    %94 = vector.broadcast %cst_34 : f32 to vector<8x1xf32>
    %95 = arith.divf %93, %94 : vector<8x1xf32>
    %96 = arith.mulf %90, %90 : vector<8x1xf32>
    %97 = arith.subf %95, %96 : vector<8x1xf32>
    %cst_35 = arith.constant 0.000000e+00 : f32
    %98 = vector.broadcast %cst_35 : f32 to vector<8x1xf32>
    %99 = arith.maximumf %97, %98 : vector<8x1xf32>
    %100 = vector.broadcast %90 : vector<8x1xf32> to vector<8x512xf32>
    %101 = arith.subf %86, %100 : vector<8x512xf32>
    %cst_36 = arith.constant 9.99999974E-6 : f32
    %102 = vector.broadcast %cst_36 : f32 to vector<8x1xf32>
    %103 = arith.addf %99, %102 : vector<8x1xf32>
    %104 = math.rsqrt %103 : vector<8x1xf32>
    %105 = vector.broadcast %104 : vector<8x1xf32> to vector<8x512xf32>
    %106 = arith.mulf %101, %105 : vector<8x512xf32>
    %107 = vector.broadcast %6 : vector<1x512xf32> to vector<8x512xf32>
    %108 = arith.mulf %106, %107 : vector<8x512xf32>
    %109 = vector.broadcast %7 : vector<1x512xf32> to vector<8x512xf32>
    %110 = arith.addf %108, %109 : vector<8x512xf32>
    %cst_37 = arith.constant 0.000000e+00 : f32
    %111 = vector.broadcast %cst_37 : f32 to vector<8x512xf32>
    %112 = arith.maximumf %110, %111 : vector<8x512xf32>
    %113 = arith.truncf %112 : vector<8x512xf32> to vector<8x512xbf16>
    %cst_38 = arith.constant dense<0.000000e+00> : vector<8x512xf32>
    %114 = tpu.matmul %113, %15, %cst_38 {dimension_numbers = #tpu.dot_dimension_numbers<[1], [0], [0], [1], [0, 0, 1, 1], [], []>} : vector<8x512xbf16>, vector<512x512xbf16>, vector<8x512xf32> -> vector<8x512xf32>
    %115 = vector.broadcast %8 : vector<1x512xf32> to vector<8x512xf32>
    %116 = arith.addf %114, %115 : vector<8x512xf32>
    %c0_39 = arith.constant 0 : index
    %c0_40 = arith.constant 0 : index
    %117 = vector.load %arg8[%c0_39, %c0_40] : memref<8x512xf32, #tpu.memory_space<vmem>>, vector<8x512xf32>
    tpu.vector_store %arg8[%c0_39, %c0_40], %116 {strides = array<i32>} : memref<8x512xf32, #tpu.memory_space<vmem>>, vector<8x512xf32>,
    return
  }
  func.func @transform_0(%arg0: i32) -> (i32, i32) {
    %c0_i32 = arith.constant 0 : i32
    %c0_i32_0 = arith.constant 0 : i32
    return %arg0, %c0_i32 : i32, i32
  }
  func.func @transform_1(%arg0: i32) -> (i32, i32) {
    %c0_i32 = arith.constant 0 : i32
    %c0_i32_0 = arith.constant 0 : i32
    %c0_i32_1 = arith.constant 0 : i32
    return %c0_i32, %c0_i32_0 : i32, i32
  }
  func.func @transform_2(%arg0: i32) -> (i32, i32) {
    %c0_i32 = arith.constant 0 : i32
    %c0_i32_0 = arith.constant 0 : i32
    %c0_i32_1 = arith.constant 0 : i32
    return %c0_i32, %c0_i32_0 : i32, i32
  }
  func.func @transform_3(%arg0: i32) -> (i32, i32) {
    %c0_i32 = arith.constant 0 : i32
    %c0_i32_0 = arith.constant 0 : i32
    %c0_i32_1 = arith.constant 0 : i32
    return %c0_i32, %c0_i32_0 : i32, i32
  }
  func.func @transform_4(%arg0: i32) -> (i32, i32) {
    %c0_i32 = arith.constant 0 : i32
    %c0_i32_0 = arith.constant 0 : i32
    %c0_i32_1 = arith.constant 0 : i32
    return %c0_i32, %c0_i32_0 : i32, i32
  }
  func.func @transform_5(%arg0: i32) -> (i32, i32) {
    %c0_i32 = arith.constant 0 : i32
    %c0_i32_0 = arith.constant 0 : i32
    %c0_i32_1 = arith.constant 0 : i32
    return %c0_i32, %c0_i32_0 : i32, i32
  }
  func.func @transform_6(%arg0: i32) -> (i32, i32) {
    %c0_i32 = arith.constant 0 : i32
    %c0_i32_0 = arith.constant 0 : i32
    %c0_i32_1 = arith.constant 0 : i32
    return %c0_i32, %c0_i32_0 : i32, i32
  }
  func.func @transform_7(%arg0: i32) -> (i32, i32) {
    %c0_i32 = arith.constant 0 : i32
    %c0_i32_0 = arith.constant 0 : i32
    return %arg0, %c0_i32 : i32, i32
  }
}

</mosaic_0001>

<llo_original>
// kernel: tpu_custom_call.1
$region0: #{tpu_custom_call.1}
  #allocation0 [shape = 'u32[]', space=smem, size = 0x4, offset = 0x4, fixed_abs, tag = 'smem constant byte address 0x4 - core index']
  #allocation1 [shape = 'u32[144,128]{1,0:T(1,128)}', space=vmem, size = 0x12000, scoped, tag = 'internal scratch']
  %s0 = inlined_call_operand.hbm [shape: f32[16,512], index: 0, kind: input, shape index: {}]
  %s1 = inlined_call_operand.hbm [shape: bf16[512,512], index: 1, kind: input, shape index: {}]
  %s2 = inlined_call_operand.hbm [shape: bf16[512,256], index: 2, kind: input, shape index: {}]
  %s3 = inlined_call_operand.hbm [shape: bf16[256,512], index: 3, kind: input, shape index: {}]
  %s4 = inlined_call_operand.hbm [shape: bf16[512,512], index: 4, kind: input, shape index: {}]
  %s5 = inlined_call_operand.hbm [shape: f32[8,512], index: 5, kind: input, shape index: {}]
  %s6 = inlined_call_operand.vmem [shape: f32[8,256], index: 6, kind: input, shape index: {}]
  %s7 = inlined_call_operand.hbm [shape: f32[16,512], index: 7, kind: output, shape index: {}]
  %s8 = sld [smem:[#allocation0]]
  $region85: #{tpu_custom_call.1} parent=0
    _
  %s10 = ssub.s32 1, %s8
  %s11 = scalar_select 0, %s10, %s8
  $region1: #{tpu_custom_call.1} parent=0
    #allocation2 [shape = 'u8[32768]{0}', space=vmem, size = 0x8000, scoped, tag = 'input window, operand 0']
    #allocation3 [shape = 's32[2]{0}', space=sflag, size = 0x8, scoped, tag = 'scoped memory for tpu_custom_call.1']
    #allocation4 [shape = 's32[2]{0}', space=sflag, size = 0x8, scoped, tag = 'scoped memory for tpu_custom_call.1']
    #allocation5 [shape = 'u8[524288]{0}', space=vmem, size = 0x80000, scoped, tag = 'input window, operand 1, single buffered']
    #allocation6 [shape = 's32[1]{0}', space=sflag, size = 0x4, scoped, tag = 'scoped memory for tpu_custom_call.1']
    #allocation7 [shape = 'u8[262144]{0}', space=vmem, size = 0x40000, scoped, tag = 'input window, operand 2, single buffered']
    #allocation8 [shape = 'u8[262144]{0}', space=vmem, size = 0x40000, scoped, tag = 'input window, operand 3, single buffered']
    #allocation9 [shape = 's32[1]{0}', space=sflag, size = 0x4, scoped, tag = 'scoped memory for tpu_custom_call.1']
    #allocation10 [shape = 'u8[524288]{0}', space=vmem, size = 0x80000, scoped, tag = 'input window, operand 4, single buffered']
    #allocation11 [shape = 'u8[16384]{0}', space=vmem, size = 0x4000, scoped, tag = 'input window, operand 5, single buffered']
    #allocation12 [shape = 's32[1]{0}', space=sflag, size = 0x4, scoped, tag = 'scoped memory for tpu_custom_call.1']
    #allocation13 [shape = 'u8[32768]{0}', space=vmem, size = 0x8000, scoped, tag = 'output window, operand 0']
    %12 = vsyncpa [#allocation3], 0
    %s13 = scalar_lea.sflag [#allocation3], 1
    %14 = vsyncpa %s13, 0
    %15 = vsyncpa [#allocation6], 0
    %16 = vsyncpa [#allocation9], 0
    %17 = vsyncpa [#allocation12], 0
    %18 = vsyncpa [#allocation4], 0
    %s19 = scalar_lea.sflag [#allocation4], 1
    %20 = vsyncpa %s19, 0
    loop: start=0, step=1, limit=4
    $region2: #{tpu_custom_call.1} parent=1 // loop_pre_header
      _
    $region3: #{tpu_custom_call.1} parent=1 // loop_header
      %s22 = sphi 0, %s26
      %p23 = scmp.ge.s32.totalorder %s22, 4
      %s32 = sphi 0, %s34
      %s35 = sphi 0, %s32
      %s36 = sphi 0, %s35
      %s52 = sphi 0, %s36
      %s56 = sphi 0, %s56
      %s58 = sphi 0, %s56
      %s59 = sphi 0, %s58
      %s73 = sphi 0, %s59
      %s77 = sphi 0, %s77
      %s79 = sphi 0, %s77
      %s80 = sphi 0, %s79
      %s94 = sphi 0, %s80
      %s98 = sphi 0, %s98
      %s100 = sphi 0, %s98
      %s101 = sphi 0, %s100
      %s115 = sphi 0, %s101
      %s119 = sphi 0, %s119
      %s121 = sphi 0, %s119
      %s122 = sphi 0, %s121
      %s136 = sphi 0, %s122
      %s140 = sphi 0, %s140
      %s142 = sphi 0, %s140
      %s143 = sphi 0, %s142
      %s157 = sphi 0, %s143
      %s161 = sphi 0, %s161
      %s163 = sphi 0, %s161
      %s164 = sphi 0, %s163
      %s178 = sphi 0, %s164
      %s184 = sphi 0, %s186
      %s187 = sphi 0, %s184
      %s188 = sphi 0, %s187
      %s204 = sphi 0, %s188
    $region4: #{tpu_custom_call.1} parent=1 // loop_header_branch
      %25 = sbr.rel (%p23) target = $region8
    $region5: #{tpu_custom_call.1} parent=1 // loop_body
      %s27 = ssub.s32 %s22, 1
      %s28 = ssub.s32 %s22, 2
      %s29 = sadd.s32 %s22, 1
      %s30 = ssub.s32 %s22, %s29
      %p31 = scmp.eq.s32.totalorder %s30, 0
      %s33 = sadd.s32 %s32, 1
      %s34 = scalar_select %p31, %s32, %s33
      %p37 = pneg %p31
      %p38 = scmp.eq.s32.totalorder %s22, 1
      %p39 = por %p37, %p38
      %p40 = scmp.ne.s32.totalorder %s32, %s35
      %p41 = scmp.eq.s32.totalorder %s22, 0
      %p42 = por %p40, %p41
      %p43 = scmp.ne.s32.totalorder %s32, %s35
      %p44 = scmp.eq.s32.totalorder %s27, 1
      %p45 = por %p43, %p44
      %p46 = scmp.ne.s32.totalorder %s35, %s36
      %p47 = scmp.eq.s32.totalorder %s27, 0
      %p48 = por %p46, %p47
      %p49 = scmp.ne.s32.totalorder %s35, %s36
      %p50 = scmp.eq.s32.totalorder %s28, 1
      %p51 = por %p49, %p50
      %p53 = scmp.ne.s32.totalorder %s36, %s52
      %p54 = scmp.eq.s32.totalorder %s28, 0
      %p55 = por %p53, %p54
      %s57 = sadd.s32 %s56, 1
      %p60 = scmp.eq.s32.totalorder %s22, 1
      %p61 = scmp.ne.s32.totalorder %s56, %s58
      %p62 = scmp.eq.s32.totalorder %s22, 0
      %p63 = por %p61, %p62
      %p64 = scmp.ne.s32.totalorder %s56, %s58
      %p65 = scmp.eq.s32.totalorder %s27, 1
      %p66 = por %p64, %p65
      %p67 = scmp.ne.s32.totalorder %s58, %s59
      %p68 = scmp.eq.s32.totalorder %s27, 0
      %p69 = por %p67, %p68
      %p70 = scmp.ne.s32.totalorder %s58, %s59
      %p71 = scmp.eq.s32.totalorder %s28, 1
      %p72 = por %p70, %p71
      %p74 = scmp.ne.s32.totalorder %s59, %s73
      %p75 = scmp.eq.s32.totalorder %s28, 0
      %p76 = por %p74, %p75
      %s78 = sadd.s32 %s77, 1
      %p81 = scmp.eq.s32.totalorder %s22, 1
      %p82 = scmp.ne.s32.totalorder %s77, %s79
      %p83 = scmp.eq.s32.totalorder %s22, 0
      %p84 = por %p82, %p83
      %p85 = scmp.ne.s32.totalorder %s77, %s79
      %p86 = scmp.eq.s32.totalorder %s27, 1
      %p87 = por %p85, %p86
      %p88 = scmp.ne.s32.totalorder %s79, %s80
      %p89 = scmp.eq.s32.totalorder %s27, 0
      %p90 = por %p88, %p89
      %p91 = scmp.ne.s32.totalorder %s79, %s80
      %p92 = scmp.eq.s32.totalorder %s28, 1
      %p93 = por %p91, %p92
      %p95 = scmp.ne.s32.totalorder %s80, %s94
      %p96 = scmp.eq.s32.totalorder %s28, 0
      %p97 = por %p95, %p96
      %s99 = sadd.s32 %s98, 1
      %p102 = scmp.eq.s32.totalorder %s22, 1
      %p103 = scmp.ne.s32.totalorder %s98, %s100
      %p104 = scmp.eq.s32.totalorder %s22, 0
      %p105 = por %p103, %p104
      %p106 = scmp.ne.s32.totalorder %s98, %s100
      %p107 = scmp.eq.s32.totalorder %s27, 1
      %p108 = por %p106, %p107
      %p109 = scmp.ne.s32.totalorder %s100, %s101
      %p110 = scmp.eq.s32.totalorder %s27, 0
      %p111 = por %p109, %p110
      %p112 = scmp.ne.s32.totalorder %s100, %s101
      %p113 = scmp.eq.s32.totalorder %s28, 1
      %p114 = por %p112, %p113
      %p116 = scmp.ne.s32.totalorder %s101, %s115
      %p117 = scmp.eq.s32.totalorder %s28, 0
      %p118 = por %p116, %p117
      %s120 = sadd.s32 %s119, 1
      %p123 = scmp.eq.s32.totalorder %s22, 1
      %p124 = scmp.ne.s32.totalorder %s119, %s121
      %p125 = scmp.eq.s32.totalorder %s22, 0
      %p126 = por %p124, %p125
      %p127 = scmp.ne.s32.totalorder %s119, %s121
      %p128 = scmp.eq.s32.totalorder %s27, 1
      %p129 = por %p127, %p128
      %p130 = scmp.ne.s32.totalorder %s121, %s122
      %p131 = scmp.eq.s32.totalorder %s27, 0
      %p132 = por %p130, %p131
      %p133 = scmp.ne.s32.totalorder %s121, %s122
      %p134 = scmp.eq.s32.totalorder %s28, 1
      %p135 = por %p133, %p134
      %p137 = scmp.ne.s32.totalorder %s122, %s136
      %p138 = scmp.eq.s32.totalorder %s28, 0
      %p139 = por %p137, %p138
      %s141 = sadd.s32 %s140, 1
      %p144 = scmp.eq.s32.totalorder %s22, 1
      %p145 = scmp.ne.s32.totalorder %s140, %s142
      %p146 = scmp.eq.s32.totalorder %s22, 0
      %p147 = por %p145, %p146
      %p148 = scmp.ne.s32.totalorder %s140, %s142
      %p149 = scmp.eq.s32.totalorder %s27, 1
      %p150 = por %p148, %p149
      %p151 = scmp.ne.s32.totalorder %s142, %s143
      %p152 = scmp.eq.s32.totalorder %s27, 0
      %p153 = por %p151, %p152
      %p154 = scmp.ne.s32.totalorder %s142, %s143
      %p155 = scmp.eq.s32.totalorder %s28, 1
      %p156 = por %p154, %p155
      %p158 = scmp.ne.s32.totalorder %s143, %s157
      %p159 = scmp.eq.s32.totalorder %s28, 0
      %p160 = por %p158, %p159
      %s162 = sadd.s32 %s161, 1
      %p165 = scmp.eq.s32.totalorder %s22, 1
      %p166 = scmp.ne.s32.totalorder %s161, %s163
      %p167 = scmp.eq.s32.totalorder %s22, 0
      %p168 = por %p166, %p167
      %p169 = scmp.ne.s32.totalorder %s161, %s163
      %p170 = scmp.eq.s32.totalorder %s27, 1
      %p171 = por %p169, %p170
      %p172 = scmp.ne.s32.totalorder %s163, %s164
      %p173 = scmp.eq.s32.totalorder %s27, 0
      %p174 = por %p172, %p173
      %p175 = scmp.ne.s32.totalorder %s163, %s164
      %p176 = scmp.eq.s32.totalorder %s28, 1
      %p177 = por %p175, %p176
      %p179 = scmp.ne.s32.totalorder %s164, %s178
      %p180 = scmp.eq.s32.totalorder %s28, 0
      %p181 = por %p179, %p180
      %s182 = ssub.s32 %s22, %s29
      %p183 = scmp.eq.s32.totalorder %s182, 0
      %s185 = sadd.s32 %s184, 1
      %s186 = scalar_select %p183, %s184, %s185
      %p189 = pneg %p183
      %p190 = scmp.eq.s32.totalorder %s22, 1
      %p191 = por %p189, %p190
      %p192 = scmp.ne.s32.totalorder %s184, %s187
      %p193 = scmp.eq.s32.totalorder %s22, 0
      %p194 = por %p192, %p193
      %p195 = scmp.ne.s32.totalorder %s184, %s187
      %p196 = scmp.eq.s32.totalorder %s27, 1
      %p197 = por %p195, %p196
      %p198 = scmp.ne.s32.totalorder %s187, %s188
      %p199 = scmp.eq.s32.totalorder %s27, 0
      %p200 = por %p198, %p199
      %p201 = scmp.ne.s32.totalorder %s187, %s188
      %p202 = scmp.eq.s32.totalorder %s28, 1
      %p203 = por %p201, %p202
      %p205 = scmp.ne.s32.totalorder %s188, %s204
      %p206 = scmp.eq.s32.totalorder %s28, 0
      %p207 = por %p205, %p206
      %p208 = scmp.le.s32.totalorder 1, %s22
      %p209 = scmp.lt.s32.totalorder %s22, 3
      %p210 = pnand %p208, %p209
      %p211 = pneg %p210
      // Predicated region
      $region9: #{tpu_custom_call.1} parent=5 // pred_check
        _
      $region10: #{tpu_custom_call.1} parent=5 // pred_check_branch
        %213 = sbr.rel (%p210) target = $region12
      $region11: #{tpu_custom_call.1} parent=5 // pred_region
        %s214 = ssub.s32 %s22, 1
        // Predicated region
        $region13: #{tpu_custom_call.1} parent=11 // pred_check
          %p215 = pneg %p69
        $region14: #{tpu_custom_call.1} parent=11 // pred_check_branch
          %217 = sbr.rel (%p215) target = $region16
        $region15: #{tpu_custom_call.1} parent=11 // pred_region
          %s219 = ssub.s32 16384, 16384
          %220 = vsyncadd [#allocation6], %s219
          %s221 = sshll.u32 [#allocation5], 4
          %s222 = int_to_ptr.vmem [resolvable:$true] %s221
          %227 = dma.hbm_to_vmem [thread:$0]  %s1, 16384, %s222, [#allocation6], 256, 256, 16
        $region16: #{tpu_custom_call.1} parent=11 // pred_fallthru
          _
        // Predicated region
        $region17: #{tpu_custom_call.1} parent=11 // pred_check
          %p228 = pneg %p90
        $region18: #{tpu_custom_call.1} parent=11 // pred_check_branch
          %230 = sbr.rel (%p228) target = $region20
        $region19: #{tpu_custom_call.1} parent=11 // pred_region
          %s232 = ssub.s32 8192, 8192
          %233 = vsyncadd [#allocation6], %s232
          %s234 = sshll.u32 [#allocation7], 4
          %s235 = int_to_ptr.vmem [resolvable:$true] %s234
          %240 = dma.hbm_to_vmem [thread:$0]  %s2, 8192, %s235, [#allocation6], 128, 128, 8
        $region20: #{tpu_custom_call.1} parent=11 // pred_fallthru
          _
        // Predicated region
        $region21: #{tpu_custom_call.1} parent=11 // pred_check
          %p241 = pneg %p111
        $region22: #{tpu_custom_call.1} parent=11 // pred_check_branch
          %243 = sbr.rel (%p241) target = $region24
        $region23: #{tpu_custom_call.1} parent=11 // pred_region
          %s245 = ssub.s32 8192, 8192
          %246 = vsyncadd [#allocation9], %s245
          %s247 = sshll.u32 [#allocation8], 4
          %s248 = int_to_ptr.vmem [resolvable:$true] %s247
          %253 = dma.hbm_to_vmem [thread:$0]  %s3, 8192, %s248, [#allocation9], 256, 256, 16
        $region24: #{tpu_custom_call.1} parent=11 // pred_fallthru
          _
        // Predicated region
        $region25: #{tpu_custom_call.1} parent=11 // pred_check
          %p254 = pneg %p132
        $region26: #{tpu_custom_call.1} parent=11 // pred_check_branch
          %256 = sbr.rel (%p254) target = $region28
        $region27: #{tpu_custom_call.1} parent=11 // pred_region
          %s258 = ssub.s32 16384, 16384
          %259 = vsyncadd [#allocation9], %s258
          %s260 = sshll.u32 [#allocation10], 4
          %s261 = int_to_ptr.vmem [resolvable:$true] %s260
          %266 = dma.hbm_to_vmem [thread:$0]  %s4, 16384, %s261, [#allocation9], 256, 256, 16
        $region28: #{tpu_custom_call.1} parent=11 // pred_fallthru
          _
        // Predicated region
        $region29: #{tpu_custom_call.1} parent=11 // pred_check
          %p267 = pneg %p153
        $region30: #{tpu_custom_call.1} parent=11 // pred_check_branch
          %269 = sbr.rel (%p267) target = $region32
        $region31: #{tpu_custom_call.1} parent=11 // pred_region
          %s271 = ssub.s32 512, 512
          %272 = vsyncadd [#allocation12], %s271
          %s274 = sshll.u32 [#allocation11], 4
          %s275 = int_to_ptr.vmem [resolvable:$true] %s274
          %277 = dma.hbm_to_vmem [thread:$0]  %s5, 512, %s275, [#allocation12]
        $region32: #{tpu_custom_call.1} parent=11 // pred_fallthru
          _
        // Predicated region
        $region33: #{tpu_custom_call.1} parent=11 // pred_check
          %p278 = pneg %p174
        $region34: #{tpu_custom_call.1} parent=11 // pred_check_branch
          %280 = sbr.rel (%p278) target = $region36
        $region35: #{tpu_custom_call.1} parent=11 // pred_region
          _
        $region36: #{tpu_custom_call.1} parent=11 // pred_fallthru
          _
      $region12: #{tpu_custom_call.1} parent=5 // pred_fallthru
        _
      %p281 = scmp.lt.s32.totalorder %s22, 2
      // Predicated region
      $region37: #{tpu_custom_call.1} parent=5 // pred_check
        %p282 = pneg %p281
      $region38: #{tpu_custom_call.1} parent=5 // pred_check_branch
        %284 = sbr.rel (%p282) target = $region40
      $region39: #{tpu_custom_call.1} parent=5 // pred_region
        // Predicated region
        $region41: #{tpu_custom_call.1} parent=39 // pred_check
          %p285 = pneg %p42
        $region42: #{tpu_custom_call.1} parent=39 // pred_check_branch
          %287 = sbr.rel (%p285) target = $region44
        $region43: #{tpu_custom_call.1} parent=39 // pred_region
          %s288 = sand.u32 %s32, 1
          %s289 = scalar_lea.sflag [#allocation3], %s288
          %s290 = sand.u32 %s32, 1
          %s291 = smul.addr %s290, 32
          %s292 = scalar_lea.vmem [#allocation2], %s291
          %s294 = ssub.s32 512, 512
          %295 = vsyncadd %s289, %s294
          %s296 = smul.addr %s22, 4
          %s297 = smul.addr %s296, 128
          %s298 = scalar_lea.hbm %s0, %s297
          %s300 = sshll.u32 %s292, 4
          %s301 = int_to_ptr.vmem [resolvable:$true] %s300
          %303 = dma.hbm_to_vmem [thread:$0]  %s298, 512, %s301, %s289
        $region44: #{tpu_custom_call.1} parent=39 // pred_fallthru
          _
      $region40: #{tpu_custom_call.1} parent=5 // pred_fallthru
        _
      %p304 = scmp.le.s32.totalorder 1, %s22
      %p305 = scmp.lt.s32.totalorder %s22, 3
      %p306 = pnand %p304, %p305
      %p307 = pneg %p306
      // Predicated region
      $region45: #{tpu_custom_call.1} parent=5 // pred_check
        _
      $region46: #{tpu_custom_call.1} parent=5 // pred_check_branch
        %309 = sbr.rel (%p306) target = $region48
      $region47: #{tpu_custom_call.1} parent=5 // pred_region
        %s310 = ssub.s32 %s22, 1
        %s311 = sand.u32 %s35, 1
        %s312 = scalar_lea.sflag [#allocation3], %s311
        %s313 = sand.u32 %s35, 1
        %s314 = smul.addr %s313, 32
        %s315 = scalar_lea.vmem [#allocation2], %s314
        // Predicated region
        $region49: #{tpu_custom_call.1} parent=47 // pred_check
          %p316 = pneg %p48
        $region50: #{tpu_custom_call.1} parent=47 // pred_check_branch
          %318 = sbr.rel (%p316) target = $region52
        $region51: #{tpu_custom_call.1} parent=47 // pred_region
          %319 = dma.done %s312, 512
        $region52: #{tpu_custom_call.1} parent=47 // pred_fallthru
          _
        // Predicated region
        $region53: #{tpu_custom_call.1} parent=47 // pred_check
          %p320 = pneg %p69
        $region54: #{tpu_custom_call.1} parent=47 // pred_check_branch
          %322 = sbr.rel (%p320) target = $region56
        $region55: #{tpu_custom_call.1} parent=47 // pred_region
          %323 = dma.done [#allocation6], 16384
        $region56: #{tpu_custom_call.1} parent=47 // pred_fallthru
          _
        // Predicated region
        $region57: #{tpu_custom_call.1} parent=47 // pred_check
          %p324 = pneg %p90
        $region58: #{tpu_custom_call.1} parent=47 // pred_check_branch
          %326 = sbr.rel (%p324) target = $region60
        $region59: #{tpu_custom_call.1} parent=47 // pred_region
          %327 = dma.done [#allocation6], 8192
        $region60: #{tpu_custom_call.1} parent=47 // pred_fallthru
          _
        // Predicated region
        $region61: #{tpu_custom_call.1} parent=47 // pred_check
          %p328 = pneg %p111
        $region62: #{tpu_custom_call.1} parent=47 // pred_check_branch
          %330 = sbr.rel (%p328) target = $region64
        $region63: #{tpu_custom_call.1} parent=47 // pred_region
          %331 = dma.done [#allocation9], 8192
        $region64: #{tpu_custom_call.1} parent=47 // pred_fallthru
          _
        // Predicated region
        $region65: #{tpu_custom_call.1} parent=47 // pred_check
          %p332 = pneg %p132
        $region66: #{tpu_custom_call.1} parent=47 // pred_check_branch
          %334 = sbr.rel (%p332) target = $region68
        $region67: #{tpu_custom_call.1} parent=47 // pred_region
          %335 = dma.done [#allocation9], 16384
        $region68: #{tpu_custom_call.1} parent=47 // pred_fallthru
          _
        // Predicated region
        $region69: #{tpu_custom_call.1} parent=47 // pred_check
          %p336 = pneg %p153
        $region70: #{tpu_custom_call.1} parent=47 // pred_check_branch
          %338 = sbr.rel (%p336) target = $region72
        $region71: #{tpu_custom_call.1} parent=47 // pred_region
          %339 = dma.done [#allocation12], 512
        $region72: #{tpu_custom_call.1} parent=47 // pred_fallthru
          _
        %s340 = sand.u32 %s35, 1
        %s341 = scalar_lea.sflag [#allocation3], %s340
        %s342 = sand.u32 %s35, 1
        %s343 = smul.addr %s342, 32
        %s344 = scalar_lea.vmem [#allocation2], %s343
        %p345 = pneg %p48
        %p346 = pneg %p45
        %p347 = pneg %p69
        %p348 = pneg %p66
        %p349 = pneg %p90
        %p350 = pneg %p87
        %p351 = pneg %p111
        %p352 = pneg %p108
        %p353 = pneg %p132
        %p354 = pneg %p129
        %p355 = pneg %p153
        %p356 = pneg %p150
        %p357 = pneg %p174
        %p358 = pneg %p171
        %p359 = pneg %p200
        %p360 = pneg %p197
        %s361 = sand.u32 %s187, 1
        %s362 = scalar_lea.sflag [#allocation4], %s361
        %s363 = sand.u32 %s187, 1
        %s364 = smul.addr %s363, 32
        %s365 = scalar_lea.vmem [#allocation13], %s364
        %v366 = vld [vmem:[#allocation11] sm:$0xff]
        %v367 = vld [vmem:[#allocation11 + $0x8] sm:$0xff]
        %v368 = vld [vmem:[#allocation11 + $0x10] sm:$0xff]
        %v369 = vld [vmem:[#allocation11 + $0x18] sm:$0xff]
        %v370 = vld [vmem:[%s6] sm:$0xff]
        %v371 = vld [vmem:[%s6 + $0x8] sm:$0xff]
        %v372 = vld [vmem:[#allocation5] sm:$0xff]
        %v373 = vld [vmem:[#allocation5 + $0x8] sm:$0xff]
        %v374 = vld [vmem:[#allocation5 + $0x10] sm:$0xff]
        %v375 = vld [vmem:[#allocation5 + $0x18] sm:$0xff]
        %v376 = vld [vmem:[#allocation5 + $0x20] sm:$0xff]
        %v377 = vld [vmem:[#allocation5 + $0x28] sm:$0xff]
        %v378 = vld [vmem:[#allocation5 + $0x30] sm:$0xff]
        %v379 = vld [vmem:[#allocation5 + $0x38] sm:$0xff]
        %v380 = vld [vmem:[#allocation5 + $0x40] sm:$0xff]
        %v381 = vld [vmem:[#allocation5 + $0x48] sm:$0xff]
        %v382 = vld [vmem:[#allocation5 + $0x50] sm:$0xff]
        %v383 = vld [vmem:[#allocation5 + $0x58] sm:$0xff]
        %v384 = vld [vmem:[#allocation5 + $0x60] sm:$0xff]
        %v385 = vld [vmem:[#allocation5 + $0x68] sm:$0xff]
        %v386 = vld [vmem:[#allocation5 + $0x70] sm:$0xff]
        %v387 = vld [vmem:[#allocation5 + $0x78] sm:$0xff]
        %v388 = vld [vmem:[#allocation5 + $0x80] sm:$0xff]
        %v389 = vld [vmem:[#allocation5 + $0x88] sm:$0xff]
        %v390 = vld [vmem:[#allocation5 + $0x90] sm:$0xff]
        %v391 = vld [vmem:[#allocation5 + $0x98] sm:$0xff]
        %v392 = vld [vmem:[#allocation5 + $0xa0] sm:$0xff]
        %v393 = vld [vmem:[#allocation5 + $0xa8] sm:$0xff]
        %v394 = vld [vmem:[#allocation5 + $0xb0] sm:$0xff]
        %v395 = vld [vmem:[#allocation5 + $0xb8] sm:$0xff]
        %v396 = vld [vmem:[#allocation5 + $0xc0] sm:$0xff]
        %v397 = vld [vmem:[#allocation5 + $0xc8] sm:$0xff]
        %v398 = vld [vmem:[#allocation5 + $0xd0] sm:$0xff]
        %v399 = vld [vmem:[#allocation5 + $0xd8] sm:$0xff]
        %v400 = vld [vmem:[#allocation5 + $0xe0] sm:$0xff]
        %v401 = vld [vmem:[#allocation5 + $0xe8] sm:$0xff]
        %v402 = vld [vmem:[#allocation5 + $0xf0] sm:$0xff]
        %v403 = vld [vmem:[#allocation5 + $0xf8] sm:$0xff]
        %v404 = vld [vmem:[#allocation5 + $0x100] sm:$0xff]
        %v405 = vld [vmem:[#allocation5 + $0x108] sm:$0xff]
        %v406 = vld [vmem:[#allocation5 + $0x110] sm:$0xff]
        %v407 = vld [vmem:[#allocation5 + $0x118] sm:$0xff]
        %v408 = vld [vmem:[#allocation5 + $0x120] sm:$0xff]
        %v409 = vld [vmem:[#allocation5 + $0x128] sm:$0xff]
        %v410 = vld [vmem:[#allocation5 + $0x130] sm:$0xff]
        %v411 = vld [vmem:[#allocation5 + $0x138] sm:$0xff]
        %v412 = vld [vmem:[#allocation5 + $0x140] sm:$0xff]
        %v413 = vld [vmem:[#allocation5 + $0x148] sm:$0xff]
        %v414 = vld [vmem:[#allocation5 + $0x150] sm:$0xff]
        %v415 = vld [vmem:[#allocation5 + $0x158] sm:$0xff]
        %v416 = vld [vmem:[#allocation5 + $0x160] sm:$0xff]
        %v417 = vld [vmem:[#allocation5 + $0x168] sm:$0xff]
        %v418 = vld [vmem:[#allocation5 + $0x170] sm:$0xff]
        %v419 = vld [vmem:[#allocation5 + $0x178] sm:$0xff]
        %v420 = vld [vmem:[#allocation5 + $0x180] sm:$0xff]
        %v421 = vld [vmem:[#allocation5 + $0x188] sm:$0xff]
        %v422 = vld [vmem:[#allocation5 + $0x190] sm:$0xff]
        %v423 = vld [vmem:[#allocation5 + $0x198] sm:$0xff]
        %v424 = vld [vmem:[#allocation5 + $0x1a0] sm:$0xff]
        %v425 = vld [vmem:[#allocation5 + $0x1a8] sm:$0xff]
        %v426 = vld [vmem:[#allocation5 + $0x1b0] sm:$0xff]
        %v427 = vld [vmem:[#allocation5 + $0x1b8] sm:$0xff]
        %v428 = vld [vmem:[#allocation5 + $0x1c0] sm:$0xff]
        %v429 = vld [vmem:[#allocation5 + $0x1c8] sm:$0xff]
        %v430 = vld [vmem:[#allocation5 + $0x1d0] sm:$0xff]
        %v431 = vld [vmem:[#allocation5 + $0x1d8] sm:$0xff]
        %v432 = vld [vmem:[#allocation5 + $0x1e0] sm:$0xff]
        %v433 = vld [vmem:[#allocation5 + $0x1e8] sm:$0xff]
        %v434 = vld [vmem:[#allocation5 + $0x1f0] sm:$0xff]
        %v435 = vld [vmem:[#allocation5 + $0x1f8] sm:$0xff]
        %v436 = vld [vmem:[#allocation5 + $0x200] sm:$0xff]
        %v437 = vld [vmem:[#allocation5 + $0x208] sm:$0xff]
        %v438 = vld [vmem:[#allocation5 + $0x210] sm:$0xff]
        %v439 = vld [vmem:[#allocation5 + $0x218] sm:$0xff]
        %v440 = vld [vmem:[#allocation5 + $0x220] sm:$0xff]
        %v441 = vld [vmem:[#allocation5 + $0x228] sm:$0xff]
        %v442 = vld [vmem:[#allocation5 + $0x230] sm:$0xff]
        %v443 = vld [vmem:[#allocation5 + $0x238] sm:$0xff]
        %v444 = vld [vmem:[#allocation5 + $0x240] sm:$0xff]
        %v445 = vld [vmem:[#allocation5 + $0x248] sm:$0xff]
        %v446 = vld [vmem:[#allocation5 + $0x250] sm:$0xff]
        %v447 = vld [vmem:[#allocation5 + $0x258] sm:$0xff]
        %v448 = vld [vmem:[#allocation5 + $0x260] sm:$0xff]
        %v449 = vld [vmem:[#allocation5 + $0x268] sm:$0xff]
        %v450 = vld [vmem:[#allocation5 + $0x270] sm:$0xff]
        %v451 = vld [vmem:[#allocation5 + $0x278] sm:$0xff]
        %v452 = vld [vmem:[#allocation5 + $0x280] sm:$0xff]
        %v453 = vld [vmem:[#allocation5 + $0x288] sm:$0xff]
        %v454 = vld [vmem:[#allocation5 + $0x290] sm:$0xff]
        %v455 = vld [vmem:[#allocation5 + $0x298] sm:$0xff]
        %v456 = vld [vmem:[#allocation5 + $0x2a0] sm:$0xff]
        %v457 = vld [vmem:[#allocation5 + $0x2a8] sm:$0xff]
        %v458 = vld [vmem:[#allocation5 + $0x2b0] sm:$0xff]
        %v459 = vld [vmem:[#allocation5 + $0x2b8] sm:$0xff]
        %v460 = vld [vmem:[#allocation5 + $0x2c0] sm:$0xff]
        %v461 = vld [vmem:[#allocation5 + $0x2c8] sm:$0xff]
        %v462 = vld [vmem:[#allocation5 + $0x2d0] sm:$0xff]
        %v463 = vld [vmem:[#allocation5 + $0x2d8] sm:$0xff]
        %v464 = vld [vmem:[#allocation5 + $0x2e0] sm:$0xff]
        %v465 = vld [vmem:[#allocation5 + $0x2e8] sm:$0xff]
        %v466 = vld [vmem:[#allocation5 + $0x2f0] sm:$0xff]
        %v467 = vld [vmem:[#allocation5 + $0x2f8] sm:$0xff]
        %v468 = vld [vmem:[#allocation5 + $0x300] sm:$0xff]
        %v469 = vld [vmem:[#allocation5 + $0x308] sm:$0xff]
        %v470 = vld [vmem:[#allocation5 + $0x310] sm:$0xff]
        %v471 = vld [vmem:[#allocation5 + $0x318] sm:$0xff]
        %v472 = vld [vmem:[#allocation5 + $0x320] sm:$0xff]
        %v473 = vld [vmem:[#allocation5 + $0x328] sm:$0xff]
        %v474 = vld [vmem:[#allocation5 + $0x330] sm:$0xff]
        %v475 = vld [vmem:[#allocation5 + $0x338] sm:$0xff]
        %v476 = vld [vmem:[#allocation5 + $0x340] sm:$0xff]
        %v477 = vld [vmem:[#allocation5 + $0x348] sm:$0xff]
        %v478 = vld [vmem:[#allocation5 + $0x350] sm:$0xff]
        %v479 = vld [vmem:[#allocation5 + $0x358] sm:$0xff]
        %v480 = vld [vmem:[#allocation5 + $0x360] sm:$0xff]
        %v481 = vld [vmem:[#allocation5 + $0x368] sm:$0xff]
        %v482 = vld [vmem:[#allocation5 + $0x370] sm:$0xff]
        %v483 = vld [vmem:[#allocation5 + $0x378] sm:$0xff]
        %v484 = vld [vmem:[#allocation5 + $0x380] sm:$0xff]
        %v485 = vld [vmem:[#allocation5 + $0x388] sm:$0xff]
        %v486 = vld [vmem:[#allocation5 + $0x390] sm:$0xff]
        %v487 = vld [vmem:[#allocation5 + $0x398] sm:$0xff]
        %v488 = vld [vmem:[#allocation5 + $0x3a0] sm:$0xff]
        %v489 = vld [vmem:[#allocation5 + $0x3a8] sm:$0xff]
        %v490 = vld [vmem:[#allocation5 + $0x3b0] sm:$0xff]
        %v491 = vld [vmem:[#allocation5 + $0x3b8] sm:$0xff]
        %v492 = vld [vmem:[#allocation5 + $0x3c0] sm:$0xff]
        %v493 = vld [vmem:[#allocation5 + $0x3c8] sm:$0xff]
        %v494 = vld [vmem:[#allocation5 + $0x3d0] sm:$0xff]
        %v495 = vld [vmem:[#allocation5 + $0x3d8] sm:$0xff]
        %v496 = vld [vmem:[#allocation5 + $0x3e0] sm:$0xff]
        %v497 = vld [vmem:[#allocation5 + $0x3e8] sm:$0xff]
        %v498 = vld [vmem:[#allocation5 + $0x3f0] sm:$0xff]
        %v499 = vld [vmem:[#allocation5 + $0x3f8] sm:$0xff]
        %v500 = vld [vmem:[#allocation7] sm:$0xff]
        %v501 = vld [vmem:[#allocation7 + $0x8] sm:$0xff]
        %v502 = vld [vmem:[#allocation7 + $0x10] sm:$0xff]
        %v503 = vld [vmem:[#allocation7 + $0x18] sm:$0xff]
        %v504 = vld [vmem:[#allocation7 + $0x20] sm:$0xff]
        %v505 = vld [vmem:[#allocation7 + $0x28] sm:$0xff]
        %v506 = vld [vmem:[#allocation7 + $0x30] sm:$0xff]
        %v507 = vld [vmem:[#allocation7 + $0x38] sm:$0xff]
        %v508 = vld [vmem:[#allocation7 + $0x40] sm:$0xff]
        %v509 = vld [vmem:[#allocation7 + $0x48] sm:$0xff]
        %v510 = vld [vmem:[#allocation7 + $0x50] sm:$0xff]
        %v511 = vld [vmem:[#allocation7 + $0x58] sm:$0xff]
        %v512 = vld [vmem:[#allocation7 + $0x60] sm:$0xff]
        %v513 = vld [vmem:[#allocation7 + $0x68] sm:$0xff]
        %v514 = vld [vmem:[#allocation7 + $0x70] sm:$0xff]
        %v515 = vld [vmem:[#allocation7 + $0x78] sm:$0xff]
        %v516 = vld [vmem:[#allocation7 + $0x80] sm:$0xff]
        %v517 = vld [vmem:[#allocation7 + $0x88] sm:$0xff]
        %v518 = vld [vmem:[#allocation7 + $0x90] sm:$0xff]
        %v519 = vld [vmem:[#allocation7 + $0x98] sm:$0xff]
        %v520 = vld [vmem:[#allocation7 + $0xa0] sm:$0xff]
        %v521 = vld [vmem:[#allocation7 + $0xa8] sm:$0xff]
        %v522 = vld [vmem:[#allocation7 + $0xb0] sm:$0xff]
        %v523 = vld [vmem:[#allocation7 + $0xb8] sm:$0xff]
        %v524 = vld [vmem:[#allocation7 + $0xc0] sm:$0xff]
        %v525 = vld [vmem:[#allocation7 + $0xc8] sm:$0xff]
        %v526 = vld [vmem:[#allocation7 + $0xd0] sm:$0xff]
        %v527 = vld [vmem:[#allocation7 + $0xd8] sm:$0xff]
        %v528 = vld [vmem:[#allocation7 + $0xe0] sm:$0xff]
        %v529 = vld [vmem:[#allocation7 + $0xe8] sm:$0xff]
        %v530 = vld [vmem:[#allocation7 + $0xf0] sm:$0xff]
        %v531 = vld [vmem:[#allocation7 + $0xf8] sm:$0xff]
        %v532 = vld [vmem:[#allocation7 + $0x100] sm:$0xff]
        %v533 = vld [vmem:[#allocation7 + $0x108] sm:$0xff]
        %v534 = vld [vmem:[#allocation7 + $0x110] sm:$0xff]
        %v535 = vld [vmem:[#allocation7 + $0x118] sm:$0xff]
        %v536 = vld [vmem:[#allocation7 + $0x120] sm:$0xff]
        %v537 = vld [vmem:[#allocation7 + $0x128] sm:$0xff]
        %v538 = vld [vmem:[#allocation7 + $0x130] sm:$0xff]
        %v539 = vld [vmem:[#allocation7 + $0x138] sm:$0xff]
        %v540 = vld [vmem:[#allocation7 + $0x140] sm:$0xff]
        %v541 = vld [vmem:[#allocation7 + $0x148] sm:$0xff]
        %v542 = vld [vmem:[#allocation7 + $0x150] sm:$0xff]
        %v543 = vld [vmem:[#allocation7 + $0x158] sm:$0xff]
        %v544 = vld [vmem:[#allocation7 + $0x160] sm:$0xff]
        %v545 = vld [vmem:[#allocation7 + $0x168] sm:$0xff]
        %v546 = vld [vmem:[#allocation7 + $0x170] sm:$0xff]
        %v547 = vld [vmem:[#allocation7 + $0x178] sm:$0xff]
        %v548 = vld [vmem:[#allocation7 + $0x180] sm:$0xff]
        %v549 = vld [vmem:[#allocation7 + $0x188] sm:$0xff]
        %v550 = vld [vmem:[#allocation7 + $0x190] sm:$0xff]
        %v551 = vld [vmem:[#allocation7 + $0x198] sm:$0xff]
        %v552 = vld [vmem:[#allocation7 + $0x1a0] sm:$0xff]
        %v553 = vld [vmem:[#allocation7 + $0x1a8] sm:$0xff]
        %v554 = vld [vmem:[#allocation7 + $0x1b0] sm:$0xff]
        %v555 = vld [vmem:[#allocation7 + $0x1b8] sm:$0xff]
        %v556 = vld [vmem:[#allocation7 + $0x1c0] sm:$0xff]
        %v557 = vld [vmem:[#allocation7 + $0x1c8] sm:$0xff]
        %v558 = vld [vmem:[#allocation7 + $0x1d0] sm:$0xff]
        %v559 = vld [vmem:[#allocation7 + $0x1d8] sm:$0xff]
        %v560 = vld [vmem:[#allocation7 + $0x1e0] sm:$0xff]
        %v561 = vld [vmem:[#allocation7 + $0x1e8] sm:$0xff]
        %v562 = vld [vmem:[#allocation7 + $0x1f0] sm:$0xff]
        %v563 = vld [vmem:[#allocation7 + $0x1f8] sm:$0xff]
        %v564 = vld [vmem:[#allocation8] sm:$0xff]
        %v565 = vld [vmem:[#allocation8 + $0x8] sm:$0xff]
        %v566 = vld [vmem:[#allocation8 + $0x10] sm:$0xff]
        %v567 = vld [vmem:[#allocation8 + $0x18] sm:$0xff]
        %v568 = vld [vmem:[#allocation8 + $0x20] sm:$0xff]
        %v569 = vld [vmem:[#allocation8 + $0x28] sm:$0xff]
        %v570 = vld [vmem:[#allocation8 + $0x30] sm:$0xff]
        %v571 = vld [vmem:[#allocation8 + $0x38] sm:$0xff]
        %v572 = vld [vmem:[#allocation8 + $0x40] sm:$0xff]
        %v573 = vld [vmem:[#allocation8 + $0x48] sm:$0xff]
        %v574 = vld [vmem:[#allocation8 + $0x50] sm:$0xff]
        %v575 = vld [vmem:[#allocation8 + $0x58] sm:$0xff]
        %v576 = vld [vmem:[#allocation8 + $0x60] sm:$0xff]
        %v577 = vld [vmem:[#allocation8 + $0x68] sm:$0xff]
        %v578 = vld [vmem:[#allocation8 + $0x70] sm:$0xff]
        %v579 = vld [vmem:[#allocation8 + $0x78] sm:$0xff]
        %v580 = vld [vmem:[#allocation8 + $0x80] sm:$0xff]
        %v581 = vld [vmem:[#allocation8 + $0x88] sm:$0xff]
        %v582 = vld [vmem:[#allocation8 + $0x90] sm:$0xff]
        %v583 = vld [vmem:[#allocation8 + $0x98] sm:$0xff]
        %v584 = vld [vmem:[#allocation8 + $0xa0] sm:$0xff]
        %v585 = vld [vmem:[#allocation8 + $0xa8] sm:$0xff]
        %v586 = vld [vmem:[#allocation8 + $0xb0] sm:$0xff]
        %v587 = vld [vmem:[#allocation8 + $0xb8] sm:$0xff]
        %v588 = vld [vmem:[#allocation8 + $0xc0] sm:$0xff]
        %v589 = vld [vmem:[#allocation8 + $0xc8] sm:$0xff]
        %v590 = vld [vmem:[#allocation8 + $0xd0] sm:$0xff]
        %v591 = vld [vmem:[#allocation8 + $0xd8] sm:$0xff]
        %v592 = vld [vmem:[#allocation8 + $0xe0] sm:$0xff]
        %v593 = vld [vmem:[#allocation8 + $0xe8] sm:$0xff]
        %v594 = vld [vmem:[#allocation8 + $0xf0] sm:$0xff]
        %v595 = vld [vmem:[#allocation8 + $0xf8] sm:$0xff]
        %v596 = vld [vmem:[#allocation8 + $0x100] sm:$0xff]
        %v597 = vld [vmem:[#allocation8 + $0x108] sm:$0xff]
        %v598 = vld [vmem:[#allocation8 + $0x110] sm:$0xff]
        %v599 = vld [vmem:[#allocation8 + $0x118] sm:$0xff]
        %v600 = vld [vmem:[#allocation8 + $0x120] sm:$0xff]
        %v601 = vld [vmem:[#allocation8 + $0x128] sm:$0xff]
        %v602 = vld [vmem:[#allocation8 + $0x130] sm:$0xff]
        %v603 = vld [vmem:[#allocation8 + $0x138] sm:$0xff]
        %v604 = vld [vmem:[#allocation8 + $0x140] sm:$0xff]
        %v605 = vld [vmem:[#allocation8 + $0x148] sm:$0xff]
        %v606 = vld [vmem:[#allocation8 + $0x150] sm:$0xff]
        %v607 = vld [vmem:[#allocation8 + $0x158] sm:$0xff]
        %v608 = vld [vmem:[#allocation8 + $0x160] sm:$0xff]
        %v609 = vld [vmem:[#allocation8 + $0x168] sm:$0xff]
        %v610 = vld [vmem:[#allocation8 + $0x170] sm:$0xff]
        %v611 = vld [vmem:[#allocation8 + $0x178] sm:$0xff]
        %v612 = vld [vmem:[#allocation8 + $0x180] sm:$0xff]
        %v613 = vld [vmem:[#allocation8 + $0x188] sm:$0xff]
        %v614 = vld [vmem:[#allocation8 + $0x190] sm:$0xff]
        %v615 = vld [vmem:[#allocation8 + $0x198] sm:$0xff]
        %v616 = vld [vmem:[#allocation8 + $0x1a0] sm:$0xff]
        %v617 = vld [vmem:[#allocation8 + $0x1a8] sm:$0xff]
        %v618 = vld [vmem:[#allocation8 + $0x1b0] sm:$0xff]
        %v619 = vld [vmem:[#allocation8 + $0x1b8] sm:$0xff]
        %v620 = vld [vmem:[#allocation8 + $0x1c0] sm:$0xff]
        %v621 = vld [vmem:[#allocation8 + $0x1c8] sm:$0xff]
        %v622 = vld [vmem:[#allocation8 + $0x1d0] sm:$0xff]
        %v623 = vld [vmem:[#allocation8 + $0x1d8] sm:$0xff]
        %v624 = vld [vmem:[#allocation8 + $0x1e0] sm:$0xff]
        %v625 = vld [vmem:[#allocation8 + $0x1e8] sm:$0xff]
        %v626 = vld [vmem:[#allocation8 + $0x1f0] sm:$0xff]
        %v627 = vld [vmem:[#allocation8 + $0x1f8] sm:$0xff]
        %v628 = vld [vmem:[#allocation10] sm:$0xff]
        %v629 = vld [vmem:[#allocation10 + $0x8] sm:$0xff]
        %v630 = vld [vmem:[#allocation10 + $0x10] sm:$0xff]
        %v631 = vld [vmem:[#allocation10 + $0x18] sm:$0xff]
        %v632 = vld [vmem:[#allocation10 + $0x20] sm:$0xff]
        %v633 = vld [vmem:[#allocation10 + $0x28] sm:$0xff]
        %v634 = vld [vmem:[#allocation10 + $0x30] sm:$0xff]
        %v635 = vld [vmem:[#allocation10 + $0x38] sm:$0xff]
        %v636 = vld [vmem:[#allocation10 + $0x40] sm:$0xff]
        %v637 = vld [vmem:[#allocation10 + $0x48] sm:$0xff]
        %v638 = vld [vmem:[#allocation10 + $0x50] sm:$0xff]
        %v639 = vld [vmem:[#allocation10 + $0x58] sm:$0xff]
        %v640 = vld [vmem:[#allocation10 + $0x60] sm:$0xff]
        %v641 = vld [vmem:[#allocation10 + $0x68] sm:$0xff]
        %v642 = vld [vmem:[#allocation10 + $0x70] sm:$0xff]
        %v643 = vld [vmem:[#allocation10 + $0x78] sm:$0xff]
        %v644 = vld [vmem:[#allocation10 + $0x80] sm:$0xff]
        %v645 = vld [vmem:[#allocation10 + $0x88] sm:$0xff]
        %v646 = vld [vmem:[#allocation10 + $0x90] sm:$0xff]
        %v647 = vld [vmem:[#allocation10 + $0x98] sm:$0xff]
        %v648 = vld [vmem:[#allocation10 + $0xa0] sm:$0xff]
        %v649 = vld [vmem:[#allocation10 + $0xa8] sm:$0xff]
        %v650 = vld [vmem:[#allocation10 + $0xb0] sm:$0xff]
        %v651 = vld [vmem:[#allocation10 + $0xb8] sm:$0xff]
        %v652 = vld [vmem:[#allocation10 + $0xc0] sm:$0xff]
        %v653 = vld [vmem:[#allocation10 + $0xc8] sm:$0xff]
        %v654 = vld [vmem:[#allocation10 + $0xd0] sm:$0xff]
        %v655 = vld [vmem:[#allocation10 + $0xd8] sm:$0xff]
        %v656 = vld [vmem:[#allocation10 + $0xe0] sm:$0xff]
        %v657 = vld [vmem:[#allocation10 + $0xe8] sm:$0xff]
        %v658 = vld [vmem:[#allocation10 + $0xf0] sm:$0xff]
        %v659 = vld [vmem:[#allocation10 + $0xf8] sm:$0xff]
        %v660 = vld [vmem:[#allocation10 + $0x100] sm:$0xff]
        %v661 = vld [vmem:[#allocation10 + $0x108] sm:$0xff]
        %v662 = vld [vmem:[#allocation10 + $0x110] sm:$0xff]
        %v663 = vld [vmem:[#allocation10 + $0x118] sm:$0xff]
        %v664 = vld [vmem:[#allocation10 + $0x120] sm:$0xff]
        %v665 = vld [vmem:[#allocation10 + $0x128] sm:$0xff]
        %v666 = vld [vmem:[#allocation10 + $0x130] sm:$0xff]
        %v667 = vld [vmem:[#allocation10 + $0x138] sm:$0xff]
        %v668 = vld [vmem:[#allocation10 + $0x140] sm:$0xff]
        %v669 = vld [vmem:[#allocation10 + $0x148] sm:$0xff]
        %v670 = vld [vmem:[#allocation10 + $0x150] sm:$0xff]
        %v671 = vld [vmem:[#allocation10 + $0x158] sm:$0xff]
        %v672 = vld [vmem:[#allocation10 + $0x160] sm:$0xff]
        %v673 = vld [vmem:[#allocation10 + $0x168] sm:$0xff]
        %v674 = vld [vmem:[#allocation10 + $0x170] sm:$0xff]
        %v675 = vld [vmem:[#allocation10 + $0x178] sm:$0xff]
        %v676 = vld [vmem:[#allocation10 + $0x180] sm:$0xff]
        %v677 = vld [vmem:[#allocation10 + $0x188] sm:$0xff]
        %v678 = vld [vmem:[#allocation10 + $0x190] sm:$0xff]
        %v679 = vld [vmem:[#allocation10 + $0x198] sm:$0xff]
        %v680 = vld [vmem:[#allocation10 + $0x1a0] sm:$0xff]
        %v681 = vld [vmem:[#allocation10 + $0x1a8] sm:$0xff]
        %v682 = vld [vmem:[#allocation10 + $0x1b0] sm:$0xff]
        %v683 = vld [vmem:[#allocation10 + $0x1b8] sm:$0xff]
        %v684 = vld [vmem:[#allocation10 + $0x1c0] sm:$0xff]
        %v685 = vld [vmem:[#allocation10 + $0x1c8] sm:$0xff]
        %v686 = vld [vmem:[#allocation10 + $0x1d0] sm:$0xff]
        %v687 = vld [vmem:[#allocation10 + $0x1d8] sm:$0xff]
        %v688 = vld [vmem:[#allocation10 + $0x1e0] sm:$0xff]
        %v689 = vld [vmem:[#allocation10 + $0x1e8] sm:$0xff]
        %v690 = vld [vmem:[#allocation10 + $0x1f0] sm:$0xff]
        %v691 = vld [vmem:[#allocation10 + $0x1f8] sm:$0xff]
        %v692 = vld [vmem:[#allocation10 + $0x200] sm:$0xff]
        %v693 = vld [vmem:[#allocation10 + $0x208] sm:$0xff]
        %v694 = vld [vmem:[#allocation10 + $0x210] sm:$0xff]
        %v695 = vld [vmem:[#allocation10 + $0x218] sm:$0xff]
        %v696 = vld [vmem:[#allocation10 + $0x220] sm:$0xff]
        %v697 = vld [vmem:[#allocation10 + $0x228] sm:$0xff]
        %v698 = vld [vmem:[#allocation10 + $0x230] sm:$0xff]
        %v699 = vld [vmem:[#allocation10 + $0x238] sm:$0xff]
        %v700 = vld [vmem:[#allocation10 + $0x240] sm:$0xff]
        %v701 = vld [vmem:[#allocation10 + $0x248] sm:$0xff]
        %v702 = vld [vmem:[#allocation10 + $0x250] sm:$0xff]
        %v703 = vld [vmem:[#allocation10 + $0x258] sm:$0xff]
        %v704 = vld [vmem:[#allocation10 + $0x260] sm:$0xff]
        %v705 = vld [vmem:[#allocation10 + $0x268] sm:$0xff]
        %v706 = vld [vmem:[#allocation10 + $0x270] sm:$0xff]
        %v707 = vld [vmem:[#allocation10 + $0x278] sm:$0xff]
        %v708 = vld [vmem:[#allocation10 + $0x280] sm:$0xff]
        %v709 = vld [vmem:[#allocation10 + $0x288] sm:$0xff]
        %v710 = vld [vmem:[#allocation10 + $0x290] sm:$0xff]
        %v711 = vld [vmem:[#allocation10 + $0x298] sm:$0xff]
        %v712 = vld [vmem:[#allocation10 + $0x2a0] sm:$0xff]
        %v713 = vld [vmem:[#allocation10 + $0x2a8] sm:$0xff]
        %v714 = vld [vmem:[#allocation10 + $0x2b0] sm:$0xff]
        %v715 = vld [vmem:[#allocation10 + $0x2b8] sm:$0xff]
        %v716 = vld [vmem:[#allocation10 + $0x2c0] sm:$0xff]
        %v717 = vld [vmem:[#allocation10 + $0x2c8] sm:$0xff]
        %v718 = vld [vmem:[#allocation10 + $0x2d0] sm:$0xff]
        %v719 = vld [vmem:[#allocation10 + $0x2d8] sm:$0xff]
        %v720 = vld [vmem:[#allocation10 + $0x2e0] sm:$0xff]
        %v721 = vld [vmem:[#allocation10 + $0x2e8] sm:$0xff]
        %v722 = vld [vmem:[#allocation10 + $0x2f0] sm:$0xff]
        %v723 = vld [vmem:[#allocation10 + $0x2f8] sm:$0xff]
        %v724 = vld [vmem:[#allocation10 + $0x300] sm:$0xff]
        %v725 = vld [vmem:[#allocation10 + $0x308] sm:$0xff]
        %v726 = vld [vmem:[#allocation10 + $0x310] sm:$0xff]
        %v727 = vld [vmem:[#allocation10 + $0x318] sm:$0xff]
        %v728 = vld [vmem:[#allocation10 + $0x320] sm:$0xff]
        %v729 = vld [vmem:[#allocation10 + $0x328] sm:$0xff]
        %v730 = vld [vmem:[#allocation10 + $0x330] sm:$0xff]
        %v731 = vld [vmem:[#allocation10 + $0x338] sm:$0xff]
        %v732 = vld [vmem:[#allocation10 + $0x340] sm:$0xff]
        %v733 = vld [vmem:[#allocation10 + $0x348] sm:$0xff]
        %v734 = vld [vmem:[#allocation10 + $0x350] sm:$0xff]
        %v735 = vld [vmem:[#allocation10 + $0x358] sm:$0xff]
        %v736 = vld [vmem:[#allocation10 + $0x360] sm:$0xff]
        %v737 = vld [vmem:[#allocation10 + $0x368] sm:$0xff]
        %v738 = vld [vmem:[#allocation10 + $0x370] sm:$0xff]
        %v739 = vld [vmem:[#allocation10 + $0x378] sm:$0xff]
        %v740 = vld [vmem:[#allocation10 + $0x380] sm:$0xff]
        %v741 = vld [vmem:[#allocation10 + $0x388] sm:$0xff]
        %v742 = vld [vmem:[#allocation10 + $0x390] sm:$0xff]
        %v743 = vld [vmem:[#allocation10 + $0x398] sm:$0xff]
        %v744 = vld [vmem:[#allocation10 + $0x3a0] sm:$0xff]
        %v745 = vld [vmem:[#allocation10 + $0x3a8] sm:$0xff]
        %v746 = vld [vmem:[#allocation10 + $0x3b0] sm:$0xff]
        %v747 = vld [vmem:[#allocation10 + $0x3b8] sm:$0xff]
        %v748 = vld [vmem:[#allocation10 + $0x3c0] sm:$0xff]
        %v749 = vld [vmem:[#allocation10 + $0x3c8] sm:$0xff]
        %v750 = vld [vmem:[#allocation10 + $0x3d0] sm:$0xff]
        %v751 = vld [vmem:[#allocation10 + $0x3d8] sm:$0xff]
        %v752 = vld [vmem:[#allocation10 + $0x3e0] sm:$0xff]
        %v753 = vld [vmem:[#allocation10 + $0x3e8] sm:$0xff]
        %v754 = vld [vmem:[#allocation10 + $0x3f0] sm:$0xff]
        %v755 = vld [vmem:[#allocation10 + $0x3f8] sm:$0xff]
        %v756 = vld [vmem:[%s315] sm:$0xff]
        %v757 = vld [vmem:[%s315 + $0x8] sm:$0xff]
        %v758 = vld [vmem:[%s315 + $0x10] sm:$0xff]
        %v759 = vld [vmem:[%s315 + $0x18] sm:$0xff]
        %v760 = vpack.c.bf16 %v756, %v756
        %v761 = vpack.c.bf16 %v757, %v757
        %v762 = vpack.c.bf16 %v758, %v758
        %v763 = vpack.c.bf16 %v759, %v759
        %v764 = vlaneseq
        %v765 = vshrl.u32 %v764, 7
        %v766 = vsub.s32 0, %v765
        %v767 = vrot.slane %v366, %v766
        %v768 = vlaneseq
        %v769 = vshrl.u32 %v768, 7
        %v770 = vsub.s32 0, %v769
        %v771 = vrot.slane %v367, %v770
        %v772 = vlaneseq
        %v773 = vshrl.u32 %v772, 7
        %v774 = vsub.s32 0, %v773
        %v775 = vrot.slane %v368, %v774
        %v776 = vlaneseq
        %v777 = vshrl.u32 %v776, 7
        %v778 = vsub.s32 0, %v777
        %v779 = vrot.slane %v369, %v778
        %v908 = vunpack.c.l.b16 %v372
        %v909 = vunpack.c.h.b16 %v372
        %v910 = vunpack.c.l.b16 %v373
        %v911 = vunpack.c.h.b16 %v373
        %v912 = vunpack.c.l.b16 %v374
        %v913 = vunpack.c.h.b16 %v374
        %v914 = vunpack.c.l.b16 %v375
        %v915 = vunpack.c.h.b16 %v375
        %v916 = vunpack.c.l.b16 %v376
        %v917 = vunpack.c.h.b16 %v376
        %v918 = vunpack.c.l.b16 %v377
        %v919 = vunpack.c.h.b16 %v377
        %v920 = vunpack.c.l.b16 %v378
        %v921 = vunpack.c.h.b16 %v378
        %v922 = vunpack.c.l.b16 %v379
        %v923 = vunpack.c.h.b16 %v379
        %v924 = vunpack.c.l.b16 %v380
        %v925 = vunpack.c.h.b16 %v380
        %v926 = vunpack.c.l.b16 %v381
        %v927 = vunpack.c.h.b16 %v381
        %v928 = vunpack.c.l.b16 %v382
        %v929 = vunpack.c.h.b16 %v382
        %v930 = vunpack.c.l.b16 %v383
        %v931 = vunpack.c.h.b16 %v383
        %v932 = vunpack.c.l.b16 %v384
        %v933 = vunpack.c.h.b16 %v384
        %v934 = vunpack.c.l.b16 %v385
        %v935 = vunpack.c.h.b16 %v385
        %v936 = vunpack.c.l.b16 %v386
        %v937 = vunpack.c.h.b16 %v386
        %v938 = vunpack.c.l.b16 %v387
        %v939 = vunpack.c.h.b16 %v387
        %v940 = vunpack.c.l.b16 %v388
        %v941 = vunpack.c.h.b16 %v388
        %v942 = vunpack.c.l.b16 %v389
        %v943 = vunpack.c.h.b16 %v389
        %v944 = vunpack.c.l.b16 %v390
        %v945 = vunpack.c.h.b16 %v390
        %v946 = vunpack.c.l.b16 %v391
        %v947 = vunpack.c.h.b16 %v391
        %v948 = vunpack.c.l.b16 %v392
        %v949 = vunpack.c.h.b16 %v392
        %v950 = vunpack.c.l.b16 %v393
        %v951 = vunpack.c.h.b16 %v393
        %v952 = vunpack.c.l.b16 %v394
        %v953 = vunpack.c.h.b16 %v394
        %v954 = vunpack.c.l.b16 %v395
        %v955 = vunpack.c.h.b16 %v395
        %v956 = vunpack.c.l.b16 %v396
        %v957 = vunpack.c.h.b16 %v396
        %v958 = vunpack.c.l.b16 %v397
        %v959 = vunpack.c.h.b16 %v397
        %v960 = vunpack.c.l.b16 %v398
        %v961 = vunpack.c.h.b16 %v398
        %v962 = vunpack.c.l.b16 %v399
        %v963 = vunpack.c.h.b16 %v399
        %v964 = vunpack.c.l.b16 %v400
        %v965 = vunpack.c.h.b16 %v400
        %v966 = vunpack.c.l.b16 %v401
        %v967 = vunpack.c.h.b16 %v401
        %v968 = vunpack.c.l.b16 %v402
        %v969 = vunpack.c.h.b16 %v402
        %v970 = vunpack.c.l.b16 %v403
        %v971 = vunpack.c.h.b16 %v403
        %v972 = vunpack.c.l.b16 %v404
        %v973 = vunpack.c.h.b16 %v404
        %v974 = vunpack.c.l.b16 %v405
        %v975 = vunpack.c.h.b16 %v405
        %v976 = vunpack.c.l.b16 %v406
        %v977 = vunpack.c.h.b16 %v406
        %v978 = vunpack.c.l.b16 %v407
        %v979 = vunpack.c.h.b16 %v407
        %v980 = vunpack.c.l.b16 %v408
        %v981 = vunpack.c.h.b16 %v408
        %v982 = vunpack.c.l.b16 %v409
        %v983 = vunpack.c.h.b16 %v409
        %v984 = vunpack.c.l.b16 %v410
        %v985 = vunpack.c.h.b16 %v410
        %v986 = vunpack.c.l.b16 %v411
        %v987 = vunpack.c.h.b16 %v411
        %v988 = vunpack.c.l.b16 %v412
        %v989 = vunpack.c.h.b16 %v412
        %v990 = vunpack.c.l.b16 %v413
        %v991 = vunpack.c.h.b16 %v413
        %v992 = vunpack.c.l.b16 %v414
        %v993 = vunpack.c.h.b16 %v414
        %v994 = vunpack.c.l.b16 %v415
        %v995 = vunpack.c.h.b16 %v415
        %v996 = vunpack.c.l.b16 %v416
        %v997 = vunpack.c.h.b16 %v416
        %v998 = vunpack.c.l.b16 %v417
        %v999 = vunpack.c.h.b16 %v417
        %v1000 = vunpack.c.l.b16 %v418
        %v1001 = vunpack.c.h.b16 %v418
        %v1002 = vunpack.c.l.b16 %v419
        %v1003 = vunpack.c.h.b16 %v419
        %v1004 = vunpack.c.l.b16 %v420
        %v1005 = vunpack.c.h.b16 %v420
        %v1006 = vunpack.c.l.b16 %v421
        %v1007 = vunpack.c.h.b16 %v421
        %v1008 = vunpack.c.l.b16 %v422
        %v1009 = vunpack.c.h.b16 %v422
        %v1010 = vunpack.c.l.b16 %v423
        %v1011 = vunpack.c.h.b16 %v423
        %v1012 = vunpack.c.l.b16 %v424
        %v1013 = vunpack.c.h.b16 %v424
        %v1014 = vunpack.c.l.b16 %v425
        %v1015 = vunpack.c.h.b16 %v425
        %v1016 = vunpack.c.l.b16 %v426
        %v1017 = vunpack.c.h.b16 %v426
        %v1018 = vunpack.c.l.b16 %v427
        %v1019 = vunpack.c.h.b16 %v427
        %v1020 = vunpack.c.l.b16 %v428
        %v1021 = vunpack.c.h.b16 %v428
        %v1022 = vunpack.c.l.b16 %v429
        %v1023 = vunpack.c.h.b16 %v429
        %v1024 = vunpack.c.l.b16 %v430
        %v1025 = vunpack.c.h.b16 %v430
        %v1026 = vunpack.c.l.b16 %v431
        %v1027 = vunpack.c.h.b16 %v431
        %v1028 = vunpack.c.l.b16 %v432
        %v1029 = vunpack.c.h.b16 %v432
        %v1030 = vunpack.c.l.b16 %v433
        %v1031 = vunpack.c.h.b16 %v433
        %v1032 = vunpack.c.l.b16 %v434
        %v1033 = vunpack.c.h.b16 %v434
        %v1034 = vunpack.c.l.b16 %v435
        %v1035 = vunpack.c.h.b16 %v435
        %v1036 = vunpack.c.l.b16 %v436
        %v1037 = vunpack.c.h.b16 %v436
        %v1038 = vunpack.c.l.b16 %v437
        %v1039 = vunpack.c.h.b16 %v437
        %v1040 = vunpack.c.l.b16 %v438
        %v1041 = vunpack.c.h.b16 %v438
        %v1042 = vunpack.c.l.b16 %v439
        %v1043 = vunpack.c.h.b16 %v439
        %v1044 = vunpack.c.l.b16 %v440
        %v1045 = vunpack.c.h.b16 %v440
        %v1046 = vunpack.c.l.b16 %v441
        %v1047 = vunpack.c.h.b16 %v441
        %v1048 = vunpack.c.l.b16 %v442
        %v1049 = vunpack.c.h.b16 %v442
        %v1050 = vunpack.c.l.b16 %v443
        %v1051 = vunpack.c.h.b16 %v443
        %v1052 = vunpack.c.l.b16 %v444
        %v1053 = vunpack.c.h.b16 %v444
        %v1054 = vunpack.c.l.b16 %v445
        %v1055 = vunpack.c.h.b16 %v445
        %v1056 = vunpack.c.l.b16 %v446
        %v1057 = vunpack.c.h.b16 %v446
        %v1058 = vunpack.c.l.b16 %v447
        %v1059 = vunpack.c.h.b16 %v447
        %v1060 = vunpack.c.l.b16 %v448
        %v1061 = vunpack.c.h.b16 %v448
        %v1062 = vunpack.c.l.b16 %v449
        %v1063 = vunpack.c.h.b16 %v449
        %v1064 = vunpack.c.l.b16 %v450
        %v1065 = vunpack.c.h.b16 %v450
        %v1066 = vunpack.c.l.b16 %v451
        %v1067 = vunpack.c.h.b16 %v451
        %v1068 = vunpack.c.l.b16 %v452
        %v1069 = vunpack.c.h.b16 %v452
        %v1070 = vunpack.c.l.b16 %v453
        %v1071 = vunpack.c.h.b16 %v453
        %v1072 = vunpack.c.l.b16 %v454
        %v1073 = vunpack.c.h.b16 %v454
        %v1074 = vunpack.c.l.b16 %v455
        %v1075 = vunpack.c.h.b16 %v455
        %v1076 = vunpack.c.l.b16 %v456
        %v1077 = vunpack.c.h.b16 %v456
        %v1078 = vunpack.c.l.b16 %v457
        %v1079 = vunpack.c.h.b16 %v457
        %v1080 = vunpack.c.l.b16 %v458
        %v1081 = vunpack.c.h.b16 %v458
        %v1082 = vunpack.c.l.b16 %v459
        %v1083 = vunpack.c.h.b16 %v459
        %v1084 = vunpack.c.l.b16 %v460
        %v1085 = vunpack.c.h.b16 %v460
        %v1086 = vunpack.c.l.b16 %v461
        %v1087 = vunpack.c.h.b16 %v461
        %v1088 = vunpack.c.l.b16 %v462
        %v1089 = vunpack.c.h.b16 %v462
        %v1090 = vunpack.c.l.b16 %v463
        %v1091 = vunpack.c.h.b16 %v463
        %v1092 = vunpack.c.l.b16 %v464
        %v1093 = vunpack.c.h.b16 %v464
        %v1094 = vunpack.c.l.b16 %v465
        %v1095 = vunpack.c.h.b16 %v465
        %v1096 = vunpack.c.l.b16 %v466
        %v1097 = vunpack.c.h.b16 %v466
        %v1098 = vunpack.c.l.b16 %v467
        %v1099 = vunpack.c.h.b16 %v467
        %v1100 = vunpack.c.l.b16 %v468
        %v1101 = vunpack.c.h.b16 %v468
        %v1102 = vunpack.c.l.b16 %v469
        %v1103 = vunpack.c.h.b16 %v469
        %v1104 = vunpack.c.l.b16 %v470
        %v1105 = vunpack.c.h.b16 %v470
        %v1106 = vunpack.c.l.b16 %v471
        %v1107 = vunpack.c.h.b16 %v471
        %v1108 = vunpack.c.l.b16 %v472
        %v1109 = vunpack.c.h.b16 %v472
        %v1110 = vunpack.c.l.b16 %v473
        %v1111 = vunpack.c.h.b16 %v473
        %v1112 = vunpack.c.l.b16 %v474
        %v1113 = vunpack.c.h.b16 %v474
        %v1114 = vunpack.c.l.b16 %v475
        %v1115 = vunpack.c.h.b16 %v475
        %v1116 = vunpack.c.l.b16 %v476
        %v1117 = vunpack.c.h.b16 %v476
        %v1118 = vunpack.c.l.b16 %v477
        %v1119 = vunpack.c.h.b16 %v477
        %v1120 = vunpack.c.l.b16 %v478
        %v1121 = vunpack.c.h.b16 %v478
        %v1122 = vunpack.c.l.b16 %v479
        %v1123 = vunpack.c.h.b16 %v479
        %v1124 = vunpack.c.l.b16 %v480
        %v1125 = vunpack.c.h.b16 %v480
        %v1126 = vunpack.c.l.b16 %v481
        %v1127 = vunpack.c.h.b16 %v481
        %v1128 = vunpack.c.l.b16 %v482
        %v1129 = vunpack.c.h.b16 %v482
        %v1130 = vunpack.c.l.b16 %v483
        %v1131 = vunpack.c.h.b16 %v483
        %v1132 = vunpack.c.l.b16 %v484
        %v1133 = vunpack.c.h.b16 %v484
        %v1134 = vunpack.c.l.b16 %v485
        %v1135 = vunpack.c.h.b16 %v485
        %v1136 = vunpack.c.l.b16 %v486
        %v1137 = vunpack.c.h.b16 %v486
        %v1138 = vunpack.c.l.b16 %v487
        %v1139 = vunpack.c.h.b16 %v487
        %v1140 = vunpack.c.l.b16 %v488
        %v1141 = vunpack.c.h.b16 %v488
        %v1142 = vunpack.c.l.b16 %v489
        %v1143 = vunpack.c.h.b16 %v489
        %v1144 = vunpack.c.l.b16 %v490
        %v1145 = vunpack.c.h.b16 %v490
        %v1146 = vunpack.c.l.b16 %v491
        %v1147 = vunpack.c.h.b16 %v491
        %v1148 = vunpack.c.l.b16 %v492
        %v1149 = vunpack.c.h.b16 %v492
        %v1150 = vunpack.c.l.b16 %v493
        %v1151 = vunpack.c.h.b16 %v493
        %v1152 = vunpack.c.l.b16 %v494
        %v1153 = vunpack.c.h.b16 %v494
        %v1154 = vunpack.c.l.b16 %v495
        %v1155 = vunpack.c.h.b16 %v495
        %v1156 = vunpack.c.l.b16 %v496
        %v1157 = vunpack.c.h.b16 %v496
        %v1158 = vunpack.c.l.b16 %v497
        %v1159 = vunpack.c.h.b16 %v497
        %v1160 = vunpack.c.l.b16 %v498
        %v1161 = vunpack.c.h.b16 %v498
        %v1162 = vunpack.c.l.b16 %v499
        %v1163 = vunpack.c.h.b16 %v499
        %v1164 = vpack.c.b16 %v912, %v908
        %v1165 = vpack.c.b16 %v913, %v909
        %v1166 = vpack.c.b16 %v914, %v910
        %v1167 = vpack.c.b16 %v915, %v911
        %v1168 = vpack.c.b16 %v920, %v916
        %v1169 = vpack.c.b16 %v921, %v917
        %v1170 = vpack.c.b16 %v922, %v918
        %v1171 = vpack.c.b16 %v923, %v919
        %v1172 = vpack.c.b16 %v928, %v924
        %v1173 = vpack.c.b16 %v929, %v925
        %v1174 = vpack.c.b16 %v930, %v926
        %v1175 = vpack.c.b16 %v931, %v927
        %v1176 = vpack.c.b16 %v936, %v932
        %v1177 = vpack.c.b16 %v937, %v933
        %v1178 = vpack.c.b16 %v938, %v934
        %v1179 = vpack.c.b16 %v939, %v935
        %v1180 = vpack.c.b16 %v944, %v940
        %v1181 = vpack.c.b16 %v945, %v941
        %v1182 = vpack.c.b16 %v946, %v942
        %v1183 = vpack.c.b16 %v947, %v943
        %v1184 = vpack.c.b16 %v952, %v948
        %v1185 = vpack.c.b16 %v953, %v949
        %v1186 = vpack.c.b16 %v954, %v950
        %v1187 = vpack.c.b16 %v955, %v951
        %v1188 = vpack.c.b16 %v960, %v956
        %v1189 = vpack.c.b16 %v961, %v957
        %v1190 = vpack.c.b16 %v962, %v958
        %v1191 = vpack.c.b16 %v963, %v959
        %v1192 = vpack.c.b16 %v968, %v964
        %v1193 = vpack.c.b16 %v969, %v965
        %v1194 = vpack.c.b16 %v970, %v966
        %v1195 = vpack.c.b16 %v971, %v967
        %v1196 = vpack.c.b16 %v976, %v972
        %v1197 = vpack.c.b16 %v977, %v973
        %v1198 = vpack.c.b16 %v978, %v974
        %v1199 = vpack.c.b16 %v979, %v975
        %v1200 = vpack.c.b16 %v984, %v980
        %v1201 = vpack.c.b16 %v985, %v981
        %v1202 = vpack.c.b16 %v986, %v982
        %v1203 = vpack.c.b16 %v987, %v983
        %v1204 = vpack.c.b16 %v992, %v988
        %v1205 = vpack.c.b16 %v993, %v989
        %v1206 = vpack.c.b16 %v994, %v990
        %v1207 = vpack.c.b16 %v995, %v991
        %v1208 = vpack.c.b16 %v1000, %v996
        %v1209 = vpack.c.b16 %v1001, %v997
        %v1210 = vpack.c.b16 %v1002, %v998
        %v1211 = vpack.c.b16 %v1003, %v999
        %v1212 = vpack.c.b16 %v1008, %v1004
        %v1213 = vpack.c.b16 %v1009, %v1005
        %v1214 = vpack.c.b16 %v1010, %v1006
        %v1215 = vpack.c.b16 %v1011, %v1007
        %v1216 = vpack.c.b16 %v1016, %v1012
        %v1217 = vpack.c.b16 %v1017, %v1013
        %v1218 = vpack.c.b16 %v1018, %v1014
        %v1219 = vpack.c.b16 %v1019, %v1015
        %v1220 = vpack.c.b16 %v1024, %v1020
        %v1221 = vpack.c.b16 %v1025, %v1021
        %v1222 = vpack.c.b16 %v1026, %v1022
        %v1223 = vpack.c.b16 %v1027, %v1023
        %v1224 = vpack.c.b16 %v1032, %v1028
        %v1225 = vpack.c.b16 %v1033, %v1029
        %v1226 = vpack.c.b16 %v1034, %v1030
        %v1227 = vpack.c.b16 %v1035, %v1031
        %v1228 = vpack.c.b16 %v1040, %v1036
        %v1229 = vpack.c.b16 %v1041, %v1037
        %v1230 = vpack.c.b16 %v1042, %v1038
        %v1231 = vpack.c.b16 %v1043, %v1039
        %v1232 = vpack.c.b16 %v1048, %v1044
        %v1233 = vpack.c.b16 %v1049, %v1045
        %v1234 = vpack.c.b16 %v1050, %v1046
        %v1235 = vpack.c.b16 %v1051, %v1047
        %v1236 = vpack.c.b16 %v1056, %v1052
        %v1237 = vpack.c.b16 %v1057, %v1053
        %v1238 = vpack.c.b16 %v1058, %v1054
        %v1239 = vpack.c.b16 %v1059, %v1055
        %v1240 = vpack.c.b16 %v1064, %v1060
        %v1241 = vpack.c.b16 %v1065, %v1061
        %v1242 = vpack.c.b16 %v1066, %v1062
        %v1243 = vpack.c.b16 %v1067, %v1063
        %v1244 = vpack.c.b16 %v1072, %v1068
        %v1245 = vpack.c.b16 %v1073, %v1069
        %v1246 = vpack.c.b16 %v1074, %v1070
        %v1247 = vpack.c.b16 %v1075, %v1071
        %v1248 = vpack.c.b16 %v1080, %v1076
        %v1249 = vpack.c.b16 %v1081, %v1077
        %v1250 = vpack.c.b16 %v1082, %v1078
        %v1251 = vpack.c.b16 %v1083, %v1079
        %v1252 = vpack.c.b16 %v1088, %v1084
        %v1253 = vpack.c.b16 %v1089, %v1085
        %v1254 = vpack.c.b16 %v1090, %v1086
        %v1255 = vpack.c.b16 %v1091, %v1087
        %v1256 = vpack.c.b16 %v1096, %v1092
        %v1257 = vpack.c.b16 %v1097, %v1093
        %v1258 = vpack.c.b16 %v1098, %v1094
        %v1259 = vpack.c.b16 %v1099, %v1095
        %v1260 = vpack.c.b16 %v1104, %v1100
        %v1261 = vpack.c.b16 %v1105, %v1101
        %v1262 = vpack.c.b16 %v1106, %v1102
        %v1263 = vpack.c.b16 %v1107, %v1103
        %v1264 = vpack.c.b16 %v1112, %v1108
        %v1265 = vpack.c.b16 %v1113, %v1109
        %v1266 = vpack.c.b16 %v1114, %v1110
        %v1267 = vpack.c.b16 %v1115, %v1111
        %v1268 = vpack.c.b16 %v1120, %v1116
        %v1269 = vpack.c.b16 %v1121, %v1117
        %v1270 = vpack.c.b16 %v1122, %v1118
        %v1271 = vpack.c.b16 %v1123, %v1119
        %v1272 = vpack.c.b16 %v1128, %v1124
        %v1273 = vpack.c.b16 %v1129, %v1125
        %v1274 = vpack.c.b16 %v1130, %v1126
        %v1275 = vpack.c.b16 %v1131, %v1127
        %v1276 = vpack.c.b16 %v1136, %v1132
        %v1277 = vpack.c.b16 %v1137, %v1133
        %v1278 = vpack.c.b16 %v1138, %v1134
        %v1279 = vpack.c.b16 %v1139, %v1135
        %v1280 = vpack.c.b16 %v1144, %v1140
        %v1281 = vpack.c.b16 %v1145, %v1141
        %v1282 = vpack.c.b16 %v1146, %v1142
        %v1283 = vpack.c.b16 %v1147, %v1143
        %v1284 = vpack.c.b16 %v1152, %v1148
        %v1285 = vpack.c.b16 %v1153, %v1149
        %v1286 = vpack.c.b16 %v1154, %v1150
        %v1287 = vpack.c.b16 %v1155, %v1151
        %v1288 = vpack.c.b16 %v1160, %v1156
        %v1289 = vpack.c.b16 %v1161, %v1157
        %v1290 = vpack.c.b16 %v1162, %v1158
        %v1291 = vpack.c.b16 %v1163, %v1159
        %1420 = vmatprep.subr.bf16.mxu0 %v1165
        %1421 = vmatpush1.bf16.msra.mxu0 %v1164
        %1422 = vmatprep.subr.bf16.mxu0 %v1169
        %1423 = vmatpush1.bf16.msra.mxu0 %v1168
        %1424 = vmatprep.subr.bf16.mxu0 %v1173
        %1425 = vmatpush1.bf16.msra.mxu0 %v1172
        %1426 = vmatprep.subr.bf16.mxu0 %v1177
        %1427 = vmatpush1.bf16.msra.mxu0 %v1176
        %1428 = vmatprep.subr.bf16.mxu0 %v1181
        %1429 = vmatpush1.bf16.msra.mxu0 %v1180
        %1430 = vmatprep.subr.bf16.mxu0 %v1185
        %1431 = vmatpush1.bf16.msra.mxu0 %v1184
        %1432 = vmatprep.subr.bf16.mxu0 %v1189
        %1433 = vmatpush1.bf16.msra.mxu0 %v1188
        %1434 = vmatprep.subr.bf16.mxu0 %v1193
        %1435 = vmatpush1.bf16.msra.mxu0 %v1192
        %1436 = vmatprep.subr.bf16.mxu0 %v1197
        %1437 = vmatpush1.bf16.msra.mxu0 %v1196
        %1438 = vmatprep.subr.bf16.mxu0 %v1201
        %1439 = vmatpush1.bf16.msra.mxu0 %v1200
        %1440 = vmatprep.subr.bf16.mxu0 %v1205
        %1441 = vmatpush1.bf16.msra.mxu0 %v1204
        %1442 = vmatprep.subr.bf16.mxu0 %v1209
        %1443 = vmatpush1.bf16.msra.mxu0 %v1208
        %1444 = vmatprep.subr.bf16.mxu0 %v1213
        %1445 = vmatpush1.bf16.msra.mxu0 %v1212
        %1446 = vmatprep.subr.bf16.mxu0 %v1217
        %1447 = vmatpush1.bf16.msra.mxu0 %v1216
        %1448 = vmatprep.subr.bf16.mxu0 %v1221
        %1449 = vmatpush1.bf16.msra.mxu0 %v1220
        %1450 = vmatprep.subr.bf16.mxu0 %v1225
        %1451 = vmatpush1.bf16.msra.mxu0 %v1224
        %1452 = vmatprep.mubr.bf16.mxu0 %v761
        %1453 = vmatmul.mubr.bf16.gmra.mrb[0].mxu0 %v760
        %v1454 = vpop.f32.mrb[0].mxu0
        %v1455 = vadd.f32 %v767, %v1454
        %v1456 = vpop.f32.mrb[0].mxu0
        %v1457 = vadd.f32 %v771, %v1456
        %v1458 = vpop.f32.mrb[0].mxu0
        %v1459 = vpop.f32.mrb[0].mxu0
        %1460 = vdwg.mxu0
        %1461 = vmatprep.subr.bf16.mxu0 %v1229
        %1462 = vmatpush1.bf16.msra.mxu0 %v1228
        %1463 = vmatprep.subr.bf16.mxu0 %v1233
        %1464 = vmatpush1.bf16.msra.mxu0 %v1232
        %1465 = vmatprep.subr.bf16.mxu0 %v1237
        %1466 = vmatpush1.bf16.msra.mxu0 %v1236
        %1467 = vmatprep.subr.bf16.mxu0 %v1241
        %1468 = vmatpush1.bf16.msra.mxu0 %v1240
        %1469 = vmatprep.subr.bf16.mxu0 %v1245
        %1470 = vmatpush1.bf16.msra.mxu0 %v1244
        %1471 = vmatprep.subr.bf16.mxu0 %v1249
        %1472 = vmatpush1.bf16.msra.mxu0 %v1248
        %1473 = vmatprep.subr.bf16.mxu0 %v1253
        %1474 = vmatpush1.bf16.msra.mxu0 %v1252
        %1475 = vmatprep.subr.bf16.mxu0 %v1257
        %1476 = vmatpush1.bf16.msra.mxu0 %v1256
        %1477 = vmatprep.subr.bf16.mxu0 %v1261
        %1478 = vmatpush1.bf16.msra.mxu0 %v1260
        %1479 = vmatprep.subr.bf16.mxu0 %v1265
        %1480 = vmatpush1.bf16.msra.mxu0 %v1264
        %1481 = vmatprep.subr.bf16.mxu0 %v1269
        %1482 = vmatpush1.bf16.msra.mxu0 %v1268
        %1483 = vmatprep.subr.bf16.mxu0 %v1273
        %1484 = vmatpush1.bf16.msra.mxu0 %v1272
        %1485 = vmatprep.subr.bf16.mxu0 %v1277
        %1486 = vmatpush1.bf16.msra.mxu0 %v1276
        %1487 = vmatprep.subr.bf16.mxu0 %v1281
        %1488 = vmatpush1.bf16.msra.mxu0 %v1280
        %1489 = vmatprep.subr.bf16.mxu0 %v1285
        %1490 = vmatpush1.bf16.msra.mxu0 %v1284
        %1491 = vmatprep.subr.bf16.mxu0 %v1289
        %1492 = vmatpush1.bf16.msra.mxu0 %v1288
        %1493 = vmatprep.mubr.bf16.mxu0 %v763
        %1494 = vmatmul.mubr.bf16.gmra.mrb[0].mxu0 %v762
        %v1495 = vpop.f32.mrb[0].mxu0
        %v1496 = vadd.f32 %v1455, %v1495
        %v1497 = vpop.f32.mrb[0].mxu0
        %v1498 = vadd.f32 %v1457, %v1497
        %v1499 = vpop.f32.mrb[0].mxu0
        %v1500 = vpop.f32.mrb[0].mxu0
        %1501 = vdwg.mxu0
        %1502 = vmatprep.subr.bf16.mxu0 %v1167
        %1503 = vmatpush1.bf16.msra.mxu0 %v1166
        %1504 = vmatprep.subr.bf16.mxu0 %v1171
        %1505 = vmatpush1.bf16.msra.mxu0 %v1170
        %1506 = vmatprep.subr.bf16.mxu0 %v1175
        %1507 = vmatpush1.bf16.msra.mxu0 %v1174
        %1508 = vmatprep.subr.bf16.mxu0 %v1179
        %1509 = vmatpush1.bf16.msra.mxu0 %v1178
        %1510 = vmatprep.subr.bf16.mxu0 %v1183
        %1511 = vmatpush1.bf16.msra.mxu0 %v1182
        %1512 = vmatprep.subr.bf16.mxu0 %v1187
        %1513 = vmatpush1.bf16.msra.mxu0 %v1186
        %1514 = vmatprep.subr.bf16.mxu0 %v1191
        %1515 = vmatpush1.bf16.msra.mxu0 %v1190
        %1516 = vmatprep.subr.bf16.mxu0 %v1195
        %1517 = vmatpush1.bf16.msra.mxu0 %v1194
        %1518 = vmatprep.subr.bf16.mxu0 %v1199
        %1519 = vmatpush1.bf16.msra.mxu0 %v1198
        %1520 = vmatprep.subr.bf16.mxu0 %v1203
        %1521 = vmatpush1.bf16.msra.mxu0 %v1202
        %1522 = vmatprep.subr.bf16.mxu0 %v1207
        %1523 = vmatpush1.bf16.msra.mxu0 %v1206
        %1524 = vmatprep.subr.bf16.mxu0 %v1211
        %1525 = vmatpush1.bf16.msra.mxu0 %v1210
        %1526 = vmatprep.subr.bf16.mxu0 %v1215
        %1527 = vmatpush1.bf16.msra.mxu0 %v1214
        %1528 = vmatprep.subr.bf16.mxu0 %v1219
        %1529 = vmatpush1.bf16.msra.mxu0 %v1218
        %1530 = vmatprep.subr.bf16.mxu0 %v1223
        %1531 = vmatpush1.bf16.msra.mxu0 %v1222
        %1532 = vmatprep.subr.bf16.mxu0 %v1227
        %1533 = vmatpush1.bf16.msra.mxu0 %v1226
        %1534 = vmatprep.mubr.bf16.mxu0 %v761
        %1535 = vmatmul.mubr.bf16.gmra.mrb[0].mxu0 %v760
        %v1536 = vpop.f32.mrb[0].mxu0
        %v1537 = vadd.f32 %v775, %v1536
        %v1538 = vpop.f32.mrb[0].mxu0
        %v1539 = vadd.f32 %v779, %v1538
        %v1540 = vpop.f32.mrb[0].mxu0
        %v1541 = vpop.f32.mrb[0].mxu0
        %1542 = vdwg.mxu0
        %1543 = vmatprep.subr.bf16.mxu0 %v1231
        %1544 = vmatpush1.bf16.msra.mxu0 %v1230
        %1545 = vmatprep.subr.bf16.mxu0 %v1235
        %1546 = vmatpush1.bf16.msra.mxu0 %v1234
        %1547 = vmatprep.subr.bf16.mxu0 %v1239
        %1548 = vmatpush1.bf16.msra.mxu0 %v1238
        %1549 = vmatprep.subr.bf16.mxu0 %v1243
        %1550 = vmatpush1.bf16.msra.mxu0 %v1242
        %1551 = vmatprep.subr.bf16.mxu0 %v1247
        %1552 = vmatpush1.bf16.msra.mxu0 %v1246
        %1553 = vmatprep.subr.bf16.mxu0 %v1251
        %1554 = vmatpush1.bf16.msra.mxu0 %v1250
        %1555 = vmatprep.subr.bf16.mxu0 %v1255
        %1556 = vmatpush1.bf16.msra.mxu0 %v1254
        %1557 = vmatprep.subr.bf16.mxu0 %v1259
        %1558 = vmatpush1.bf16.msra.mxu0 %v1258
        %1559 = vmatprep.subr.bf16.mxu0 %v1263
        %1560 = vmatpush1.bf16.msra.mxu0 %v1262
        %1561 = vmatprep.subr.bf16.mxu0 %v1267
        %1562 = vmatpush1.bf16.msra.mxu0 %v1266
        %1563 = vmatprep.subr.bf16.mxu0 %v1271
        %1564 = vmatpush1.bf16.msra.mxu0 %v1270
        %1565 = vmatprep.subr.bf16.mxu0 %v1275
        %1566 = vmatpush1.bf16.msra.mxu0 %v1274
        %1567 = vmatprep.subr.bf16.mxu0 %v1279
        %1568 = vmatpush1.bf16.msra.mxu0 %v1278
        %1569 = vmatprep.subr.bf16.mxu0 %v1283
        %1570 = vmatpush1.bf16.msra.mxu0 %v1282
        %1571 = vmatprep.subr.bf16.mxu0 %v1287
        %1572 = vmatpush1.bf16.msra.mxu0 %v1286
        %1573 = vmatprep.subr.bf16.mxu0 %v1291
        %1574 = vmatpush1.bf16.msra.mxu0 %v1290
        %1575 = vmatprep.mubr.bf16.mxu0 %v763
        %1576 = vmatmul.mubr.bf16.gmra.mrb[0].mxu0 %v762
        %v1577 = vpop.f32.mrb[0].mxu0
        %v1578 = vadd.f32 %v1537, %v1577
        %v1579 = vpop.f32.mrb[0].mxu0
        %v1580 = vadd.f32 %v1539, %v1579
        %v1581 = vpop.f32.mrb[0].mxu0
        %v1582 = vpop.f32.mrb[0].mxu0
        %1583 = vdwg.mxu0
        %v1584 = vadd.f32 %v1496, %v1498
        %v1585 = vadd.f32 %v1584, %v1578
        %v1586 = vadd.f32 %v1585, %v1580
        %1587 = vadd.xlane.f32.xlu0 %v1586
        %v1588 = vpop.xlane.xlu0 %1587
        %v1589 = vrcp.pop 512.0
        %v1590 = vmul.f32 %v1588, %v1589
        %v1591 = vmul.f32 %v1496, %v1496
        %v1592 = vmul.f32 %v1498, %v1498
        %v1593 = vmul.f32 %v1578, %v1578
        %v1594 = vmul.f32 %v1580, %v1580
        %v1595 = vadd.f32 %v1591, %v1592
        %v1596 = vadd.f32 %v1595, %v1593
        %v1597 = vadd.f32 %v1596, %v1594
        %1598 = vadd.xlane.f32.xlu0 %v1597
        %v1599 = vpop.xlane.xlu0 %1598
        %v1600 = vmul.f32 %v1599, %v1589
        %v1601 = vmul.f32 %v1590, %v1590
        %v1602 = vsub.f32 %v1600, %v1601
        %v1603 = vmax.f32 %v1602, 0.0
        %v1604 = vsub.f32 %v1496, %v1590
        %v1605 = vsub.f32 %v1498, %v1590
        %v1606 = vsub.f32 %v1578, %v1590
        %v1607 = vsub.f32 %v1580, %v1590
        %v1608 = vadd.f32 %v1603, 1e-05
        %v1609 = vrsqrt.pop %v1608
        %v1610 = vmul.f32 %v1604, %v1609
        %v1611 = vmul.f32 %v1605, %v1609
        %v1612 = vmul.f32 %v1606, %v1609
        %v1613 = vmul.f32 %v1607, %v1609
        %v1614 = vlaneseq
        %v1615 = vshrl.u32 %v1614, 7
        %v1616 = vsub.s32 1, %v1615
        %v1617 = vrot.slane %v366, %v1616
        %v1618 = vlaneseq
        %v1619 = vshrl.u32 %v1618, 7
        %v1620 = vsub.s32 1, %v1619
        %v1621 = vrot.slane %v367, %v1620
        %v1622 = vlaneseq
        %v1623 = vshrl.u32 %v1622, 7
        %v1624 = vsub.s32 1, %v1623
        %v1625 = vrot.slane %v368, %v1624
        %v1626 = vlaneseq
        %v1627 = vshrl.u32 %v1626, 7
        %v1628 = vsub.s32 1, %v1627
        %v1629 = vrot.slane %v369, %v1628
        %v1630 = vmul.f32 %v1610, %v1617
        %v1631 = vmul.f32 %v1611, %v1621
        %v1632 = vmul.f32 %v1612, %v1625
        %v1633 = vmul.f32 %v1613, %v1629
        %v1634 = vlaneseq
        %v1635 = vshrl.u32 %v1634, 7
        %v1636 = vsub.s32 2, %v1635
        %v1637 = vrot.slane %v366, %v1636
        %v1638 = vlaneseq
        %v1639 = vshrl.u32 %v1638, 7
        %v1640 = vsub.s32 2, %v1639
        %v1641 = vrot.slane %v367, %v1640
        %v1642 = vlaneseq
        %v1643 = vshrl.u32 %v1642, 7
        %v1644 = vsub.s32 2, %v1643
        %v1645 = vrot.slane %v368, %v1644
        %v1646 = vlaneseq
        %v1647 = vshrl.u32 %v1646, 7
        %v1648 = vsub.s32 2, %v1647
        %v1649 = vrot.slane %v369, %v1648
        %v1650 = vadd.f32 %v1630, %v1637
        %v1651 = vadd.f32 %v1631, %v1641
        %v1652 = vadd.f32 %v1632, %v1645
        %v1653 = vadd.f32 %v1633, %v1649
        %v1654 = vmax.f32 %v1650, 0.0
        %v1655 = vmax.f32 %v1651, 0.0
        %v1656 = vmax.f32 %v1652, 0.0
        %v1657 = vmax.f32 %v1653, 0.0
        %v1658 = vpack.c.bf16 %v1654, %v1654
        %v1659 = vpack.c.bf16 %v1655, %v1655
        %v1660 = vpack.c.bf16 %v1656, %v1656
        %v1661 = vpack.c.bf16 %v1657, %v1657
        %v1662 = vlaneseq
        %v1663 = vshrl.u32 %v1662, 7
        %v1664 = vsub.s32 0, %v1663
        %v1665 = vrot.slane %v370, %v1664
        %v1666 = vlaneseq
        %v1667 = vshrl.u32 %v1666, 7
        %v1668 = vsub.s32 0, %v1667
        %v1669 = vrot.slane %v371, %v1668
        %v1734 = vunpack.c.l.b16 %v500
        %v1735 = vunpack.c.h.b16 %v500
        %v1736 = vunpack.c.l.b16 %v501
        %v1737 = vunpack.c.h.b16 %v501
        %v1738 = vunpack.c.l.b16 %v502
        %v1739 = vunpack.c.h.b16 %v502
        %v1740 = vunpack.c.l.b16 %v503
        %v1741 = vunpack.c.h.b16 %v503
        %v1742 = vunpack.c.l.b16 %v504
        %v1743 = vunpack.c.h.b16 %v504
        %v1744 = vunpack.c.l.b16 %v505
        %v1745 = vunpack.c.h.b16 %v505
        %v1746 = vunpack.c.l.b16 %v506
        %v1747 = vunpack.c.h.b16 %v506
        %v1748 = vunpack.c.l.b16 %v507
        %v1749 = vunpack.c.h.b16 %v507
        %v1750 = vunpack.c.l.b16 %v508
        %v1751 = vunpack.c.h.b16 %v508
        %v1752 = vunpack.c.l.b16 %v509
        %v1753 = vunpack.c.h.b16 %v509
        %v1754 = vunpack.c.l.b16 %v510
        %v1755 = vunpack.c.h.b16 %v510
        %v1756 = vunpack.c.l.b16 %v511
        %v1757 = vunpack.c.h.b16 %v511
        %v1758 = vunpack.c.l.b16 %v512
        %v1759 = vunpack.c.h.b16 %v512
        %v1760 = vunpack.c.l.b16 %v513
        %v1761 = vunpack.c.h.b16 %v513
        %v1762 = vunpack.c.l.b16 %v514
        %v1763 = vunpack.c.h.b16 %v514
        %v1764 = vunpack.c.l.b16 %v515
        %v1765 = vunpack.c.h.b16 %v515
        %v1766 = vunpack.c.l.b16 %v516
        %v1767 = vunpack.c.h.b16 %v516
        %v1768 = vunpack.c.l.b16 %v517
        %v1769 = vunpack.c.h.b16 %v517
        %v1770 = vunpack.c.l.b16 %v518
        %v1771 = vunpack.c.h.b16 %v518
        %v1772 = vunpack.c.l.b16 %v519
        %v1773 = vunpack.c.h.b16 %v519
        %v1774 = vunpack.c.l.b16 %v520
        %v1775 = vunpack.c.h.b16 %v520
        %v1776 = vunpack.c.l.b16 %v521
        %v1777 = vunpack.c.h.b16 %v521
        %v1778 = vunpack.c.l.b16 %v522
        %v1779 = vunpack.c.h.b16 %v522
        %v1780 = vunpack.c.l.b16 %v523
        %v1781 = vunpack.c.h.b16 %v523
        %v1782 = vunpack.c.l.b16 %v524
        %v1783 = vunpack.c.h.b16 %v524
        %v1784 = vunpack.c.l.b16 %v525
        %v1785 = vunpack.c.h.b16 %v525
        %v1786 = vunpack.c.l.b16 %v526
        %v1787 = vunpack.c.h.b16 %v526
        %v1788 = vunpack.c.l.b16 %v527
        %v1789 = vunpack.c.h.b16 %v527
        %v1790 = vunpack.c.l.b16 %v528
        %v1791 = vunpack.c.h.b16 %v528
        %v1792 = vunpack.c.l.b16 %v529
        %v1793 = vunpack.c.h.b16 %v529
        %v1794 = vunpack.c.l.b16 %v530
        %v1795 = vunpack.c.h.b16 %v530
        %v1796 = vunpack.c.l.b16 %v531
        %v1797 = vunpack.c.h.b16 %v531
        %v1798 = vunpack.c.l.b16 %v532
        %v1799 = vunpack.c.h.b16 %v532
        %v1800 = vunpack.c.l.b16 %v533
        %v1801 = vunpack.c.h.b16 %v533
        %v1802 = vunpack.c.l.b16 %v534
        %v1803 = vunpack.c.h.b16 %v534
        %v1804 = vunpack.c.l.b16 %v535
        %v1805 = vunpack.c.h.b16 %v535
        %v1806 = vunpack.c.l.b16 %v536
        %v1807 = vunpack.c.h.b16 %v536
        %v1808 = vunpack.c.l.b16 %v537
        %v1809 = vunpack.c.h.b16 %v537
        %v1810 = vunpack.c.l.b16 %v538
        %v1811 = vunpack.c.h.b16 %v538
        %v1812 = vunpack.c.l.b16 %v539
        %v1813 = vunpack.c.h.b16 %v539
        %v1814 = vunpack.c.l.b16 %v540
        %v1815 = vunpack.c.h.b16 %v540
        %v1816 = vunpack.c.l.b16 %v541
        %v1817 = vunpack.c.h.b16 %v541
        %v1818 = vunpack.c.l.b16 %v542
        %v1819 = vunpack.c.h.b16 %v542
        %v1820 = vunpack.c.l.b16 %v543
        %v1821 = vunpack.c.h.b16 %v543
        %v1822 = vunpack.c.l.b16 %v544
        %v1823 = vunpack.c.h.b16 %v544
        %v1824 = vunpack.c.l.b16 %v545
        %v1825 = vunpack.c.h.b16 %v545
        %v1826 = vunpack.c.l.b16 %v546
        %v1827 = vunpack.c.h.b16 %v546
        %v1828 = vunpack.c.l.b16 %v547
        %v1829 = vunpack.c.h.b16 %v547
        %v1830 = vunpack.c.l.b16 %v548
        %v1831 = vunpack.c.h.b16 %v548
        %v1832 = vunpack.c.l.b16 %v549
        %v1833 = vunpack.c.h.b16 %v549
        %v1834 = vunpack.c.l.b16 %v550
        %v1835 = vunpack.c.h.b16 %v550
        %v1836 = vunpack.c.l.b16 %v551
        %v1837 = vunpack.c.h.b16 %v551
        %v1838 = vunpack.c.l.b16 %v552
        %v1839 = vunpack.c.h.b16 %v552
        %v1840 = vunpack.c.l.b16 %v553
        %v1841 = vunpack.c.h.b16 %v553
        %v1842 = vunpack.c.l.b16 %v554
        %v1843 = vunpack.c.h.b16 %v554
        %v1844 = vunpack.c.l.b16 %v555
        %v1845 = vunpack.c.h.b16 %v555
        %v1846 = vunpack.c.l.b16 %v556
        %v1847 = vunpack.c.h.b16 %v556
        %v1848 = vunpack.c.l.b16 %v557
        %v1849 = vunpack.c.h.b16 %v557
        %v1850 = vunpack.c.l.b16 %v558
        %v1851 = vunpack.c.h.b16 %v558
        %v1852 = vunpack.c.l.b16 %v559
        %v1853 = vunpack.c.h.b16 %v559
        %v1854 = vunpack.c.l.b16 %v560
        %v1855 = vunpack.c.h.b16 %v560
        %v1856 = vunpack.c.l.b16 %v561
        %v1857 = vunpack.c.h.b16 %v561
        %v1858 = vunpack.c.l.b16 %v562
        %v1859 = vunpack.c.h.b16 %v562
        %v1860 = vunpack.c.l.b16 %v563
        %v1861 = vunpack.c.h.b16 %v563
        %v1862 = vpack.c.b16 %v1736, %v1734
        %v1863 = vpack.c.b16 %v1737, %v1735
        %v1864 = vpack.c.b16 %v1740, %v1738
        %v1865 = vpack.c.b16 %v1741, %v1739
        %v1866 = vpack.c.b16 %v1744, %v1742
        %v1867 = vpack.c.b16 %v1745, %v1743
        %v1868 = vpack.c.b16 %v1748, %v1746
        %v1869 = vpack.c.b16 %v1749, %v1747
        %v1870 = vpack.c.b16 %v1752, %v1750
        %v1871 = vpack.c.b16 %v1753, %v1751
        %v1872 = vpack.c.b16 %v1756, %v1754
        %v1873 = vpack.c.b16 %v1757, %v1755
        %v1874 = vpack.c.b16 %v1760, %v1758
        %v1875 = vpack.c.b16 %v1761, %v1759
        %v1876 = vpack.c.b16 %v1764, %v1762
        %v1877 = vpack.c.b16 %v1765, %v1763
        %v1878 = vpack.c.b16 %v1768, %v1766
        %v1879 = vpack.c.b16 %v1769, %v1767
        %v1880 = vpack.c.b16 %v1772, %v1770
        %v1881 = vpack.c.b16 %v1773, %v1771
        %v1882 = vpack.c.b16 %v1776, %v1774
        %v1883 = vpack.c.b16 %v1777, %v1775
        %v1884 = vpack.c.b16 %v1780, %v1778
        %v1885 = vpack.c.b16 %v1781, %v1779
        %v1886 = vpack.c.b16 %v1784, %v1782
        %v1887 = vpack.c.b16 %v1785, %v1783
        %v1888 = vpack.c.b16 %v1788, %v1786
        %v1889 = vpack.c.b16 %v1789, %v1787
        %v1890 = vpack.c.b16 %v1792, %v1790
        %v1891 = vpack.c.b16 %v1793, %v1791
        %v1892 = vpack.c.b16 %v1796, %v1794
        %v1893 = vpack.c.b16 %v1797, %v1795
        %v1894 = vpack.c.b16 %v1800, %v1798
        %v1895 = vpack.c.b16 %v1801, %v1799
        %v1896 = vpack.c.b16 %v1804, %v1802
        %v1897 = vpack.c.b16 %v1805, %v1803
        %v1898 = vpack.c.b16 %v1808, %v1806
        %v1899 = vpack.c.b16 %v1809, %v1807
        %v1900 = vpack.c.b16 %v1812, %v1810
        %v1901 = vpack.c.b16 %v1813, %v1811
        %v1902 = vpack.c.b16 %v1816, %v1814
        %v1903 = vpack.c.b16 %v1817, %v1815
        %v1904 = vpack.c.b16 %v1820, %v1818
        %v1905 = vpack.c.b16 %v1821, %v1819
        %v1906 = vpack.c.b16 %v1824, %v1822
        %v1907 = vpack.c.b16 %v1825, %v1823
        %v1908 = vpack.c.b16 %v1828, %v1826
        %v1909 = vpack.c.b16 %v1829, %v1827
        %v1910 = vpack.c.b16 %v1832, %v1830
        %v1911 = vpack.c.b16 %v1833, %v1831
        %v1912 = vpack.c.b16 %v1836, %v1834
        %v1913 = vpack.c.b16 %v1837, %v1835
        %v1914 = vpack.c.b16 %v1840, %v1838
        %v1915 = vpack.c.b16 %v1841, %v1839
        %v1916 = vpack.c.b16 %v1844, %v1842
        %v1917 = vpack.c.b16 %v1845, %v1843
        %v1918 = vpack.c.b16 %v1848, %v1846
        %v1919 = vpack.c.b16 %v1849, %v1847
        %v1920 = vpack.c.b16 %v1852, %v1850
        %v1921 = vpack.c.b16 %v1853, %v1851
        %v1922 = vpack.c.b16 %v1856, %v1854
        %v1923 = vpack.c.b16 %v1857, %v1855
        %v1924 = vpack.c.b16 %v1860, %v1858
        %v1925 = vpack.c.b16 %v1861, %v1859
        %1990 = vmatprep.subr.bf16.mxu0 %v1863
        %1991 = vmatpush1.bf16.msra.mxu0 %v1862
        %1992 = vmatprep.subr.bf16.mxu0 %v1865
        %1993 = vmatpush1.bf16.msra.mxu0 %v1864
        %1994 = vmatprep.subr.bf16.mxu0 %v1867
        %1995 = vmatpush1.bf16.msra.mxu0 %v1866
        %1996 = vmatprep.subr.bf16.mxu0 %v1869
        %1997 = vmatpush1.bf16.msra.mxu0 %v1868
        %1998 = vmatprep.subr.bf16.mxu0 %v1871
        %1999 = vmatpush1.bf16.msra.mxu0 %v1870
        %2000 = vmatprep.subr.bf16.mxu0 %v1873
        %2001 = vmatpush1.bf16.msra.mxu0 %v1872
        %2002 = vmatprep.subr.bf16.mxu0 %v1875
        %2003 = vmatpush1.bf16.msra.mxu0 %v1874
        %2004 = vmatprep.subr.bf16.mxu0 %v1877
        %2005 = vmatpush1.bf16.msra.mxu0 %v1876
        %2006 = vmatprep.subr.bf16.mxu0 %v1879
        %2007 = vmatpush1.bf16.msra.mxu0 %v1878
        %2008 = vmatprep.subr.bf16.mxu0 %v1881
        %2009 = vmatpush1.bf16.msra.mxu0 %v1880
        %2010 = vmatprep.subr.bf16.mxu0 %v1883
        %2011 = vmatpush1.bf16.msra.mxu0 %v1882
        %2012 = vmatprep.subr.bf16.mxu0 %v1885
        %2013 = vmatpush1.bf16.msra.mxu0 %v1884
        %2014 = vmatprep.subr.bf16.mxu0 %v1887
        %2015 = vmatpush1.bf16.msra.mxu0 %v1886
        %2016 = vmatprep.subr.bf16.mxu0 %v1889
        %2017 = vmatpush1.bf16.msra.mxu0 %v1888
        %2018 = vmatprep.subr.bf16.mxu0 %v1891
        %2019 = vmatpush1.bf16.msra.mxu0 %v1890
        %2020 = vmatprep.subr.bf16.mxu0 %v1893
        %2021 = vmatpush1.bf16.msra.mxu0 %v1892
        %2022 = vmatprep.mubr.bf16.mxu0 %v1659
        %2023 = vmatmul.mubr.bf16.gmra.mrb[0].mxu0 %v1658
        %v2024 = vpop.f32.mrb[0].mxu0
        %v2025 = vadd.f32 %v1665, %v2024
        %v2026 = vpop.f32.mrb[0].mxu0
        %v2027 = vadd.f32 %v1669, %v2026
        %v2028 = vpop.f32.mrb[0].mxu0
        %v2029 = vpop.f32.mrb[0].mxu0
        %2030 = vdwg.mxu0
        %2031 = vmatprep.subr.bf16.mxu0 %v1895
        %2032 = vmatpush1.bf16.msra.mxu0 %v1894
        %2033 = vmatprep.subr.bf16.mxu0 %v1897
        %2034 = vmatpush1.bf16.msra.mxu0 %v1896
        %2035 = vmatprep.subr.bf16.mxu0 %v1899
        %2036 = vmatpush1.bf16.msra.mxu0 %v1898
        %2037 = vmatprep.subr.bf16.mxu0 %v1901
        %2038 = vmatpush1.bf16.msra.mxu0 %v1900
        %2039 = vmatprep.subr.bf16.mxu0 %v1903
        %2040 = vmatpush1.bf16.msra.mxu0 %v1902
        %2041 = vmatprep.subr.bf16.mxu0 %v1905
        %2042 = vmatpush1.bf16.msra.mxu0 %v1904
        %2043 = vmatprep.subr.bf16.mxu0 %v1907
        %2044 = vmatpush1.bf16.msra.mxu0 %v1906
        %2045 = vmatprep.subr.bf16.mxu0 %v1909
        %2046 = vmatpush1.bf16.msra.mxu0 %v1908
        %2047 = vmatprep.subr.bf16.mxu0 %v1911
        %2048 = vmatpush1.bf16.msra.mxu0 %v1910
        %2049 = vmatprep.subr.bf16.mxu0 %v1913
        %2050 = vmatpush1.bf16.msra.mxu0 %v1912
        %2051 = vmatprep.subr.bf16.mxu0 %v1915
        %2052 = vmatpush1.bf16.msra.mxu0 %v1914
        %2053 = vmatprep.subr.bf16.mxu0 %v1917
        %2054 = vmatpush1.bf16.msra.mxu0 %v1916
        %2055 = vmatprep.subr.bf16.mxu0 %v1919
        %2056 = vmatpush1.bf16.msra.mxu0 %v1918
        %2057 = vmatprep.subr.bf16.mxu0 %v1921
        %2058 = vmatpush1.bf16.msra.mxu0 %v1920
        %2059 = vmatprep.subr.bf16.mxu0 %v1923
        %2060 = vmatpush1.bf16.msra.mxu0 %v1922
        %2061 = vmatprep.subr.bf16.mxu0 %v1925
        %2062 = vmatpush1.bf16.msra.mxu0 %v1924
        %2063 = vmatprep.mubr.bf16.mxu0 %v1661
        %2064 = vmatmul.mubr.bf16.gmra.mrb[0].mxu0 %v1660
        %v2065 = vpop.f32.mrb[0].mxu0
        %v2066 = vadd.f32 %v2025, %v2065
        %v2067 = vpop.f32.mrb[0].mxu0
        %v2068 = vadd.f32 %v2027, %v2067
        %v2069 = vpop.f32.mrb[0].mxu0
        %v2070 = vpop.f32.mrb[0].mxu0
        %2071 = vdwg.mxu0
        %v2072 = vadd.f32 %v2066, %v2068
        %2073 = vadd.xlane.f32.xlu0 %v2072
        %v2074 = vpop.xlane.xlu0 %2073
        %v2075 = vrcp.pop 256.0
        %v2076 = vmul.f32 %v2074, %v2075
        %v2077 = vmul.f32 %v2066, %v2066
        %v2078 = vmul.f32 %v2068, %v2068
        %v2079 = vadd.f32 %v2077, %v2078
        %2080 = vadd.xlane.f32.xlu0 %v2079
        %v2081 = vpop.xlane.xlu0 %2080
        %v2082 = vmul.f32 %v2081, %v2075
        %v2083 = vmul.f32 %v2076, %v2076
        %v2084 = vsub.f32 %v2082, %v2083
        %v2085 = vmax.f32 %v2084, 0.0
        %v2086 = vsub.f32 %v2066, %v2076
        %v2087 = vsub.f32 %v2068, %v2076
        %v2088 = vadd.f32 %v2085, 1e-05
        %v2089 = vrsqrt.pop %v2088
        %v2090 = vmul.f32 %v2086, %v2089
        %v2091 = vmul.f32 %v2087, %v2089
        %v2092 = vlaneseq
        %v2093 = vshrl.u32 %v2092, 7
        %v2094 = vsub.s32 1, %v2093
        %v2095 = vrot.slane %v370, %v2094
        %v2096 = vlaneseq
        %v2097 = vshrl.u32 %v2096, 7
        %v2098 = vsub.s32 1, %v2097
        %v2099 = vrot.slane %v371, %v2098
        %v2100 = vmul.f32 %v2090, %v2095
        %v2101 = vmul.f32 %v2091, %v2099
        %v2102 = vlaneseq
        %v2103 = vshrl.u32 %v2102, 7
        %v2104 = vsub.s32 2, %v2103
        %v2105 = vrot.slane %v370, %v2104
        %v2106 = vlaneseq
        %v2107 = vshrl.u32 %v2106, 7
        %v2108 = vsub.s32 2, %v2107
        %v2109 = vrot.slane %v371, %v2108
        %v2110 = vadd.f32 %v2100, %v2105
        %v2111 = vadd.f32 %v2101, %v2109
        %v2112 = vmax.f32 %v2110, 0.0
        %v2113 = vmax.f32 %v2111, 0.0
        %v2114 = vadd.f32 %v2112, %v2113
        %2115 = vadd.xlane.f32.xlu0 %v2114
        %v2116 = vpop.xlane.xlu0 %2115
        %v2117 = vmul.f32 %v2116, %v2075
        %v2118 = vadd.f32 %v2112, %v2117
        %v2119 = vadd.f32 %v2113, %v2117
        %v2120 = vpack.c.bf16 %v2118, %v2118
        %v2121 = vpack.c.bf16 %v2119, %v2119
        %v2122 = vlaneseq
        %v2123 = vshrl.u32 %v2122, 7
        %v2124 = vsub.s32 3, %v2123
        %v2125 = vrot.slane %v366, %v2124
        %v2126 = vlaneseq
        %v2127 = vshrl.u32 %v2126, 7
        %v2128 = vsub.s32 3, %v2127
        %v2129 = vrot.slane %v367, %v2128
        %v2130 = vlaneseq
        %v2131 = vshrl.u32 %v2130, 7
        %v2132 = vsub.s32 3, %v2131
        %v2133 = vrot.slane %v368, %v2132
        %v2134 = vlaneseq
        %v2135 = vshrl.u32 %v2134, 7
        %v2136 = vsub.s32 3, %v2135
        %v2137 = vrot.slane %v369, %v2136
        %v2202 = vunpack.c.l.b16 %v564
        %v2203 = vunpack.c.h.b16 %v564
        %v2204 = vunpack.c.l.b16 %v565
        %v2205 = vunpack.c.h.b16 %v565
        %v2206 = vunpack.c.l.b16 %v566
        %v2207 = vunpack.c.h.b16 %v566
        %v2208 = vunpack.c.l.b16 %v567
        %v2209 = vunpack.c.h.b16 %v567
        %v2210 = vunpack.c.l.b16 %v568
        %v2211 = vunpack.c.h.b16 %v568
        %v2212 = vunpack.c.l.b16 %v569
        %v2213 = vunpack.c.h.b16 %v569
        %v2214 = vunpack.c.l.b16 %v570
        %v2215 = vunpack.c.h.b16 %v570
        %v2216 = vunpack.c.l.b16 %v571
        %v2217 = vunpack.c.h.b16 %v571
        %v2218 = vunpack.c.l.b16 %v572
        %v2219 = vunpack.c.h.b16 %v572
        %v2220 = vunpack.c.l.b16 %v573
        %v2221 = vunpack.c.h.b16 %v573
        %v2222 = vunpack.c.l.b16 %v574
        %v2223 = vunpack.c.h.b16 %v574
        %v2224 = vunpack.c.l.b16 %v575
        %v2225 = vunpack.c.h.b16 %v575
        %v2226 = vunpack.c.l.b16 %v576
        %v2227 = vunpack.c.h.b16 %v576
        %v2228 = vunpack.c.l.b16 %v577
        %v2229 = vunpack.c.h.b16 %v577
        %v2230 = vunpack.c.l.b16 %v578
        %v2231 = vunpack.c.h.b16 %v578
        %v2232 = vunpack.c.l.b16 %v579
        %v2233 = vunpack.c.h.b16 %v579
        %v2234 = vunpack.c.l.b16 %v580
        %v2235 = vunpack.c.h.b16 %v580
        %v2236 = vunpack.c.l.b16 %v581
        %v2237 = vunpack.c.h.b16 %v581
        %v2238 = vunpack.c.l.b16 %v582
        %v2239 = vunpack.c.h.b16 %v582
        %v2240 = vunpack.c.l.b16 %v583
        %v2241 = vunpack.c.h.b16 %v583
        %v2242 = vunpack.c.l.b16 %v584
        %v2243 = vunpack.c.h.b16 %v584
        %v2244 = vunpack.c.l.b16 %v585
        %v2245 = vunpack.c.h.b16 %v585
        %v2246 = vunpack.c.l.b16 %v586
        %v2247 = vunpack.c.h.b16 %v586
        %v2248 = vunpack.c.l.b16 %v587
        %v2249 = vunpack.c.h.b16 %v587
        %v2250 = vunpack.c.l.b16 %v588
        %v2251 = vunpack.c.h.b16 %v588
        %v2252 = vunpack.c.l.b16 %v589
        %v2253 = vunpack.c.h.b16 %v589
        %v2254 = vunpack.c.l.b16 %v590
        %v2255 = vunpack.c.h.b16 %v590
        %v2256 = vunpack.c.l.b16 %v591
        %v2257 = vunpack.c.h.b16 %v591
        %v2258 = vunpack.c.l.b16 %v592
        %v2259 = vunpack.c.h.b16 %v592
        %v2260 = vunpack.c.l.b16 %v593
        %v2261 = vunpack.c.h.b16 %v593
        %v2262 = vunpack.c.l.b16 %v594
        %v2263 = vunpack.c.h.b16 %v594
        %v2264 = vunpack.c.l.b16 %v595
        %v2265 = vunpack.c.h.b16 %v595
        %v2266 = vunpack.c.l.b16 %v596
        %v2267 = vunpack.c.h.b16 %v596
        %v2268 = vunpack.c.l.b16 %v597
        %v2269 = vunpack.c.h.b16 %v597
        %v2270 = vunpack.c.l.b16 %v598
        %v2271 = vunpack.c.h.b16 %v598
        %v2272 = vunpack.c.l.b16 %v599
        %v2273 = vunpack.c.h.b16 %v599
        %v2274 = vunpack.c.l.b16 %v600
        %v2275 = vunpack.c.h.b16 %v600
        %v2276 = vunpack.c.l.b16 %v601
        %v2277 = vunpack.c.h.b16 %v601
        %v2278 = vunpack.c.l.b16 %v602
        %v2279 = vunpack.c.h.b16 %v602
        %v2280 = vunpack.c.l.b16 %v603
        %v2281 = vunpack.c.h.b16 %v603
        %v2282 = vunpack.c.l.b16 %v604
        %v2283 = vunpack.c.h.b16 %v604
        %v2284 = vunpack.c.l.b16 %v605
        %v2285 = vunpack.c.h.b16 %v605
        %v2286 = vunpack.c.l.b16 %v606
        %v2287 = vunpack.c.h.b16 %v606
        %v2288 = vunpack.c.l.b16 %v607
        %v2289 = vunpack.c.h.b16 %v607
        %v2290 = vunpack.c.l.b16 %v608
        %v2291 = vunpack.c.h.b16 %v608
        %v2292 = vunpack.c.l.b16 %v609
        %v2293 = vunpack.c.h.b16 %v609
        %v2294 = vunpack.c.l.b16 %v610
        %v2295 = vunpack.c.h.b16 %v610
        %v2296 = vunpack.c.l.b16 %v611
        %v2297 = vunpack.c.h.b16 %v611
        %v2298 = vunpack.c.l.b16 %v612
        %v2299 = vunpack.c.h.b16 %v612
        %v2300 = vunpack.c.l.b16 %v613
        %v2301 = vunpack.c.h.b16 %v613
        %v2302 = vunpack.c.l.b16 %v614
        %v2303 = vunpack.c.h.b16 %v614
        %v2304 = vunpack.c.l.b16 %v615
        %v2305 = vunpack.c.h.b16 %v615
        %v2306 = vunpack.c.l.b16 %v616
        %v2307 = vunpack.c.h.b16 %v616
        %v2308 = vunpack.c.l.b16 %v617
        %v2309 = vunpack.c.h.b16 %v617
        %v2310 = vunpack.c.l.b16 %v618
        %v2311 = vunpack.c.h.b16 %v618
        %v2312 = vunpack.c.l.b16 %v619
        %v2313 = vunpack.c.h.b16 %v619
        %v2314 = vunpack.c.l.b16 %v620
        %v2315 = vunpack.c.h.b16 %v620
        %v2316 = vunpack.c.l.b16 %v621
        %v2317 = vunpack.c.h.b16 %v621
        %v2318 = vunpack.c.l.b16 %v622
        %v2319 = vunpack.c.h.b16 %v622
        %v2320 = vunpack.c.l.b16 %v623
        %v2321 = vunpack.c.h.b16 %v623
        %v2322 = vunpack.c.l.b16 %v624
        %v2323 = vunpack.c.h.b16 %v624
        %v2324 = vunpack.c.l.b16 %v625
        %v2325 = vunpack.c.h.b16 %v625
        %v2326 = vunpack.c.l.b16 %v626
        %v2327 = vunpack.c.h.b16 %v626
        %v2328 = vunpack.c.l.b16 %v627
        %v2329 = vunpack.c.h.b16 %v627
        %v2330 = vpack.c.b16 %v2206, %v2202
        %v2331 = vpack.c.b16 %v2207, %v2203
        %v2332 = vpack.c.b16 %v2208, %v2204
        %v2333 = vpack.c.b16 %v2209, %v2205
        %v2334 = vpack.c.b16 %v2214, %v2210
        %v2335 = vpack.c.b16 %v2215, %v2211
        %v2336 = vpack.c.b16 %v2216, %v2212
        %v2337 = vpack.c.b16 %v2217, %v2213
        %v2338 = vpack.c.b16 %v2222, %v2218
        %v2339 = vpack.c.b16 %v2223, %v2219
        %v2340 = vpack.c.b16 %v2224, %v2220
        %v2341 = vpack.c.b16 %v2225, %v2221
        %v2342 = vpack.c.b16 %v2230, %v2226
        %v2343 = vpack.c.b16 %v2231, %v2227
        %v2344 = vpack.c.b16 %v2232, %v2228
        %v2345 = vpack.c.b16 %v2233, %v2229
        %v2346 = vpack.c.b16 %v2238, %v2234
        %v2347 = vpack.c.b16 %v2239, %v2235
        %v2348 = vpack.c.b16 %v2240, %v2236
        %v2349 = vpack.c.b16 %v2241, %v2237
        %v2350 = vpack.c.b16 %v2246, %v2242
        %v2351 = vpack.c.b16 %v2247, %v2243
        %v2352 = vpack.c.b16 %v2248, %v2244
        %v2353 = vpack.c.b16 %v2249, %v2245
        %v2354 = vpack.c.b16 %v2254, %v2250
        %v2355 = vpack.c.b16 %v2255, %v2251
        %v2356 = vpack.c.b16 %v2256, %v2252
        %v2357 = vpack.c.b16 %v2257, %v2253
        %v2358 = vpack.c.b16 %v2262, %v2258
        %v2359 = vpack.c.b16 %v2263, %v2259
        %v2360 = vpack.c.b16 %v2264, %v2260
        %v2361 = vpack.c.b16 %v2265, %v2261
        %v2362 = vpack.c.b16 %v2270, %v2266
        %v2363 = vpack.c.b16 %v2271, %v2267
        %v2364 = vpack.c.b16 %v2272, %v2268
        %v2365 = vpack.c.b16 %v2273, %v2269
        %v2366 = vpack.c.b16 %v2278, %v2274
        %v2367 = vpack.c.b16 %v2279, %v2275
        %v2368 = vpack.c.b16 %v2280, %v2276
        %v2369 = vpack.c.b16 %v2281, %v2277
        %v2370 = vpack.c.b16 %v2286, %v2282
        %v2371 = vpack.c.b16 %v2287, %v2283
        %v2372 = vpack.c.b16 %v2288, %v2284
        %v2373 = vpack.c.b16 %v2289, %v2285
        %v2374 = vpack.c.b16 %v2294, %v2290
        %v2375 = vpack.c.b16 %v2295, %v2291
        %v2376 = vpack.c.b16 %v2296, %v2292
        %v2377 = vpack.c.b16 %v2297, %v2293
        %v2378 = vpack.c.b16 %v2302, %v2298
        %v2379 = vpack.c.b16 %v2303, %v2299
        %v2380 = vpack.c.b16 %v2304, %v2300
        %v2381 = vpack.c.b16 %v2305, %v2301
        %v2382 = vpack.c.b16 %v2310, %v2306
        %v2383 = vpack.c.b16 %v2311, %v2307
        %v2384 = vpack.c.b16 %v2312, %v2308
        %v2385 = vpack.c.b16 %v2313, %v2309
        %v2386 = vpack.c.b16 %v2318, %v2314
        %v2387 = vpack.c.b16 %v2319, %v2315
        %v2388 = vpack.c.b16 %v2320, %v2316
        %v2389 = vpack.c.b16 %v2321, %v2317
        %v2390 = vpack.c.b16 %v2326, %v2322
        %v2391 = vpack.c.b16 %v2327, %v2323
        %v2392 = vpack.c.b16 %v2328, %v2324
        %v2393 = vpack.c.b16 %v2329, %v2325
        %2458 = vmatprep.subr.bf16.mxu0 %v2331
        %2459 = vmatpush1.bf16.msra.mxu0 %v2330
        %2460 = vmatprep.subr.bf16.mxu0 %v2335
        %2461 = vmatpush1.bf16.msra.mxu0 %v2334
        %2462 = vmatprep.subr.bf16.mxu0 %v2339
        %2463 = vmatpush1.bf16.msra.mxu0 %v2338
        %2464 = vmatprep.subr.bf16.mxu0 %v2343
        %2465 = vmatpush1.bf16.msra.mxu0 %v2342
        %2466 = vmatprep.subr.bf16.mxu0 %v2347
        %2467 = vmatpush1.bf16.msra.mxu0 %v2346
        %2468 = vmatprep.subr.bf16.mxu0 %v2351
        %2469 = vmatpush1.bf16.msra.mxu0 %v2350
        %2470 = vmatprep.subr.bf16.mxu0 %v2355
        %2471 = vmatpush1.bf16.msra.mxu0 %v2354
        %2472 = vmatprep.subr.bf16.mxu0 %v2359
        %2473 = vmatpush1.bf16.msra.mxu0 %v2358
        %2474 = vmatprep.subr.bf16.mxu0 %v2363
        %2475 = vmatpush1.bf16.msra.mxu0 %v2362
        %2476 = vmatprep.subr.bf16.mxu0 %v2367
        %2477 = vmatpush1.bf16.msra.mxu0 %v2366
        %2478 = vmatprep.subr.bf16.mxu0 %v2371
        %2479 = vmatpush1.bf16.msra.mxu0 %v2370
        %2480 = vmatprep.subr.bf16.mxu0 %v2375
        %2481 = vmatpush1.bf16.msra.mxu0 %v2374
        %2482 = vmatprep.subr.bf16.mxu0 %v2379
        %2483 = vmatpush1.bf16.msra.mxu0 %v2378
        %2484 = vmatprep.subr.bf16.mxu0 %v2383
        %2485 = vmatpush1.bf16.msra.mxu0 %v2382
        %2486 = vmatprep.subr.bf16.mxu0 %v2387
        %2487 = vmatpush1.bf16.msra.mxu0 %v2386
        %2488 = vmatprep.subr.bf16.mxu0 %v2391
        %2489 = vmatpush1.bf16.msra.mxu0 %v2390
        %2490 = vmatprep.mubr.bf16.mxu0 %v2121
        %2491 = vmatmul.mubr.bf16.gmra.mrb[0].mxu0 %v2120
        %v2492 = vpop.f32.mrb[0].mxu0
        %v2493 = vadd.f32 %v2125, %v2492
        %v2494 = vpop.f32.mrb[0].mxu0
        %v2495 = vadd.f32 %v2129, %v2494
        %v2496 = vpop.f32.mrb[0].mxu0
        %v2497 = vpop.f32.mrb[0].mxu0
        %2498 = vdwg.mxu0
        %2499 = vmatprep.subr.bf16.mxu0 %v2333
        %2500 = vmatpush1.bf16.msra.mxu0 %v2332
        %2501 = vmatprep.subr.bf16.mxu0 %v2337
        %2502 = vmatpush1.bf16.msra.mxu0 %v2336
        %2503 = vmatprep.subr.bf16.mxu0 %v2341
        %2504 = vmatpush1.bf16.msra.mxu0 %v2340
        %2505 = vmatprep.subr.bf16.mxu0 %v2345
        %2506 = vmatpush1.bf16.msra.mxu0 %v2344
        %2507 = vmatprep.subr.bf16.mxu0 %v2349
        %2508 = vmatpush1.bf16.msra.mxu0 %v2348
        %2509 = vmatprep.subr.bf16.mxu0 %v2353
        %2510 = vmatpush1.bf16.msra.mxu0 %v2352
        %2511 = vmatprep.subr.bf16.mxu0 %v2357
        %2512 = vmatpush1.bf16.msra.mxu0 %v2356
        %2513 = vmatprep.subr.bf16.mxu0 %v2361
        %2514 = vmatpush1.bf16.msra.mxu0 %v2360
        %2515 = vmatprep.subr.bf16.mxu0 %v2365
        %2516 = vmatpush1.bf16.msra.mxu0 %v2364
        %2517 = vmatprep.subr.bf16.mxu0 %v2369
        %2518 = vmatpush1.bf16.msra.mxu0 %v2368
        %2519 = vmatprep.subr.bf16.mxu0 %v2373
        %2520 = vmatpush1.bf16.msra.mxu0 %v2372
        %2521 = vmatprep.subr.bf16.mxu0 %v2377
        %2522 = vmatpush1.bf16.msra.mxu0 %v2376
        %2523 = vmatprep.subr.bf16.mxu0 %v2381
        %2524 = vmatpush1.bf16.msra.mxu0 %v2380
        %2525 = vmatprep.subr.bf16.mxu0 %v2385
        %2526 = vmatpush1.bf16.msra.mxu0 %v2384
        %2527 = vmatprep.subr.bf16.mxu0 %v2389
        %2528 = vmatpush1.bf16.msra.mxu0 %v2388
        %2529 = vmatprep.subr.bf16.mxu0 %v2393
        %2530 = vmatpush1.bf16.msra.mxu0 %v2392
        %2531 = vmatprep.mubr.bf16.mxu0 %v2121
        %2532 = vmatmul.mubr.bf16.gmra.mrb[0].mxu0 %v2120
        %v2533 = vpop.f32.mrb[0].mxu0
        %v2534 = vadd.f32 %v2133, %v2533
        %v2535 = vpop.f32.mrb[0].mxu0
        %v2536 = vadd.f32 %v2137, %v2535
        %v2537 = vpop.f32.mrb[0].mxu0
        %v2538 = vpop.f32.mrb[0].mxu0
        %2539 = vdwg.mxu0
        %v2540 = vadd.f32 %v2493, %v2495
        %v2541 = vadd.f32 %v2540, %v2534
        %v2542 = vadd.f32 %v2541, %v2536
        %2543 = vadd.xlane.f32.xlu0 %v2542
        %v2544 = vpop.xlane.xlu0 %2543
        %v2545 = vmul.f32 %v2544, %v1589
        %v2546 = vmul.f32 %v2493, %v2493
        %v2547 = vmul.f32 %v2495, %v2495
        %v2548 = vmul.f32 %v2534, %v2534
        %v2549 = vmul.f32 %v2536, %v2536
        %v2550 = vadd.f32 %v2546, %v2547
        %v2551 = vadd.f32 %v2550, %v2548
        %v2552 = vadd.f32 %v2551, %v2549
        %2553 = vadd.xlane.f32.xlu0 %v2552
        %v2554 = vpop.xlane.xlu0 %2553
        %v2555 = vmul.f32 %v2554, %v1589
        %v2556 = vmul.f32 %v2545, %v2545
        %v2557 = vsub.f32 %v2555, %v2556
        %v2558 = vmax.f32 %v2557, 0.0
        %v2559 = vsub.f32 %v2493, %v2545
        %v2560 = vsub.f32 %v2495, %v2545
        %v2561 = vsub.f32 %v2534, %v2545
        %v2562 = vsub.f32 %v2536, %v2545
        %v2563 = vadd.f32 %v2558, 1e-05
        %v2564 = vrsqrt.pop %v2563
        %v2565 = vmul.f32 %v2559, %v2564
        %v2566 = vmul.f32 %v2560, %v2564
        %v2567 = vmul.f32 %v2561, %v2564
        %v2568 = vmul.f32 %v2562, %v2564
        %v2569 = vlaneseq
        %v2570 = vshrl.u32 %v2569, 7
        %v2571 = vsub.s32 4, %v2570
        %v2572 = vrot.slane %v366, %v2571
        %v2573 = vlaneseq
        %v2574 = vshrl.u32 %v2573, 7
        %v2575 = vsub.s32 4, %v2574
        %v2576 = vrot.slane %v367, %v2575
        %v2577 = vlaneseq
        %v2578 = vshrl.u32 %v2577, 7
        %v2579 = vsub.s32 4, %v2578
        %v2580 = vrot.slane %v368, %v2579
        %v2581 = vlaneseq
        %v2582 = vshrl.u32 %v2581, 7
        %v2583 = vsub.s32 4, %v2582
        %v2584 = vrot.slane %v369, %v2583
        %v2585 = vmul.f32 %v2565, %v2572
        %v2586 = vmul.f32 %v2566, %v2576
        %v2587 = vmul.f32 %v2567, %v2580
        %v2588 = vmul.f32 %v2568, %v2584
        %v2589 = vlaneseq
        %v2590 = vshrl.u32 %v2589, 7
        %v2591 = vsub.s32 5, %v2590
        %v2592 = vrot.slane %v366, %v2591
        %v2593 = vlaneseq
        %v2594 = vshrl.u32 %v2593, 7
        %v2595 = vsub.s32 5, %v2594
        %v2596 = vrot.slane %v367, %v2595
        %v2597 = vlaneseq
        %v2598 = vshrl.u32 %v2597, 7
        %v2599 = vsub.s32 5, %v2598
        %v2600 = vrot.slane %v368, %v2599
        %v2601 = vlaneseq
        %v2602 = vshrl.u32 %v2601, 7
        %v2603 = vsub.s32 5, %v2602
        %v2604 = vrot.slane %v369, %v2603
        %v2605 = vadd.f32 %v2585, %v2592
        %v2606 = vadd.f32 %v2586, %v2596
        %v2607 = vadd.f32 %v2587, %v2600
        %v2608 = vadd.f32 %v2588, %v2604
        %v2609 = vmax.f32 %v2605, 0.0
        %v2610 = vmax.f32 %v2606, 0.0
        %v2611 = vmax.f32 %v2607, 0.0
        %v2612 = vmax.f32 %v2608, 0.0
        %v2613 = vpack.c.bf16 %v2609, %v2609
        %v2614 = vpack.c.bf16 %v2610, %v2610
        %v2615 = vpack.c.bf16 %v2611, %v2611
        %v2616 = vpack.c.bf16 %v2612, %v2612
        %v2617 = vlaneseq
        %v2618 = vshrl.u32 %v2617, 7
        %v2619 = vsub.s32 6, %v2618
        %v2620 = vrot.slane %v366, %v2619
        %v2621 = vlaneseq
        %v2622 = vshrl.u32 %v2621, 7
        %v2623 = vsub.s32 6, %v2622
        %v2624 = vrot.slane %v367, %v2623
        %v2625 = vlaneseq
        %v2626 = vshrl.u32 %v2625, 7
        %v2627 = vsub.s32 6, %v2626
        %v2628 = vrot.slane %v368, %v2627
        %v2629 = vlaneseq
        %v2630 = vshrl.u32 %v2629, 7
        %v2631 = vsub.s32 6, %v2630
        %v2632 = vrot.slane %v369, %v2631
        %v2761 = vunpack.c.l.b16 %v628
        %v2762 = vunpack.c.h.b16 %v628
        %v2763 = vunpack.c.l.b16 %v629
        %v2764 = vunpack.c.h.b16 %v629
        %v2765 = vunpack.c.l.b16 %v630
        %v2766 = vunpack.c.h.b16 %v630
        %v2767 = vunpack.c.l.b16 %v631
        %v2768 = vunpack.c.h.b16 %v631
        %v2769 = vunpack.c.l.b16 %v632
        %v2770 = vunpack.c.h.b16 %v632
        %v2771 = vunpack.c.l.b16 %v633
        %v2772 = vunpack.c.h.b16 %v633
        %v2773 = vunpack.c.l.b16 %v634
        %v2774 = vunpack.c.h.b16 %v634
        %v2775 = vunpack.c.l.b16 %v635
        %v2776 = vunpack.c.h.b16 %v635
        %v2777 = vunpack.c.l.b16 %v636
        %v2778 = vunpack.c.h.b16 %v636
        %v2779 = vunpack.c.l.b16 %v637
        %v2780 = vunpack.c.h.b16 %v637
        %v2781 = vunpack.c.l.b16 %v638
        %v2782 = vunpack.c.h.b16 %v638
        %v2783 = vunpack.c.l.b16 %v639
        %v2784 = vunpack.c.h.b16 %v639
        %v2785 = vunpack.c.l.b16 %v640
        %v2786 = vunpack.c.h.b16 %v640
        %v2787 = vunpack.c.l.b16 %v641
        %v2788 = vunpack.c.h.b16 %v641
        %v2789 = vunpack.c.l.b16 %v642
        %v2790 = vunpack.c.h.b16 %v642
        %v2791 = vunpack.c.l.b16 %v643
        %v2792 = vunpack.c.h.b16 %v643
        %v2793 = vunpack.c.l.b16 %v644
        %v2794 = vunpack.c.h.b16 %v644
        %v2795 = vunpack.c.l.b16 %v645
        %v2796 = vunpack.c.h.b16 %v645
        %v2797 = vunpack.c.l.b16 %v646
        %v2798 = vunpack.c.h.b16 %v646
        %v2799 = vunpack.c.l.b16 %v647
        %v2800 = vunpack.c.h.b16 %v647
        %v2801 = vunpack.c.l.b16 %v648
        %v2802 = vunpack.c.h.b16 %v648
        %v2803 = vunpack.c.l.b16 %v649
        %v2804 = vunpack.c.h.b16 %v649
        %v2805 = vunpack.c.l.b16 %v650
        %v2806 = vunpack.c.h.b16 %v650
        %v2807 = vunpack.c.l.b16 %v651
        %v2808 = vunpack.c.h.b16 %v651
        %v2809 = vunpack.c.l.b16 %v652
        %v2810 = vunpack.c.h.b16 %v652
        %v2811 = vunpack.c.l.b16 %v653
        %v2812 = vunpack.c.h.b16 %v653
        %v2813 = vunpack.c.l.b16 %v654
        %v2814 = vunpack.c.h.b16 %v654
        %v2815 = vunpack.c.l.b16 %v655
        %v2816 = vunpack.c.h.b16 %v655
        %v2817 = vunpack.c.l.b16 %v656
        %v2818 = vunpack.c.h.b16 %v656
        %v2819 = vunpack.c.l.b16 %v657
        %v2820 = vunpack.c.h.b16 %v657
        %v2821 = vunpack.c.l.b16 %v658
        %v2822 = vunpack.c.h.b16 %v658
        %v2823 = vunpack.c.l.b16 %v659
        %v2824 = vunpack.c.h.b16 %v659
        %v2825 = vunpack.c.l.b16 %v660
        %v2826 = vunpack.c.h.b16 %v660
        %v2827 = vunpack.c.l.b16 %v661
        %v2828 = vunpack.c.h.b16 %v661
        %v2829 = vunpack.c.l.b16 %v662
        %v2830 = vunpack.c.h.b16 %v662
        %v2831 = vunpack.c.l.b16 %v663
        %v2832 = vunpack.c.h.b16 %v663
        %v2833 = vunpack.c.l.b16 %v664
        %v2834 = vunpack.c.h.b16 %v664
        %v2835 = vunpack.c.l.b16 %v665
        %v2836 = vunpack.c.h.b16 %v665
        %v2837 = vunpack.c.l.b16 %v666
        %v2838 = vunpack.c.h.b16 %v666
        %v2839 = vunpack.c.l.b16 %v667
        %v2840 = vunpack.c.h.b16 %v667
        %v2841 = vunpack.c.l.b16 %v668
        %v2842 = vunpack.c.h.b16 %v668
        %v2843 = vunpack.c.l.b16 %v669
        %v2844 = vunpack.c.h.b16 %v669
        %v2845 = vunpack.c.l.b16 %v670
        %v2846 = vunpack.c.h.b16 %v670
        %v2847 = vunpack.c.l.b16 %v671
        %v2848 = vunpack.c.h.b16 %v671
        %v2849 = vunpack.c.l.b16 %v672
        %v2850 = vunpack.c.h.b16 %v672
        %v2851 = vunpack.c.l.b16 %v673
        %v2852 = vunpack.c.h.b16 %v673
        %v2853 = vunpack.c.l.b16 %v674
        %v2854 = vunpack.c.h.b16 %v674
        %v2855 = vunpack.c.l.b16 %v675
        %v2856 = vunpack.c.h.b16 %v675
        %v2857 = vunpack.c.l.b16 %v676
        %v2858 = vunpack.c.h.b16 %v676
        %v2859 = vunpack.c.l.b16 %v677
        %v2860 = vunpack.c.h.b16 %v677
        %v2861 = vunpack.c.l.b16 %v678
        %v2862 = vunpack.c.h.b16 %v678
        %v2863 = vunpack.c.l.b16 %v679
        %v2864 = vunpack.c.h.b16 %v679
        %v2865 = vunpack.c.l.b16 %v680
        %v2866 = vunpack.c.h.b16 %v680
        %v2867 = vunpack.c.l.b16 %v681
        %v2868 = vunpack.c.h.b16 %v681
        %v2869 = vunpack.c.l.b16 %v682
        %v2870 = vunpack.c.h.b16 %v682
        %v2871 = vunpack.c.l.b16 %v683
        %v2872 = vunpack.c.h.b16 %v683
        %v2873 = vunpack.c.l.b16 %v684
        %v2874 = vunpack.c.h.b16 %v684
        %v2875 = vunpack.c.l.b16 %v685
        %v2876 = vunpack.c.h.b16 %v685
        %v2877 = vunpack.c.l.b16 %v686
        %v2878 = vunpack.c.h.b16 %v686
        %v2879 = vunpack.c.l.b16 %v687
        %v2880 = vunpack.c.h.b16 %v687
        %v2881 = vunpack.c.l.b16 %v688
        %v2882 = vunpack.c.h.b16 %v688
        %v2883 = vunpack.c.l.b16 %v689
        %v2884 = vunpack.c.h.b16 %v689
        %v2885 = vunpack.c.l.b16 %v690
        %v2886 = vunpack.c.h.b16 %v690
        %v2887 = vunpack.c.l.b16 %v691
        %v2888 = vunpack.c.h.b16 %v691
        %v2889 = vunpack.c.l.b16 %v692
        %v2890 = vunpack.c.h.b16 %v692
        %v2891 = vunpack.c.l.b16 %v693
        %v2892 = vunpack.c.h.b16 %v693
        %v2893 = vunpack.c.l.b16 %v694
        %v2894 = vunpack.c.h.b16 %v694
        %v2895 = vunpack.c.l.b16 %v695
        %v2896 = vunpack.c.h.b16 %v695
        %v2897 = vunpack.c.l.b16 %v696
        %v2898 = vunpack.c.h.b16 %v696
        %v2899 = vunpack.c.l.b16 %v697
        %v2900 = vunpack.c.h.b16 %v697
        %v2901 = vunpack.c.l.b16 %v698
        %v2902 = vunpack.c.h.b16 %v698
        %v2903 = vunpack.c.l.b16 %v699
        %v2904 = vunpack.c.h.b16 %v699
        %v2905 = vunpack.c.l.b16 %v700
        %v2906 = vunpack.c.h.b16 %v700
        %v2907 = vunpack.c.l.b16 %v701
        %v2908 = vunpack.c.h.b16 %v701
        %v2909 = vunpack.c.l.b16 %v702
        %v2910 = vunpack.c.h.b16 %v702
        %v2911 = vunpack.c.l.b16 %v703
        %v2912 = vunpack.c.h.b16 %v703
        %v2913 = vunpack.c.l.b16 %v704
        %v2914 = vunpack.c.h.b16 %v704
        %v2915 = vunpack.c.l.b16 %v705
        %v2916 = vunpack.c.h.b16 %v705
        %v2917 = vunpack.c.l.b16 %v706
        %v2918 = vunpack.c.h.b16 %v706
        %v2919 = vunpack.c.l.b16 %v707
        %v2920 = vunpack.c.h.b16 %v707
        %v2921 = vunpack.c.l.b16 %v708
        %v2922 = vunpack.c.h.b16 %v708
        %v2923 = vunpack.c.l.b16 %v709
        %v2924 = vunpack.c.h.b16 %v709
        %v2925 = vunpack.c.l.b16 %v710
        %v2926 = vunpack.c.h.b16 %v710
        %v2927 = vunpack.c.l.b16 %v711
        %v2928 = vunpack.c.h.b16 %v711
        %v2929 = vunpack.c.l.b16 %v712
        %v2930 = vunpack.c.h.b16 %v712
        %v2931 = vunpack.c.l.b16 %v713
        %v2932 = vunpack.c.h.b16 %v713
        %v2933 = vunpack.c.l.b16 %v714
        %v2934 = vunpack.c.h.b16 %v714
        %v2935 = vunpack.c.l.b16 %v715
        %v2936 = vunpack.c.h.b16 %v715
        %v2937 = vunpack.c.l.b16 %v716
        %v2938 = vunpack.c.h.b16 %v716
        %v2939 = vunpack.c.l.b16 %v717
        %v2940 = vunpack.c.h.b16 %v717
        %v2941 = vunpack.c.l.b16 %v718
        %v2942 = vunpack.c.h.b16 %v718
        %v2943 = vunpack.c.l.b16 %v719
        %v2944 = vunpack.c.h.b16 %v719
        %v2945 = vunpack.c.l.b16 %v720
        %v2946 = vunpack.c.h.b16 %v720
        %v2947 = vunpack.c.l.b16 %v721
        %v2948 = vunpack.c.h.b16 %v721
        %v2949 = vunpack.c.l.b16 %v722
        %v2950 = vunpack.c.h.b16 %v722
        %v2951 = vunpack.c.l.b16 %v723
        %v2952 = vunpack.c.h.b16 %v723
        %v2953 = vunpack.c.l.b16 %v724
        %v2954 = vunpack.c.h.b16 %v724
        %v2955 = vunpack.c.l.b16 %v725
        %v2956 = vunpack.c.h.b16 %v725
        %v2957 = vunpack.c.l.b16 %v726
        %v2958 = vunpack.c.h.b16 %v726
        %v2959 = vunpack.c.l.b16 %v727
        %v2960 = vunpack.c.h.b16 %v727
        %v2961 = vunpack.c.l.b16 %v728
        %v2962 = vunpack.c.h.b16 %v728
        %v2963 = vunpack.c.l.b16 %v729
        %v2964 = vunpack.c.h.b16 %v729
        %v2965 = vunpack.c.l.b16 %v730
        %v2966 = vunpack.c.h.b16 %v730
        %v2967 = vunpack.c.l.b16 %v731
        %v2968 = vunpack.c.h.b16 %v731
        %v2969 = vunpack.c.l.b16 %v732
        %v2970 = vunpack.c.h.b16 %v732
        %v2971 = vunpack.c.l.b16 %v733
        %v2972 = vunpack.c.h.b16 %v733
        %v2973 = vunpack.c.l.b16 %v734
        %v2974 = vunpack.c.h.b16 %v734
        %v2975 = vunpack.c.l.b16 %v735
        %v2976 = vunpack.c.h.b16 %v735
        %v2977 = vunpack.c.l.b16 %v736
        %v2978 = vunpack.c.h.b16 %v736
        %v2979 = vunpack.c.l.b16 %v737
        %v2980 = vunpack.c.h.b16 %v737
        %v2981 = vunpack.c.l.b16 %v738
        %v2982 = vunpack.c.h.b16 %v738
        %v2983 = vunpack.c.l.b16 %v739
        %v2984 = vunpack.c.h.b16 %v739
        %v2985 = vunpack.c.l.b16 %v740
        %v2986 = vunpack.c.h.b16 %v740
        %v2987 = vunpack.c.l.b16 %v741
        %v2988 = vunpack.c.h.b16 %v741
        %v2989 = vunpack.c.l.b16 %v742
        %v2990 = vunpack.c.h.b16 %v742
        %v2991 = vunpack.c.l.b16 %v743
        %v2992 = vunpack.c.h.b16 %v743
        %v2993 = vunpack.c.l.b16 %v744
        %v2994 = vunpack.c.h.b16 %v744
        %v2995 = vunpack.c.l.b16 %v745
        %v2996 = vunpack.c.h.b16 %v745
        %v2997 = vunpack.c.l.b16 %v746
        %v2998 = vunpack.c.h.b16 %v746
        %v2999 = vunpack.c.l.b16 %v747
        %v3000 = vunpack.c.h.b16 %v747
        %v3001 = vunpack.c.l.b16 %v748
        %v3002 = vunpack.c.h.b16 %v748
        %v3003 = vunpack.c.l.b16 %v749
        %v3004 = vunpack.c.h.b16 %v749
        %v3005 = vunpack.c.l.b16 %v750
        %v3006 = vunpack.c.h.b16 %v750
        %v3007 = vunpack.c.l.b16 %v751
        %v3008 = vunpack.c.h.b16 %v751
        %v3009 = vunpack.c.l.b16 %v752
        %v3010 = vunpack.c.h.b16 %v752
        %v3011 = vunpack.c.l.b16 %v753
        %v3012 = vunpack.c.h.b16 %v753
        %v3013 = vunpack.c.l.b16 %v754
        %v3014 = vunpack.c.h.b16 %v754
        %v3015 = vunpack.c.l.b16 %v755
        %v3016 = vunpack.c.h.b16 %v755
        %v3017 = vpack.c.b16 %v2765, %v2761
        %v3018 = vpack.c.b16 %v2766, %v2762
        %v3019 = vpack.c.b16 %v2767, %v2763
        %v3020 = vpack.c.b16 %v2768, %v2764
        %v3021 = vpack.c.b16 %v2773, %v2769
        %v3022 = vpack.c.b16 %v2774, %v2770
        %v3023 = vpack.c.b16 %v2775, %v2771
        %v3024 = vpack.c.b16 %v2776, %v2772
        %v3025 = vpack.c.b16 %v2781, %v2777
        %v3026 = vpack.c.b16 %v2782, %v2778
        %v3027 = vpack.c.b16 %v2783, %v2779
        %v3028 = vpack.c.b16 %v2784, %v2780
        %v3029 = vpack.c.b16 %v2789, %v2785
        %v3030 = vpack.c.b16 %v2790, %v2786
        %v3031 = vpack.c.b16 %v2791, %v2787
        %v3032 = vpack.c.b16 %v2792, %v2788
        %v3033 = vpack.c.b16 %v2797, %v2793
        %v3034 = vpack.c.b16 %v2798, %v2794
        %v3035 = vpack.c.b16 %v2799, %v2795
        %v3036 = vpack.c.b16 %v2800, %v2796
        %v3037 = vpack.c.b16 %v2805, %v2801
        %v3038 = vpack.c.b16 %v2806, %v2802
        %v3039 = vpack.c.b16 %v2807, %v2803
        %v3040 = vpack.c.b16 %v2808, %v2804
        %v3041 = vpack.c.b16 %v2813, %v2809
        %v3042 = vpack.c.b16 %v2814, %v2810
        %v3043 = vpack.c.b16 %v2815, %v2811
        %v3044 = vpack.c.b16 %v2816, %v2812
        %v3045 = vpack.c.b16 %v2821, %v2817
        %v3046 = vpack.c.b16 %v2822, %v2818
        %v3047 = vpack.c.b16 %v2823, %v2819
        %v3048 = vpack.c.b16 %v2824, %v2820
        %v3049 = vpack.c.b16 %v2829, %v2825
        %v3050 = vpack.c.b16 %v2830, %v2826
        %v3051 = vpack.c.b16 %v2831, %v2827
        %v3052 = vpack.c.b16 %v2832, %v2828
        %v3053 = vpack.c.b16 %v2837, %v2833
        %v3054 = vpack.c.b16 %v2838, %v2834
        %v3055 = vpack.c.b16 %v2839, %v2835
        %v3056 = vpack.c.b16 %v2840, %v2836
        %v3057 = vpack.c.b16 %v2845, %v2841
        %v3058 = vpack.c.b16 %v2846, %v2842
        %v3059 = vpack.c.b16 %v2847, %v2843
        %v3060 = vpack.c.b16 %v2848, %v2844
        %v3061 = vpack.c.b16 %v2853, %v2849
        %v3062 = vpack.c.b16 %v2854, %v2850
        %v3063 = vpack.c.b16 %v2855, %v2851
        %v3064 = vpack.c.b16 %v2856, %v2852
        %v3065 = vpack.c.b16 %v2861, %v2857
        %v3066 = vpack.c.b16 %v2862, %v2858
        %v3067 = vpack.c.b16 %v2863, %v2859
        %v3068 = vpack.c.b16 %v2864, %v2860
        %v3069 = vpack.c.b16 %v2869, %v2865
        %v3070 = vpack.c.b16 %v2870, %v2866
        %v3071 = vpack.c.b16 %v2871, %v2867
        %v3072 = vpack.c.b16 %v2872, %v2868
        %v3073 = vpack.c.b16 %v2877, %v2873
        %v3074 = vpack.c.b16 %v2878, %v2874
        %v3075 = vpack.c.b16 %v2879, %v2875
        %v3076 = vpack.c.b16 %v2880, %v2876
        %v3077 = vpack.c.b16 %v2885, %v2881
        %v3078 = vpack.c.b16 %v2886, %v2882
        %v3079 = vpack.c.b16 %v2887, %v2883
        %v3080 = vpack.c.b16 %v2888, %v2884
        %v3081 = vpack.c.b16 %v2893, %v2889
        %v3082 = vpack.c.b16 %v2894, %v2890
        %v3083 = vpack.c.b16 %v2895, %v2891
        %v3084 = vpack.c.b16 %v2896, %v2892
        %v3085 = vpack.c.b16 %v2901, %v2897
        %v3086 = vpack.c.b16 %v2902, %v2898
        %v3087 = vpack.c.b16 %v2903, %v2899
        %v3088 = vpack.c.b16 %v2904, %v2900
        %v3089 = vpack.c.b16 %v2909, %v2905
        %v3090 = vpack.c.b16 %v2910, %v2906
        %v3091 = vpack.c.b16 %v2911, %v2907
        %v3092 = vpack.c.b16 %v2912, %v2908
        %v3093 = vpack.c.b16 %v2917, %v2913
        %v3094 = vpack.c.b16 %v2918, %v2914
        %v3095 = vpack.c.b16 %v2919, %v2915
        %v3096 = vpack.c.b16 %v2920, %v2916
        %v3097 = vpack.c.b16 %v2925, %v2921
        %v3098 = vpack.c.b16 %v2926, %v2922
        %v3099 = vpack.c.b16 %v2927, %v2923
        %v3100 = vpack.c.b16 %v2928, %v2924
        %v3101 = vpack.c.b16 %v2933, %v2929
        %v3102 = vpack.c.b16 %v2934, %v2930
        %v3103 = vpack.c.b16 %v2935, %v2931
        %v3104 = vpack.c.b16 %v2936, %v2932
        %v3105 = vpack.c.b16 %v2941, %v2937
        %v3106 = vpack.c.b16 %v2942, %v2938
        %v3107 = vpack.c.b16 %v2943, %v2939
        %v3108 = vpack.c.b16 %v2944, %v2940
        %v3109 = vpack.c.b16 %v2949, %v2945
        %v3110 = vpack.c.b16 %v2950, %v2946
        %v3111 = vpack.c.b16 %v2951, %v2947
        %v3112 = vpack.c.b16 %v2952, %v2948
        %v3113 = vpack.c.b16 %v2957, %v2953
        %v3114 = vpack.c.b16 %v2958, %v2954
        %v3115 = vpack.c.b16 %v2959, %v2955
        %v3116 = vpack.c.b16 %v2960, %v2956
        %v3117 = vpack.c.b16 %v2965, %v2961
        %v3118 = vpack.c.b16 %v2966, %v2962
        %v3119 = vpack.c.b16 %v2967, %v2963
        %v3120 = vpack.c.b16 %v2968, %v2964
        %v3121 = vpack.c.b16 %v2973, %v2969
        %v3122 = vpack.c.b16 %v2974, %v2970
        %v3123 = vpack.c.b16 %v2975, %v2971
        %v3124 = vpack.c.b16 %v2976, %v2972
        %v3125 = vpack.c.b16 %v2981, %v2977
        %v3126 = vpack.c.b16 %v2982, %v2978
        %v3127 = vpack.c.b16 %v2983, %v2979
        %v3128 = vpack.c.b16 %v2984, %v2980
        %v3129 = vpack.c.b16 %v2989, %v2985
        %v3130 = vpack.c.b16 %v2990, %v2986
        %v3131 = vpack.c.b16 %v2991, %v2987
        %v3132 = vpack.c.b16 %v2992, %v2988
        %v3133 = vpack.c.b16 %v2997, %v2993
        %v3134 = vpack.c.b16 %v2998, %v2994
        %v3135 = vpack.c.b16 %v2999, %v2995
        %v3136 = vpack.c.b16 %v3000, %v2996
        %v3137 = vpack.c.b16 %v3005, %v3001
        %v3138 = vpack.c.b16 %v3006, %v3002
        %v3139 = vpack.c.b16 %v3007, %v3003
        %v3140 = vpack.c.b16 %v3008, %v3004
        %v3141 = vpack.c.b16 %v3013, %v3009
        %v3142 = vpack.c.b16 %v3014, %v3010
        %v3143 = vpack.c.b16 %v3015, %v3011
        %v3144 = vpack.c.b16 %v3016, %v3012
        %3273 = vmatprep.subr.bf16.mxu0 %v3018
        %3274 = vmatpush1.bf16.msra.mxu0 %v3017
        %3275 = vmatprep.subr.bf16.mxu0 %v3022
        %3276 = vmatpush1.bf16.msra.mxu0 %v3021
        %3277 = vmatprep.subr.bf16.mxu0 %v3026
        %3278 = vmatpush1.bf16.msra.mxu0 %v3025
        %3279 = vmatprep.subr.bf16.mxu0 %v3030
        %3280 = vmatpush1.bf16.msra.mxu0 %v3029
        %3281 = vmatprep.subr.bf16.mxu0 %v3034
        %3282 = vmatpush1.bf16.msra.mxu0 %v3033
        %3283 = vmatprep.subr.bf16.mxu0 %v3038
        %3284 = vmatpush1.bf16.msra.mxu0 %v3037
        %3285 = vmatprep.subr.bf16.mxu0 %v3042
        %3286 = vmatpush1.bf16.msra.mxu0 %v3041
        %3287 = vmatprep.subr.bf16.mxu0 %v3046
        %3288 = vmatpush1.bf16.msra.mxu0 %v3045
        %3289 = vmatprep.subr.bf16.mxu0 %v3050
        %3290 = vmatpush1.bf16.msra.mxu0 %v3049
        %3291 = vmatprep.subr.bf16.mxu0 %v3054
        %3292 = vmatpush1.bf16.msra.mxu0 %v3053
        %3293 = vmatprep.subr.bf16.mxu0 %v3058
        %3294 = vmatpush1.bf16.msra.mxu0 %v3057
        %3295 = vmatprep.subr.bf16.mxu0 %v3062
        %3296 = vmatpush1.bf16.msra.mxu0 %v3061
        %3297 = vmatprep.subr.bf16.mxu0 %v3066
        %3298 = vmatpush1.bf16.msra.mxu0 %v3065
        %3299 = vmatprep.subr.bf16.mxu0 %v3070
        %3300 = vmatpush1.bf16.msra.mxu0 %v3069
        %3301 = vmatprep.subr.bf16.mxu0 %v3074
        %3302 = vmatpush1.bf16.msra.mxu0 %v3073
        %3303 = vmatprep.subr.bf16.mxu0 %v3078
        %3304 = vmatpush1.bf16.msra.mxu0 %v3077
        %3305 = vmatprep.mubr.bf16.mxu0 %v2614
        %3306 = vmatmul.mubr.bf16.gmra.mrb[0].mxu0 %v2613
        %v3307 = vpop.f32.mrb[0].mxu0
        %v3308 = vadd.f32 %v2620, %v3307
        %v3309 = vpop.f32.mrb[0].mxu0
        %v3310 = vadd.f32 %v2624, %v3309
        %v3311 = vpop.f32.mrb[0].mxu0
        %v3312 = vpop.f32.mrb[0].mxu0
        %3313 = vdwg.mxu0
        %3314 = vmatprep.subr.bf16.mxu0 %v3082
        %3315 = vmatpush1.bf16.msra.mxu0 %v3081
        %3316 = vmatprep.subr.bf16.mxu0 %v3086
        %3317 = vmatpush1.bf16.msra.mxu0 %v3085
        %3318 = vmatprep.subr.bf16.mxu0 %v3090
        %3319 = vmatpush1.bf16.msra.mxu0 %v3089
        %3320 = vmatprep.subr.bf16.mxu0 %v3094
        %3321 = vmatpush1.bf16.msra.mxu0 %v3093
        %3322 = vmatprep.subr.bf16.mxu0 %v3098
        %3323 = vmatpush1.bf16.msra.mxu0 %v3097
        %3324 = vmatprep.subr.bf16.mxu0 %v3102
        %3325 = vmatpush1.bf16.msra.mxu0 %v3101
        %3326 = vmatprep.subr.bf16.mxu0 %v3106
        %3327 = vmatpush1.bf16.msra.mxu0 %v3105
        %3328 = vmatprep.subr.bf16.mxu0 %v3110
        %3329 = vmatpush1.bf16.msra.mxu0 %v3109
        %3330 = vmatprep.subr.bf16.mxu0 %v3114
        %3331 = vmatpush1.bf16.msra.mxu0 %v3113
        %3332 = vmatprep.subr.bf16.mxu0 %v3118
        %3333 = vmatpush1.bf16.msra.mxu0 %v3117
        %3334 = vmatprep.subr.bf16.mxu0 %v3122
        %3335 = vmatpush1.bf16.msra.mxu0 %v3121
        %3336 = vmatprep.subr.bf16.mxu0 %v3126
        %3337 = vmatpush1.bf16.msra.mxu0 %v3125
        %3338 = vmatprep.subr.bf16.mxu0 %v3130
        %3339 = vmatpush1.bf16.msra.mxu0 %v3129
        %3340 = vmatprep.subr.bf16.mxu0 %v3134
        %3341 = vmatpush1.bf16.msra.mxu0 %v3133
        %3342 = vmatprep.subr.bf16.mxu0 %v3138
        %3343 = vmatpush1.bf16.msra.mxu0 %v3137
        %3344 = vmatprep.subr.bf16.mxu0 %v3142
        %3345 = vmatpush1.bf16.msra.mxu0 %v3141
        %3346 = vmatprep.mubr.bf16.mxu0 %v2616
        %3347 = vmatmul.mubr.bf16.gmra.mrb[0].mxu0 %v2615
        %v3348 = vpop.f32.mrb[0].mxu0
        %v3349 = vadd.f32 %v3308, %v3348
        %v3350 = vpop.f32.mrb[0].mxu0
        %v3351 = vadd.f32 %v3310, %v3350
        %v3352 = vpop.f32.mrb[0].mxu0
        %v3353 = vpop.f32.mrb[0].mxu0
        %3354 = vdwg.mxu0
        %3355 = vmatprep.subr.bf16.mxu0 %v3020
        %3356 = vmatpush1.bf16.msra.mxu0 %v3019
        %3357 = vmatprep.subr.bf16.mxu0 %v3024
        %3358 = vmatpush1.bf16.msra.mxu0 %v3023
        %3359 = vmatprep.subr.bf16.mxu0 %v3028
        %3360 = vmatpush1.bf16.msra.mxu0 %v3027
        %3361 = vmatprep.subr.bf16.mxu0 %v3032
        %3362 = vmatpush1.bf16.msra.mxu0 %v3031
        %3363 = vmatprep.subr.bf16.mxu0 %v3036
        %3364 = vmatpush1.bf16.msra.mxu0 %v3035
        %3365 = vmatprep.subr.bf16.mxu0 %v3040
        %3366 = vmatpush1.bf16.msra.mxu0 %v3039
        %3367 = vmatprep.subr.bf16.mxu0 %v3044
        %3368 = vmatpush1.bf16.msra.mxu0 %v3043
        %3369 = vmatprep.subr.bf16.mxu0 %v3048
        %3370 = vmatpush1.bf16.msra.mxu0 %v3047
        %3371 = vmatprep.subr.bf16.mxu0 %v3052
        %3372 = vmatpush1.bf16.msra.mxu0 %v3051
        %3373 = vmatprep.subr.bf16.mxu0 %v3056
        %3374 = vmatpush1.bf16.msra.mxu0 %v3055
        %3375 = vmatprep.subr.bf16.mxu0 %v3060
        %3376 = vmatpush1.bf16.msra.mxu0 %v3059
        %3377 = vmatprep.subr.bf16.mxu0 %v3064
        %3378 = vmatpush1.bf16.msra.mxu0 %v3063
        %3379 = vmatprep.subr.bf16.mxu0 %v3068
        %3380 = vmatpush1.bf16.msra.mxu0 %v3067
        %3381 = vmatprep.subr.bf16.mxu0 %v3072
        %3382 = vmatpush1.bf16.msra.mxu0 %v3071
        %3383 = vmatprep.subr.bf16.mxu0 %v3076
        %3384 = vmatpush1.bf16.msra.mxu0 %v3075
        %3385 = vmatprep.subr.bf16.mxu0 %v3080
        %3386 = vmatpush1.bf16.msra.mxu0 %v3079
        %3387 = vmatprep.mubr.bf16.mxu0 %v2614
        %3388 = vmatmul.mubr.bf16.gmra.mrb[0].mxu0 %v2613
        %v3389 = vpop.f32.mrb[0].mxu0
        %v3390 = vadd.f32 %v2628, %v3389
        %v3391 = vpop.f32.mrb[0].mxu0
        %v3392 = vadd.f32 %v2632, %v3391
        %v3393 = vpop.f32.mrb[0].mxu0
        %v3394 = vpop.f32.mrb[0].mxu0
        %3395 = vdwg.mxu0
        %3396 = vmatprep.subr.bf16.mxu0 %v3084
        %3397 = vmatpush1.bf16.msra.mxu0 %v3083
        %3398 = vmatprep.subr.bf16.mxu0 %v3088
        %3399 = vmatpush1.bf16.msra.mxu0 %v3087
        %3400 = vmatprep.subr.bf16.mxu0 %v3092
        %3401 = vmatpush1.bf16.msra.mxu0 %v3091
        %3402 = vmatprep.subr.bf16.mxu0 %v3096
        %3403 = vmatpush1.bf16.msra.mxu0 %v3095
        %3404 = vmatprep.subr.bf16.mxu0 %v3100
        %3405 = vmatpush1.bf16.msra.mxu0 %v3099
        %3406 = vmatprep.subr.bf16.mxu0 %v3104
        %3407 = vmatpush1.bf16.msra.mxu0 %v3103
        %3408 = vmatprep.subr.bf16.mxu0 %v3108
        %3409 = vmatpush1.bf16.msra.mxu0 %v3107
        %3410 = vmatprep.subr.bf16.mxu0 %v3112
        %3411 = vmatpush1.bf16.msra.mxu0 %v3111
        %3412 = vmatprep.subr.bf16.mxu0 %v3116
        %3413 = vmatpush1.bf16.msra.mxu0 %v3115
        %3414 = vmatprep.subr.bf16.mxu0 %v3120
        %3415 = vmatpush1.bf16.msra.mxu0 %v3119
        %3416 = vmatprep.subr.bf16.mxu0 %v3124
        %3417 = vmatpush1.bf16.msra.mxu0 %v3123
        %3418 = vmatprep.subr.bf16.mxu0 %v3128
        %3419 = vmatpush1.bf16.msra.mxu0 %v3127
        %3420 = vmatprep.subr.bf16.mxu0 %v3132
        %3421 = vmatpush1.bf16.msra.mxu0 %v3131
        %3422 = vmatprep.subr.bf16.mxu0 %v3136
        %3423 = vmatpush1.bf16.msra.mxu0 %v3135
        %3424 = vmatprep.subr.bf16.mxu0 %v3140
        %3425 = vmatpush1.bf16.msra.mxu0 %v3139
        %3426 = vmatprep.subr.bf16.mxu0 %v3144
        %3427 = vmatpush1.bf16.msra.mxu0 %v3143
        %3428 = vmatprep.mubr.bf16.mxu0 %v2616
        %3429 = vmatmul.mubr.bf16.gmra.mrb[0].mxu0 %v2615
        %v3430 = vpop.f32.mrb[0].mxu0
        %v3431 = vadd.f32 %v3390, %v3430
        %v3432 = vpop.f32.mrb[0].mxu0
        %v3433 = vadd.f32 %v3392, %v3432
        %v3434 = vpop.f32.mrb[0].mxu0
        %v3435 = vpop.f32.mrb[0].mxu0
        %3436 = vdwg.mxu0
        %3437 = vst [vmem:[%s365] sm:$0xff] %v3349
        %3438 = vst [vmem:[%s365 + $0x8] sm:$0xff] %v3351
        %3439 = vst [vmem:[%s365 + $0x10] sm:$0xff] %v3431
        %3440 = vst [vmem:[%s365 + $0x18] sm:$0xff] %v3433
        %s3441 = sand.u32 %s187, 1
        %s3442 = scalar_lea.sflag [#allocation4], %s3441
        %s3443 = sand.u32 %s187, 1
        %s3444 = smul.addr %s3443, 32
        %s3445 = scalar_lea.vmem [#allocation13], %s3444
        // Predicated region
        $region73: #{tpu_custom_call.1} parent=47 // pred_check
          %p3446 = pneg %p197
        $region74: #{tpu_custom_call.1} parent=47 // pred_check_branch
          %3448 = sbr.rel (%p3446) target = $region76
        $region75: #{tpu_custom_call.1} parent=47 // pred_region
          %s3450 = ssub.s32 512, 512
          %3451 = vsyncadd %s3442, %s3450
          %s3452 = smul.addr %s27, 4
          %s3453 = smul.addr %s3452, 128
          %s3454 = scalar_lea.hbm %s7, %s3453
          %s3456 = sshll.u32 %s3445, 4
          %s3457 = int_to_ptr.vmem [resolvable:$true] %s3456
          %3459 = dma.vmem_to_hbm [thread:$0]  %s3457, 512, %s3454, %s3442
        $region76: #{tpu_custom_call.1} parent=47 // pred_fallthru
          _
      $region48: #{tpu_custom_call.1} parent=5 // pred_fallthru
        _
      %p3460 = scmp.le.s32.totalorder 2, %s22
      // Predicated region
      $region77: #{tpu_custom_call.1} parent=5 // pred_check
        %p3461 = pneg %p3460
      $region78: #{tpu_custom_call.1} parent=5 // pred_check_branch
        %3463 = sbr.rel (%p3461) target = $region80
      $region79: #{tpu_custom_call.1} parent=5 // pred_region
        %s3464 = ssub.s32 %s22, 2
        // Predicated region
        $region81: #{tpu_custom_call.1} parent=79 // pred_check
          %p3465 = pneg %p203
        $region82: #{tpu_custom_call.1} parent=79 // pred_check_branch
          %3467 = sbr.rel (%p3465) target = $region84
        $region83: #{tpu_custom_call.1} parent=79 // pred_region
          %s3468 = sand.u32 %s188, 1
          %s3469 = scalar_lea.sflag [#allocation4], %s3468
          %s3470 = sand.u32 %s188, 1
          %s3471 = smul.addr %s3470, 32
          %s3472 = scalar_lea.vmem [#allocation13], %s3471
          %3473 = dma.done %s3469, 512
        $region84: #{tpu_custom_call.1} parent=79 // pred_fallthru
          _
      $region80: #{tpu_custom_call.1} parent=5 // pred_fallthru
        _
    $region6: #{tpu_custom_call.1} parent=1 // loop_footer
      %s26 = sadd.s32 1, %s22
    $region7: #{tpu_custom_call.1} parent=1 // loop_footer_branch
      %21 = sbr.rel target = $region3
    $region8: #{tpu_custom_call.1} parent=1 // loop_exit
      _
    %3474 = vsyncpa [#allocation3], 1
    %s3475 = scalar_lea.sflag [#allocation3], 1
    %3476 = vsyncpa %s3475, 1
    %3477 = vsyncpa [#allocation6], 1
    %3478 = vsyncpa [#allocation9], 1
    %3479 = vsyncpa [#allocation12], 1
    %3480 = vsyncpa [#allocation4], 1
    %s3481 = scalar_lea.sflag [#allocation4], 1
    %3482 = vsyncpa %s3481, 1

</llo_original>
